<compile_context>
chip_gen: v7x
topology: tpu7x:2x2x1
jax: 0.10.0
libtpu: 0.0.40
codegen_flags: <defaults>
</compile_context>

<pallas_src>
import functools

import jax
import jax.numpy as jnp
from jax import lax
from jax.experimental import pallas as pl
from jax.experimental.pallas import tpu as pltpu

EPS = 1e-5


# ---------------------------------------------------------------------------
# Fused Pallas kernel: (conv3x3 -> BN(train) -> ReLU) x 2, all in VMEM.
#
# Layouts inside the kernel (channel-major, spatial flattened & lane padded):
#   x_ref    : (Cin,  Lp)  Lp = round_up(N*Hp*Wp, 128), zero spatial halo + tail
#   mask_ref : (1,    Lp)  1.0 at interior (real) pixels, 0.0 at halo/tail
#   wX_ref   : (9, Cout, Cin)  per-tap weights, tap index = ky*3+kx
#   gX/bX    : (Cout, 1)   BN affine
#   out_ref  : (Cout, Lp)  lane-dense result (interior sliced out by wrapper)
# ---------------------------------------------------------------------------
def _fused_double_conv_kernel(x_ref, mask_ref, w1_ref, g1_ref, b1_ref,
                              w2_ref, g2_ref, b2_ref, out_ref, *, N, H, W):
    Hp, Wp = H + 2, W + 2
    Lp = x_ref.shape[-1]
    inv_count = 1.0 / float(N * H * W)

    x = x_ref[...]          # (Cin, Lp)
    mask = mask_ref[...]    # (1,  Lp)

    def conv3x3(a, w_ref_loc):
        # a: (Cin, Lp) with zero halo; 9 taps = 9 lane-rolls + 9 small matmuls.
        cout = w_ref_loc.shape[1]
        acc = jnp.zeros((cout, Lp), jnp.float32)
        for ky in range(3):
            for kx in range(3):
                off = (ky - 1) * Wp + (kx - 1)      # flat spatial offset of tap
                if off == 0:
                    tap = a
                else:
                    # want tap[:, p] == a[:, p + off] for interior p
                    tap = pltpu.roll(a, shift=(-off) % Lp, axis=1)
                acc = acc + jnp.dot(w_ref_loc[ky * 3 + kx], tap,
                                    preferred_element_type=jnp.float32)
        return acc                                   # (Cout, Lp)

    def bn_relu(a, g_ref, b_ref):
        # Training-mode BatchNorm2d over (N,H,W) per channel (interior only),
        # biased variance, affine, ReLU.  Dense lane reductions per channel.
        mean = jnp.sum(a * mask, axis=1, keepdims=True) * inv_count   # (C,1)
        d = a - mean
        var = jnp.sum(d * d * mask, axis=1, keepdims=True) * inv_count
        y = jnp.maximum(d * lax.rsqrt(var + EPS) * g_ref[...] + b_ref[...], 0.0)
        return y * mask      # re-zero halo/tail: acts as zero padding for conv2

    h = bn_relu(conv3x3(x, w1_ref), g1_ref, b1_ref)
    out_ref[...] = bn_relu(conv3x3(h, w2_ref), g2_ref, b2_ref)


# ---------------------------------------------------------------------------
# Wrapper around the fused kernel (layout plumbing only).
# ---------------------------------------------------------------------------
def double_conv_fused(x_nhwc, params):
    """x_nhwc: (N, H, W, Cin) f32 -> (N, Cout, H, W) NCHW f32."""
    N, H, W, Cin = x_nhwc.shape
    Cmid = params["w1"].shape[-1]
    Cout = params["w2"].shape[-1]
    Hp, Wp = H + 2, W + 2
    L = N * Hp * Wp
    Lp = ((L + 127) // 128) * 128           # lane-align the flattened spatial axis

    # channel-major, spatially zero-padded, flattened, lane-padded: (Cin, Lp)
    xpad = jnp.pad(x_nhwc, ((0, 0), (1, 1), (1, 1), (0, 0)))
    xcm = jnp.transpose(xpad, (3, 0, 1, 2)).reshape(Cin, L)
    xcm = jnp.pad(xcm, ((0, 0), (0, Lp - L)))

    # interior mask in the same flattened layout
    mask = jnp.zeros((N, Hp, Wp), jnp.float32)
    mask = mask.at[:, 1:H + 1, 1:W + 1].set(1.0)
    mask = jnp.pad(mask.reshape(1, L), ((0, 0), (0, Lp - L)))

    # per-tap transposed weights: w9[ky*3+kx, o, c] = w_hwio[ky, kx, c, o]
    w1 = jnp.transpose(params["w1"], (0, 1, 3, 2)).reshape(9, Cmid, Cin)
    w2 = jnp.transpose(params["w2"], (0, 1, 3, 2)).reshape(9, Cout, Cmid)
    g1 = params["g1"].reshape(Cmid, 1)
    b1 = params["b1"].reshape(Cmid, 1)
    g2 = params["g2"].reshape(Cout, 1)
    b2 = params["b2"].reshape(Cout, 1)

    kernel = functools.partial(_fused_double_conv_kernel, N=N, H=H, W=W)
    out_cm = pl.pallas_call(
        kernel,
        out_shape=jax.ShapeDtypeStruct((Cout, Lp), jnp.float32),
        grid=(1,),
        in_specs=[
            pl.BlockSpec((Cin, Lp), lambda i: (0, 0)),
            pl.BlockSpec((1, Lp), lambda i: (0, 0)),
            pl.BlockSpec((9, Cmid, Cin), lambda i: (0, 0, 0)),
            pl.BlockSpec((Cmid, 1), lambda i: (0, 0)),
            pl.BlockSpec((Cmid, 1), lambda i: (0, 0)),
            pl.BlockSpec((9, Cout, Cmid), lambda i: (0, 0, 0)),
            pl.BlockSpec((Cout, 1), lambda i: (0, 0)),
            pl.BlockSpec((Cout, 1), lambda i: (0, 0)),
        ],
        out_specs=pl.BlockSpec((Cout, Lp), lambda i: (0, 0)),
    )(xcm, mask, w1, g1, b1, w2, g2, b2)

    out = out_cm[:, :L].reshape(Cout, N, Hp, Wp)[:, :, 1:H + 1, 1:W + 1]
    return jnp.transpose(out, (1, 0, 2, 3))          # -> NCHW


# ---------------------------------------------------------------------------
# XLA glue (upsample / pad / concat / layout) — matches Up.forward.
# ---------------------------------------------------------------------------
def bilinear_upsample_x2_align_corners(x):
    """x: (N, H, W, C) -> (N, 2H, 2W, C); Upsample(2, 'bilinear', align_corners=True)."""
    N, H, W, C = x.shape
    Ho, Wo = 2 * H, 2 * W

    def src(out_len, in_len):
        if out_len == 1 or in_len == 1:
            return jnp.zeros((out_len,), jnp.float32)
        return jnp.arange(out_len, dtype=jnp.float32) * (in_len - 1) / (out_len - 1)

    ys, xs = src(Ho, H), src(Wo, W)
    y0 = jnp.clip(jnp.floor(ys).astype(jnp.int32), 0, H - 1)
    y1 = jnp.clip(y0 + 1, 0, H - 1)
    wy = ys - y0.astype(jnp.float32)
    x0 = jnp.clip(jnp.floor(xs).astype(jnp.int32), 0, W - 1)
    x1 = jnp.clip(x0 + 1, 0, W - 1)
    wx = xs - x0.astype(jnp.float32)

    rows = x[:, y0] * (1.0 - wy)[None, :, None, None] + x[:, y1] * wy[None, :, None, None]
    out = (rows[:, :, x0] * (1.0 - wx)[None, None, :, None]
           + rows[:, :, x1] * wx[None, None, :, None])
    return out


def up_forward(params, x1_nchw, x2_nchw):
    """Up.forward(x1, x2) with NCHW inputs/outputs (PyTorch convention)."""
    x1 = jnp.transpose(x1_nchw, (0, 2, 3, 1))   # -> NHWC
    x2 = jnp.transpose(x2_nchw, (0, 2, 3, 1))

    x1 = bilinear_upsample_x2_align_corners(x1)
    diffY = x2.shape[1] - x1.shape[1]
    diffX = x2.shape[2] - x1.shape[2]
    x1 = jnp.pad(x1, ((0, 0),
                      (diffY // 2, diffY - diffY // 2),
                      (diffX // 2, diffX - diffX // 2),
                      (0, 0)))
    x = jnp.concatenate([x2, x1], axis=-1)      # torch.cat([x2, x1], dim=1)
    return double_conv_fused(x, params)          # NCHW out


# ---------------------------------------------------------------------------
# Pure-JAX reference (correctness check only).
# ---------------------------------------------------------------------------
def _ref_conv3x3(x, w):
    return lax.conv_general_dilated(
        x, w, window_strides=(1, 1), padding="SAME",
        dimension_numbers=("NHWC", "HWIO", "NHWC"))


def _ref_bn_relu(x, gamma, beta):
    mean = jnp.mean(x, axis=(0, 1, 2), keepdims=True)
    var = jnp.mean((x - mean) ** 2, axis=(0, 1, 2), keepdims=True)
    y = (x - mean) * lax.rsqrt(var + EPS) * gamma + beta
    return jnp.maximum(y, 0.0)


def ref_forward(params, x1_nchw, x2_nchw):
    x1 = jnp.transpose(x1_nchw, (0, 2, 3, 1))
    x2 = jnp.transpose(x2_nchw, (0, 2, 3, 1))
    x1 = bilinear_upsample_x2_align_corners(x1)
    diffY = x2.shape[1] - x1.shape[1]
    diffX = x2.shape[2] - x1.shape[2]
    x1 = jnp.pad(x1, ((0, 0),
                      (diffY // 2, diffY - diffY // 2),
                      (diffX // 2, diffX - diffX // 2),
                      (0, 0)))
    x = jnp.concatenate([x2, x1], axis=-1)
    h = _ref_bn_relu(_ref_conv3x3(x, params["w1"]), params["g1"], params["b1"])
    h = _ref_bn_relu(_ref_conv3x3(h, params["w2"]), params["g2"], params["b2"])
    return jnp.transpose(h, (0, 3, 1, 2))


# ---------------------------------------------------------------------------
if __name__ == "__main__":
    key = jax.random.PRNGKey(0)
    k1, k2, kw1, kw2 = jax.random.split(key, 4)

    in_channels, out_channels = 8, 4          # Up(8, 4, bilinear=True)
    mid_channels = in_channels // 2           # DoubleConv mid = in_channels // 2
    N = 2
    c1 = in_channels // 2                     # channels of x1 (decoder feature)
    c2 = in_channels - c1                     # channels of x2 (skip connection)

    # x1 is the low-resolution decoder feature; x2 is the skip connection.
    x1 = jax.random.normal(k1, (N, c1, 8, 8), jnp.float32)     # NCHW
    x2 = jax.random.normal(k2, (N, c2, 16, 16), jnp.float32)   # NCHW

    params = {
        # conv weights stored as (kh, kw, Cin, Cout) == HWIO
        "w1": 0.1 * jax.random.normal(kw1, (3, 3, in_channels, mid_channels), jnp.float32),
        "g1": jnp.ones((mid_channels,), jnp.float32),
        "b1": jnp.zeros((mid_channels,), jnp.float32),
        "w2": 0.1 * jax.random.normal(kw2, (3, 3, mid_channels, out_channels), jnp.float32),
        "g2": jnp.ones((out_channels,), jnp.float32),
        "b2": jnp.zeros((out_channels,), jnp.float32),
    }

    up_fn = jax.jit(up_forward)
    out = jax.block_until_ready(up_fn(params, x1, x2))
    ref = ref_forward(params, x1, x2)

    assert out.shape == (N, out_channels, 16, 16), out.shape
    assert jnp.allclose(out, ref, atol=1e-4, rtol=1e-4), float(jnp.max(jnp.abs(out - ref)))
    print("KERNEL_OK")
</pallas_src>

<mosaic_0001>
module attributes {stable_mosaic.version = 11 : i64} {
  func.func @_fused_double_conv_kernel(%arg0: i32, %arg1: memref<8x768xf32, #tpu.memory_space<vmem>>, %arg2: memref<1x768xf32, #tpu.memory_space<vmem>>, %arg3: memref<9x4x8xf32, #tpu.memory_space<vmem>>, %arg4: memref<4x1xf32, #tpu.memory_space<vmem>>, %arg5: memref<4x1xf32, #tpu.memory_space<vmem>>, %arg6: memref<9x4x4xf32, #tpu.memory_space<vmem>>, %arg7: memref<4x1xf32, #tpu.memory_space<vmem>>, %arg8: memref<4x1xf32, #tpu.memory_space<vmem>>, %arg9: memref<4x768xf32, #tpu.memory_space<vmem>>) attributes {dimension_semantics = [#tpu.dimension_semantics<arbitrary>], iteration_bounds = array<i64: 1>, scalar_prefetch = 0 : i64, scratch_operands = 0 : i64, tpu.core_type = #tpu.core_type<tc>, window_params = [{pipeline_mode = #tpu.pipeline_mode<synchronous>, transform_indices = @transform_0, window_bounds = array<i64: 8, 768>}, {pipeline_mode = #tpu.pipeline_mode<synchronous>, transform_indices = @transform_1, window_bounds = array<i64: 1, 768>}, {pipeline_mode = #tpu.pipeline_mode<synchronous>, transform_indices = @transform_2, window_bounds = array<i64: 9, 4, 8>}, {pipeline_mode = #tpu.pipeline_mode<synchronous>, transform_indices = @transform_3, window_bounds = array<i64: 4, 1>}, {pipeline_mode = #tpu.pipeline_mode<synchronous>, transform_indices = @transform_4, window_bounds = array<i64: 4, 1>}, {pipeline_mode = #tpu.pipeline_mode<synchronous>, transform_indices = @transform_5, window_bounds = array<i64: 9, 4, 4>}, {pipeline_mode = #tpu.pipeline_mode<synchronous>, transform_indices = @transform_6, window_bounds = array<i64: 4, 1>}, {pipeline_mode = #tpu.pipeline_mode<synchronous>, transform_indices = @transform_7, window_bounds = array<i64: 4, 1>}, {pipeline_mode = #tpu.pipeline_mode<synchronous>, transform_indices = @transform_8, window_bounds = array<i64: 4, 768>}]} {
    %c0 = arith.constant 0 : index
    %c0_0 = arith.constant 0 : index
    %0 = vector.load %arg1[%c0, %c0_0] : memref<8x768xf32, #tpu.memory_space<vmem>>, vector<8x768xf32>
    %c0_1 = arith.constant 0 : index
    %c0_2 = arith.constant 0 : index
    %1 = vector.load %arg2[%c0_1, %c0_2] : memref<1x768xf32, #tpu.memory_space<vmem>>, vector<1x768xf32>
    %cst = arith.constant 0.000000e+00 : f32
    %2 = vector.broadcast %cst : f32 to vector<4x768xf32>
    %c19_i32 = arith.constant 19 : i32
    %3 = tpu.dynamic_rotate %0 by %c19_i32 dim 1 : vector<8x768xf32>, i32 -> vector<8x768xf32>
    %c0_3 = arith.constant 0 : index
    %c0_4 = arith.constant 0 : index
    %c0_5 = arith.constant 0 : index
    %4 = vector.load %arg3[%c0_3, %c0_4, %c0_5] : memref<9x4x8xf32, #tpu.memory_space<vmem>>, vector<1x4x8xf32>
    %5 = vector.shape_cast %4 : vector<1x4x8xf32> to vector<4x8xf32>
    %cst_6 = arith.constant dense<0.000000e+00> : vector<4x768xf32>
    %6 = tpu.matmul %5, %3, %cst_6 {dimension_numbers = #tpu.dot_dimension_numbers<[1], [0], [0], [1], [0, 0, 1, 1], [], []>} : vector<4x8xf32>, vector<8x768xf32>, vector<4x768xf32> -> vector<4x768xf32>
    %7 = arith.addf %2, %6 : vector<4x768xf32>
    %c18_i32 = arith.constant 18 : i32
    %8 = tpu.dynamic_rotate %0 by %c18_i32 dim 1 : vector<8x768xf32>, i32 -> vector<8x768xf32>
    %c1 = arith.constant 1 : index
    %c0_7 = arith.constant 0 : index
    %c0_8 = arith.constant 0 : index
    %9 = vector.load %arg3[%c1, %c0_7, %c0_8] : memref<9x4x8xf32, #tpu.memory_space<vmem>>, vector<1x4x8xf32>
    %10 = vector.shape_cast %9 : vector<1x4x8xf32> to vector<4x8xf32>
    %cst_9 = arith.constant dense<0.000000e+00> : vector<4x768xf32>
    %11 = tpu.matmul %10, %8, %cst_9 {dimension_numbers = #tpu.dot_dimension_numbers<[1], [0], [0], [1], [0, 0, 1, 1], [], []>} : vector<4x8xf32>, vector<8x768xf32>, vector<4x768xf32> -> vector<4x768xf32>
    %12 = arith.addf %7, %11 : vector<4x768xf32>
    %c17_i32 = arith.constant 17 : i32
    %13 = tpu.dynamic_rotate %0 by %c17_i32 dim 1 : vector<8x768xf32>, i32 -> vector<8x768xf32>
    %c2 = arith.constant 2 : index
    %c0_10 = arith.constant 0 : index
    %c0_11 = arith.constant 0 : index
    %14 = vector.load %arg3[%c2, %c0_10, %c0_11] : memref<9x4x8xf32, #tpu.memory_space<vmem>>, vector<1x4x8xf32>
    %15 = vector.shape_cast %14 : vector<1x4x8xf32> to vector<4x8xf32>
    %cst_12 = arith.constant dense<0.000000e+00> : vector<4x768xf32>
    %16 = tpu.matmul %15, %13, %cst_12 {dimension_numbers = #tpu.dot_dimension_numbers<[1], [0], [0], [1], [0, 0, 1, 1], [], []>} : vector<4x8xf32>, vector<8x768xf32>, vector<4x768xf32> -> vector<4x768xf32>
    %17 = arith.addf %12, %16 : vector<4x768xf32>
    %c1_i32 = arith.constant 1 : i32
    %18 = tpu.dynamic_rotate %0 by %c1_i32 dim 1 : vector<8x768xf32>, i32 -> vector<8x768xf32>
    %c3 = arith.constant 3 : index
    %c0_13 = arith.constant 0 : index
    %c0_14 = arith.constant 0 : index
    %19 = vector.load %arg3[%c3, %c0_13, %c0_14] : memref<9x4x8xf32, #tpu.memory_space<vmem>>, vector<1x4x8xf32>
    %20 = vector.shape_cast %19 : vector<1x4x8xf32> to vector<4x8xf32>
    %cst_15 = arith.constant dense<0.000000e+00> : vector<4x768xf32>
    %21 = tpu.matmul %20, %18, %cst_15 {dimension_numbers = #tpu.dot_dimension_numbers<[1], [0], [0], [1], [0, 0, 1, 1], [], []>} : vector<4x8xf32>, vector<8x768xf32>, vector<4x768xf32> -> vector<4x768xf32>
    %22 = arith.addf %17, %21 : vector<4x768xf32>
    %c4 = arith.constant 4 : index
    %c0_16 = arith.constant 0 : index
    %c0_17 = arith.constant 0 : index
    %23 = vector.load %arg3[%c4, %c0_16, %c0_17] : memref<9x4x8xf32, #tpu.memory_space<vmem>>, vector<1x4x8xf32>
    %24 = vector.shape_cast %23 : vector<1x4x8xf32> to vector<4x8xf32>
    %cst_18 = arith.constant dense<0.000000e+00> : vector<4x768xf32>
    %25 = tpu.matmul %24, %0, %cst_18 {dimension_numbers = #tpu.dot_dimension_numbers<[1], [0], [0], [1], [0, 0, 1, 1], [], []>} : vector<4x8xf32>, vector<8x768xf32>, vector<4x768xf32> -> vector<4x768xf32>
    %26 = arith.addf %22, %25 : vector<4x768xf32>
    %c767_i32 = arith.constant 767 : i32
    %27 = tpu.dynamic_rotate %0 by %c767_i32 dim 1 : vector<8x768xf32>, i32 -> vector<8x768xf32>
    %c5 = arith.constant 5 : index
    %c0_19 = arith.constant 0 : index
    %c0_20 = arith.constant 0 : index
    %28 = vector.load %arg3[%c5, %c0_19, %c0_20] : memref<9x4x8xf32, #tpu.memory_space<vmem>>, vector<1x4x8xf32>
    %29 = vector.shape_cast %28 : vector<1x4x8xf32> to vector<4x8xf32>
    %cst_21 = arith.constant dense<0.000000e+00> : vector<4x768xf32>
    %30 = tpu.matmul %29, %27, %cst_21 {dimension_numbers = #tpu.dot_dimension_numbers<[1], [0], [0], [1], [0, 0, 1, 1], [], []>} : vector<4x8xf32>, vector<8x768xf32>, vector<4x768xf32> -> vector<4x768xf32>
    %31 = arith.addf %26, %30 : vector<4x768xf32>
    %c751_i32 = arith.constant 751 : i32
    %32 = tpu.dynamic_rotate %0 by %c751_i32 dim 1 : vector<8x768xf32>, i32 -> vector<8x768xf32>
    %c6 = arith.constant 6 : index
    %c0_22 = arith.constant 0 : index
    %c0_23 = arith.constant 0 : index
    %33 = vector.load %arg3[%c6, %c0_22, %c0_23] : memref<9x4x8xf32, #tpu.memory_space<vmem>>, vector<1x4x8xf32>
    %34 = vector.shape_cast %33 : vector<1x4x8xf32> to vector<4x8xf32>
    %cst_24 = arith.constant dense<0.000000e+00> : vector<4x768xf32>
    %35 = tpu.matmul %34, %32, %cst_24 {dimension_numbers = #tpu.dot_dimension_numbers<[1], [0], [0], [1], [0, 0, 1, 1], [], []>} : vector<4x8xf32>, vector<8x768xf32>, vector<4x768xf32> -> vector<4x768xf32>
    %36 = arith.addf %31, %35 : vector<4x768xf32>
    %c750_i32 = arith.constant 750 : i32
    %37 = tpu.dynamic_rotate %0 by %c750_i32 dim 1 : vector<8x768xf32>, i32 -> vector<8x768xf32>
    %c7 = arith.constant 7 : index
    %c0_25 = arith.constant 0 : index
    %c0_26 = arith.constant 0 : index
    %38 = vector.load %arg3[%c7, %c0_25, %c0_26] : memref<9x4x8xf32, #tpu.memory_space<vmem>>, vector<1x4x8xf32>
    %39 = vector.shape_cast %38 : vector<1x4x8xf32> to vector<4x8xf32>
    %cst_27 = arith.constant dense<0.000000e+00> : vector<4x768xf32>
    %40 = tpu.matmul %39, %37, %cst_27 {dimension_numbers = #tpu.dot_dimension_numbers<[1], [0], [0], [1], [0, 0, 1, 1], [], []>} : vector<4x8xf32>, vector<8x768xf32>, vector<4x768xf32> -> vector<4x768xf32>
    %41 = arith.addf %36, %40 : vector<4x768xf32>
    %c749_i32 = arith.constant 749 : i32
    %42 = tpu.dynamic_rotate %0 by %c749_i32 dim 1 : vector<8x768xf32>, i32 -> vector<8x768xf32>
    %c8 = arith.constant 8 : index
    %c0_28 = arith.constant 0 : index
    %c0_29 = arith.constant 0 : index
    %43 = vector.load %arg3[%c8, %c0_28, %c0_29] : memref<9x4x8xf32, #tpu.memory_space<vmem>>, vector<1x4x8xf32>
    %44 = vector.shape_cast %43 : vector<1x4x8xf32> to vector<4x8xf32>
    %cst_30 = arith.constant dense<0.000000e+00> : vector<4x768xf32>
    %45 = tpu.matmul %44, %42, %cst_30 {dimension_numbers = #tpu.dot_dimension_numbers<[1], [0], [0], [1], [0, 0, 1, 1], [], []>} : vector<4x8xf32>, vector<8x768xf32>, vector<4x768xf32> -> vector<4x768xf32>
    %46 = arith.addf %41, %45 : vector<4x768xf32>
    %47 = vector.broadcast %1 : vector<1x768xf32> to vector<4x768xf32>
    %48 = arith.mulf %46, %47 : vector<4x768xf32>
    %cst_31 = arith.constant dense<0.000000e+00> : vector<4xf32>
    %49 = vector.multi_reduction <add>, %48, %cst_31 [1] : vector<4x768xf32> to vector<4xf32>
    %50 = vector.shape_cast %49 : vector<4xf32> to vector<4x1xf32>
    %cst_32 = arith.constant 0.001953125 : f32
    %51 = vector.broadcast %cst_32 : f32 to vector<4x1xf32>
    %52 = arith.mulf %50, %51 : vector<4x1xf32>
    %53 = vector.broadcast %52 : vector<4x1xf32> to vector<4x768xf32>
    %54 = arith.subf %46, %53 : vector<4x768xf32>
    %55 = arith.mulf %54, %54 : vector<4x768xf32>
    %56 = vector.broadcast %1 : vector<1x768xf32> to vector<4x768xf32>
    %57 = arith.mulf %55, %56 : vector<4x768xf32>
    %cst_33 = arith.constant dense<0.000000e+00> : vector<4xf32>
    %58 = vector.multi_reduction <add>, %57, %cst_33 [1] : vector<4x768xf32> to vector<4xf32>
    %59 = vector.shape_cast %58 : vector<4xf32> to vector<4x1xf32>
    %cst_34 = arith.constant 0.001953125 : f32
    %60 = vector.broadcast %cst_34 : f32 to vector<4x1xf32>
    %61 = arith.mulf %59, %60 : vector<4x1xf32>
    %cst_35 = arith.constant 9.99999974E-6 : f32
    %62 = vector.broadcast %cst_35 : f32 to vector<4x1xf32>
    %63 = arith.addf %61, %62 : vector<4x1xf32>
    %64 = math.rsqrt %63 : vector<4x1xf32>
    %65 = vector.broadcast %64 : vector<4x1xf32> to vector<4x768xf32>
    %66 = arith.mulf %54, %65 : vector<4x768xf32>
    %c0_36 = arith.constant 0 : index
    %c0_37 = arith.constant 0 : index
    %67 = vector.load %arg4[%c0_36, %c0_37] : memref<4x1xf32, #tpu.memory_space<vmem>>, vector<4x1xf32>
    %68 = vector.broadcast %67 : vector<4x1xf32> to vector<4x768xf32>
    %69 = arith.mulf %66, %68 : vector<4x768xf32>
    %c0_38 = arith.constant 0 : index
    %c0_39 = arith.constant 0 : index
    %70 = vector.load %arg5[%c0_38, %c0_39] : memref<4x1xf32, #tpu.memory_space<vmem>>, vector<4x1xf32>
    %71 = vector.broadcast %70 : vector<4x1xf32> to vector<4x768xf32>
    %72 = arith.addf %69, %71 : vector<4x768xf32>
    %cst_40 = arith.constant 0.000000e+00 : f32
    %73 = vector.broadcast %cst_40 : f32 to vector<4x768xf32>
    %74 = arith.maximumf %72, %73 : vector<4x768xf32>
    %75 = vector.broadcast %1 : vector<1x768xf32> to vector<4x768xf32>
    %76 = arith.mulf %74, %75 : vector<4x768xf32>
    %cst_41 = arith.constant 0.000000e+00 : f32
    %77 = vector.broadcast %cst_41 : f32 to vector<4x768xf32>
    %c19_i32_42 = arith.constant 19 : i32
    %78 = tpu.dynamic_rotate %76 by %c19_i32_42 dim 1 : vector<4x768xf32>, i32 -> vector<4x768xf32>
    %c0_43 = arith.constant 0 : index
    %c0_44 = arith.constant 0 : index
    %c0_45 = arith.constant 0 : index
    %79 = vector.load %arg6[%c0_43, %c0_44, %c0_45] : memref<9x4x4xf32, #tpu.memory_space<vmem>>, vector<1x4x4xf32>
    %80 = vector.shape_cast %79 : vector<1x4x4xf32> to vector<4x4xf32>
    %cst_46 = arith.constant dense<0.000000e+00> : vector<4x768xf32>
    %81 = tpu.matmul %80, %78, %cst_46 {dimension_numbers = #tpu.dot_dimension_numbers<[1], [0], [0], [1], [0, 0, 1, 1], [], []>} : vector<4x4xf32>, vector<4x768xf32>, vector<4x768xf32> -> vector<4x768xf32>
    %82 = arith.addf %77, %81 : vector<4x768xf32>
    %c18_i32_47 = arith.constant 18 : i32
    %83 = tpu.dynamic_rotate %76 by %c18_i32_47 dim 1 : vector<4x768xf32>, i32 -> vector<4x768xf32>
    %c1_48 = arith.constant 1 : index
    %c0_49 = arith.constant 0 : index
    %c0_50 = arith.constant 0 : index
    %84 = vector.load %arg6[%c1_48, %c0_49, %c0_50] : memref<9x4x4xf32, #tpu.memory_space<vmem>>, vector<1x4x4xf32>
    %85 = vector.shape_cast %84 : vector<1x4x4xf32> to vector<4x4xf32>
    %cst_51 = arith.constant dense<0.000000e+00> : vector<4x768xf32>
    %86 = tpu.matmul %85, %83, %cst_51 {dimension_numbers = #tpu.dot_dimension_numbers<[1], [0], [0], [1], [0, 0, 1, 1], [], []>} : vector<4x4xf32>, vector<4x768xf32>, vector<4x768xf32> -> vector<4x768xf32>
    %87 = arith.addf %82, %86 : vector<4x768xf32>
    %c17_i32_52 = arith.constant 17 : i32
    %88 = tpu.dynamic_rotate %76 by %c17_i32_52 dim 1 : vector<4x768xf32>, i32 -> vector<4x768xf32>
    %c2_53 = arith.constant 2 : index
    %c0_54 = arith.constant 0 : index
    %c0_55 = arith.constant 0 : index
    %89 = vector.load %arg6[%c2_53, %c0_54, %c0_55] : memref<9x4x4xf32, #tpu.memory_space<vmem>>, vector<1x4x4xf32>
    %90 = vector.shape_cast %89 : vector<1x4x4xf32> to vector<4x4xf32>
    %cst_56 = arith.constant dense<0.000000e+00> : vector<4x768xf32>
    %91 = tpu.matmul %90, %88, %cst_56 {dimension_numbers = #tpu.dot_dimension_numbers<[1], [0], [0], [1], [0, 0, 1, 1], [], []>} : vector<4x4xf32>, vector<4x768xf32>, vector<4x768xf32> -> vector<4x768xf32>
    %92 = arith.addf %87, %91 : vector<4x768xf32>
    %c1_i32_57 = arith.constant 1 : i32
    %93 = tpu.dynamic_rotate %76 by %c1_i32_57 dim 1 : vector<4x768xf32>, i32 -> vector<4x768xf32>
    %c3_58 = arith.constant 3 : index
    %c0_59 = arith.constant 0 : index
    %c0_60 = arith.constant 0 : index
    %94 = vector.load %arg6[%c3_58, %c0_59, %c0_60] : memref<9x4x4xf32, #tpu.memory_space<vmem>>, vector<1x4x4xf32>
    %95 = vector.shape_cast %94 : vector<1x4x4xf32> to vector<4x4xf32>
    %cst_61 = arith.constant dense<0.000000e+00> : vector<4x768xf32>
    %96 = tpu.matmul %95, %93, %cst_61 {dimension_numbers = #tpu.dot_dimension_numbers<[1], [0], [0], [1], [0, 0, 1, 1], [], []>} : vector<4x4xf32>, vector<4x768xf32>, vector<4x768xf32> -> vector<4x768xf32>
    %97 = arith.addf %92, %96 : vector<4x768xf32>
    %c4_62 = arith.constant 4 : index
    %c0_63 = arith.constant 0 : index
    %c0_64 = arith.constant 0 : index
    %98 = vector.load %arg6[%c4_62, %c0_63, %c0_64] : memref<9x4x4xf32, #tpu.memory_space<vmem>>, vector<1x4x4xf32>
    %99 = vector.shape_cast %98 : vector<1x4x4xf32> to vector<4x4xf32>
    %cst_65 = arith.constant dense<0.000000e+00> : vector<4x768xf32>
    %100 = tpu.matmul %99, %76, %cst_65 {dimension_numbers = #tpu.dot_dimension_numbers<[1], [0], [0], [1], [0, 0, 1, 1], [], []>} : vector<4x4xf32>, vector<4x768xf32>, vector<4x768xf32> -> vector<4x768xf32>
    %101 = arith.addf %97, %100 : vector<4x768xf32>
    %c767_i32_66 = arith.constant 767 : i32
    %102 = tpu.dynamic_rotate %76 by %c767_i32_66 dim 1 : vector<4x768xf32>, i32 -> vector<4x768xf32>
    %c5_67 = arith.constant 5 : index
    %c0_68 = arith.constant 0 : index
    %c0_69 = arith.constant 0 : index
    %103 = vector.load %arg6[%c5_67, %c0_68, %c0_69] : memref<9x4x4xf32, #tpu.memory_space<vmem>>, vector<1x4x4xf32>
    %104 = vector.shape_cast %103 : vector<1x4x4xf32> to vector<4x4xf32>
    %cst_70 = arith.constant dense<0.000000e+00> : vector<4x768xf32>
    %105 = tpu.matmul %104, %102, %cst_70 {dimension_numbers = #tpu.dot_dimension_numbers<[1], [0], [0], [1], [0, 0, 1, 1], [], []>} : vector<4x4xf32>, vector<4x768xf32>, vector<4x768xf32> -> vector<4x768xf32>
    %106 = arith.addf %101, %105 : vector<4x768xf32>
    %c751_i32_71 = arith.constant 751 : i32
    %107 = tpu.dynamic_rotate %76 by %c751_i32_71 dim 1 : vector<4x768xf32>, i32 -> vector<4x768xf32>
    %c6_72 = arith.constant 6 : index
    %c0_73 = arith.constant 0 : index
    %c0_74 = arith.constant 0 : index
    %108 = vector.load %arg6[%c6_72, %c0_73, %c0_74] : memref<9x4x4xf32, #tpu.memory_space<vmem>>, vector<1x4x4xf32>
    %109 = vector.shape_cast %108 : vector<1x4x4xf32> to vector<4x4xf32>
    %cst_75 = arith.constant dense<0.000000e+00> : vector<4x768xf32>
    %110 = tpu.matmul %109, %107, %cst_75 {dimension_numbers = #tpu.dot_dimension_numbers<[1], [0], [0], [1], [0, 0, 1, 1], [], []>} : vector<4x4xf32>, vector<4x768xf32>, vector<4x768xf32> -> vector<4x768xf32>
    %111 = arith.addf %106, %110 : vector<4x768xf32>
    %c750_i32_76 = arith.constant 750 : i32
    %112 = tpu.dynamic_rotate %76 by %c750_i32_76 dim 1 : vector<4x768xf32>, i32 -> vector<4x768xf32>
    %c7_77 = arith.constant 7 : index
    %c0_78 = arith.constant 0 : index
    %c0_79 = arith.constant 0 : index
    %113 = vector.load %arg6[%c7_77, %c0_78, %c0_79] : memref<9x4x4xf32, #tpu.memory_space<vmem>>, vector<1x4x4xf32>
    %114 = vector.shape_cast %113 : vector<1x4x4xf32> to vector<4x4xf32>
    %cst_80 = arith.constant dense<0.000000e+00> : vector<4x768xf32>
    %115 = tpu.matmul %114, %112, %cst_80 {dimension_numbers = #tpu.dot_dimension_numbers<[1], [0], [0], [1], [0, 0, 1, 1], [], []>} : vector<4x4xf32>, vector<4x768xf32>, vector<4x768xf32> -> vector<4x768xf32>
    %116 = arith.addf %111, %115 : vector<4x768xf32>
    %c749_i32_81 = arith.constant 749 : i32
    %117 = tpu.dynamic_rotate %76 by %c749_i32_81 dim 1 : vector<4x768xf32>, i32 -> vector<4x768xf32>
    %c8_82 = arith.constant 8 : index
    %c0_83 = arith.constant 0 : index
    %c0_84 = arith.constant 0 : index
    %118 = vector.load %arg6[%c8_82, %c0_83, %c0_84] : memref<9x4x4xf32, #tpu.memory_space<vmem>>, vector<1x4x4xf32>
    %119 = vector.shape_cast %118 : vector<1x4x4xf32> to vector<4x4xf32>
    %cst_85 = arith.constant dense<0.000000e+00> : vector<4x768xf32>
    %120 = tpu.matmul %119, %117, %cst_85 {dimension_numbers = #tpu.dot_dimension_numbers<[1], [0], [0], [1], [0, 0, 1, 1], [], []>} : vector<4x4xf32>, vector<4x768xf32>, vector<4x768xf32> -> vector<4x768xf32>
    %121 = arith.addf %116, %120 : vector<4x768xf32>
    %122 = vector.broadcast %1 : vector<1x768xf32> to vector<4x768xf32>
    %123 = arith.mulf %121, %122 : vector<4x768xf32>
    %cst_86 = arith.constant dense<0.000000e+00> : vector<4xf32>
    %124 = vector.multi_reduction <add>, %123, %cst_86 [1] : vector<4x768xf32> to vector<4xf32>
    %125 = vector.shape_cast %124 : vector<4xf32> to vector<4x1xf32>
    %cst_87 = arith.constant 0.001953125 : f32
    %126 = vector.broadcast %cst_87 : f32 to vector<4x1xf32>
    %127 = arith.mulf %125, %126 : vector<4x1xf32>
    %128 = vector.broadcast %127 : vector<4x1xf32> to vector<4x768xf32>
    %129 = arith.subf %121, %128 : vector<4x768xf32>
    %130 = arith.mulf %129, %129 : vector<4x768xf32>
    %131 = vector.broadcast %1 : vector<1x768xf32> to vector<4x768xf32>
    %132 = arith.mulf %130, %131 : vector<4x768xf32>
    %cst_88 = arith.constant dense<0.000000e+00> : vector<4xf32>
    %133 = vector.multi_reduction <add>, %132, %cst_88 [1] : vector<4x768xf32> to vector<4xf32>
    %134 = vector.shape_cast %133 : vector<4xf32> to vector<4x1xf32>
    %cst_89 = arith.constant 0.001953125 : f32
    %135 = vector.broadcast %cst_89 : f32 to vector<4x1xf32>
    %136 = arith.mulf %134, %135 : vector<4x1xf32>
    %cst_90 = arith.constant 9.99999974E-6 : f32
    %137 = vector.broadcast %cst_90 : f32 to vector<4x1xf32>
    %138 = arith.addf %136, %137 : vector<4x1xf32>
    %139 = math.rsqrt %138 : vector<4x1xf32>
    %140 = vector.broadcast %139 : vector<4x1xf32> to vector<4x768xf32>
    %141 = arith.mulf %129, %140 : vector<4x768xf32>
    %c0_91 = arith.constant 0 : index
    %c0_92 = arith.constant 0 : index
    %142 = vector.load %arg7[%c0_91, %c0_92] : memref<4x1xf32, #tpu.memory_space<vmem>>, vector<4x1xf32>
    %143 = vector.broadcast %142 : vector<4x1xf32> to vector<4x768xf32>
    %144 = arith.mulf %141, %143 : vector<4x768xf32>
    %c0_93 = arith.constant 0 : index
    %c0_94 = arith.constant 0 : index
    %145 = vector.load %arg8[%c0_93, %c0_94] : memref<4x1xf32, #tpu.memory_space<vmem>>, vector<4x1xf32>
    %146 = vector.broadcast %145 : vector<4x1xf32> to vector<4x768xf32>
    %147 = arith.addf %144, %146 : vector<4x768xf32>
    %cst_95 = arith.constant 0.000000e+00 : f32
    %148 = vector.broadcast %cst_95 : f32 to vector<4x768xf32>
    %149 = arith.maximumf %147, %148 : vector<4x768xf32>
    %150 = vector.broadcast %1 : vector<1x768xf32> to vector<4x768xf32>
    %151 = arith.mulf %149, %150 : vector<4x768xf32>
    %c0_96 = arith.constant 0 : index
    %c0_97 = arith.constant 0 : index
    %152 = vector.load %arg9[%c0_96, %c0_97] : memref<4x768xf32, #tpu.memory_space<vmem>>, vector<4x768xf32>
    tpu.vector_store %arg9[%c0_96, %c0_97], %151 {strides = array<i32>} : memref<4x768xf32, #tpu.memory_space<vmem>>, vector<4x768xf32>,
    return
  }
  func.func @transform_0(%arg0: i32) -> (i32, i32) {
    %c0_i32 = arith.constant 0 : i32
    %c0_i32_0 = arith.constant 0 : i32
    %c0_i32_1 = arith.constant 0 : i32
    return %c0_i32, %c0_i32_0 : i32, i32
  }
  func.func @transform_1(%arg0: i32) -> (i32, i32) {
    %c0_i32 = arith.constant 0 : i32
    %c0_i32_0 = arith.constant 0 : i32
    %c0_i32_1 = arith.constant 0 : i32
    return %c0_i32, %c0_i32_0 : i32, i32
  }
  func.func @transform_2(%arg0: i32) -> (i32, i32, i32) {
    %c0_i32 = arith.constant 0 : i32
    %c0_i32_0 = arith.constant 0 : i32
    %c0_i32_1 = arith.constant 0 : i32
    %c0_i32_2 = arith.constant 0 : i32
    return %c0_i32, %c0_i32_0, %c0_i32_1 : i32, i32, i32
  }
  func.func @transform_3(%arg0: i32) -> (i32, i32) {
    %c0_i32 = arith.constant 0 : i32
    %c0_i32_0 = arith.constant 0 : i32
    %c0_i32_1 = arith.constant 0 : i32
    return %c0_i32, %c0_i32_0 : i32, i32
  }
  func.func @transform_4(%arg0: i32) -> (i32, i32) {
    %c0_i32 = arith.constant 0 : i32
    %c0_i32_0 = arith.constant 0 : i32
    %c0_i32_1 = arith.constant 0 : i32
    return %c0_i32, %c0_i32_0 : i32, i32
  }
  func.func @transform_5(%arg0: i32) -> (i32, i32, i32) {
    %c0_i32 = arith.constant 0 : i32
    %c0_i32_0 = arith.constant 0 : i32
    %c0_i32_1 = arith.constant 0 : i32
    %c0_i32_2 = arith.constant 0 : i32
    return %c0_i32, %c0_i32_0, %c0_i32_1 : i32, i32, i32
  }
  func.func @transform_6(%arg0: i32) -> (i32, i32) {
    %c0_i32 = arith.constant 0 : i32
    %c0_i32_0 = arith.constant 0 : i32
    %c0_i32_1 = arith.constant 0 : i32
    return %c0_i32, %c0_i32_0 : i32, i32
  }
  func.func @transform_7(%arg0: i32) -> (i32, i32) {
    %c0_i32 = arith.constant 0 : i32
    %c0_i32_0 = arith.constant 0 : i32
    %c0_i32_1 = arith.constant 0 : i32
    return %c0_i32, %c0_i32_0 : i32, i32
  }
  func.func @transform_8(%arg0: i32) -> (i32, i32) {
    %c0_i32 = arith.constant 0 : i32
    %c0_i32_0 = arith.constant 0 : i32
    %c0_i32_1 = arith.constant 0 : i32
    return %c0_i32, %c0_i32_0 : i32, i32
  }
}

</mosaic_0001>

<llo_original>
// kernel: up_forward.1
$region0: #{up_forward.1}
  #allocation0 [shape = 'u32[]', space=smem, size = 0x4, offset = 0x4, fixed_abs, tag = 'smem constant byte address 0x4 - core index']
  #allocation1 [shape = 'u32[144,128]{1,0:T(1,128)}', space=vmem, size = 0x12000, scoped, tag = 'internal scratch']
  %s0 = inlined_call_operand.vmem [shape: f32[8,768], index: 0, kind: input, shape index: {}]
  %s1 = inlined_call_operand.vmem [shape: f32[1,768], index: 1, kind: input, shape index: {}]
  %s2 = inlined_call_operand.vmem [shape: f32[9,4,8], index: 2, kind: input, shape index: {}]
  %s3 = inlined_call_operand.vmem [shape: f32[4,1], index: 3, kind: input, shape index: {}]
  %s4 = inlined_call_operand.vmem [shape: f32[4,1], index: 4, kind: input, shape index: {}]
  %s5 = inlined_call_operand.vmem [shape: f32[9,4,4], index: 5, kind: input, shape index: {}]
  %s6 = inlined_call_operand.vmem [shape: f32[4,1], index: 6, kind: input, shape index: {}]
  %s7 = inlined_call_operand.vmem [shape: f32[4,1], index: 7, kind: input, shape index: {}]
  %s8 = inlined_call_operand.vmem [shape: f32[4,768], index: 8, kind: output, shape index: {}]
  %s9 = sld [smem:[#allocation0]]
  $region42: #{up_forward.1} parent=0
    _
  %s11 = ssub.s32 1, %s9
  %s12 = scalar_select 0, %s11, %s9
  // Predicated region
  $region2: #{up_forward.1} parent=0 // pred_check
    _
  $region3: #{up_forward.1} parent=0 // pred_check_branch
    %14 = sbr.rel (0) target = $region5
  $region4: #{up_forward.1} parent=0 // pred_region
    _
  $region5: #{up_forward.1} parent=0 // pred_fallthru
    _
  // Predicated region
  $region6: #{up_forward.1} parent=0 // pred_check
    _
  $region7: #{up_forward.1} parent=0 // pred_check_branch
    %16 = sbr.rel (0) target = $region9
  $region8: #{up_forward.1} parent=0 // pred_region
    _
  $region9: #{up_forward.1} parent=0 // pred_fallthru
    _
  // Predicated region
  $region10: #{up_forward.1} parent=0 // pred_check
    _
  $region11: #{up_forward.1} parent=0 // pred_check_branch
    %18 = sbr.rel (0) target = $region13
  $region12: #{up_forward.1} parent=0 // pred_region
    _
  $region13: #{up_forward.1} parent=0 // pred_fallthru
    _
  // Predicated region
  $region14: #{up_forward.1} parent=0 // pred_check
    _
  $region15: #{up_forward.1} parent=0 // pred_check_branch
    %20 = sbr.rel (0) target = $region17
  $region16: #{up_forward.1} parent=0 // pred_region
    _
  $region17: #{up_forward.1} parent=0 // pred_fallthru
    _
  // Predicated region
  $region18: #{up_forward.1} parent=0 // pred_check
    _
  $region19: #{up_forward.1} parent=0 // pred_check_branch
    %22 = sbr.rel (0) target = $region21
  $region20: #{up_forward.1} parent=0 // pred_region
    _
  $region21: #{up_forward.1} parent=0 // pred_fallthru
    _
  // Predicated region
  $region22: #{up_forward.1} parent=0 // pred_check
    _
  $region23: #{up_forward.1} parent=0 // pred_check_branch
    %24 = sbr.rel (0) target = $region25
  $region24: #{up_forward.1} parent=0 // pred_region
    _
  $region25: #{up_forward.1} parent=0 // pred_fallthru
    _
  // Predicated region
  $region26: #{up_forward.1} parent=0 // pred_check
    _
  $region27: #{up_forward.1} parent=0 // pred_check_branch
    %26 = sbr.rel (0) target = $region29
  $region28: #{up_forward.1} parent=0 // pred_region
    _
  $region29: #{up_forward.1} parent=0 // pred_fallthru
    _
  // Predicated region
  $region30: #{up_forward.1} parent=0 // pred_check
    _
  $region31: #{up_forward.1} parent=0 // pred_check_branch
    %28 = sbr.rel (0) target = $region33
  $region32: #{up_forward.1} parent=0 // pred_region
    _
  $region33: #{up_forward.1} parent=0 // pred_fallthru
    _
  %v29 = vld [vmem:[%s0] sm:$0xff]
  %v30 = vld [vmem:[%s0 + $0x8] sm:$0xff]
  %v31 = vld [vmem:[%s0 + $0x10] sm:$0xff]
  %v32 = vld [vmem:[%s0 + $0x18] sm:$0xff]
  %v33 = vld [vmem:[%s0 + $0x20] sm:$0xff]
  %v34 = vld [vmem:[%s0 + $0x28] sm:$0xff]
  %v35 = vld [vmem:[%s1] sm:$0x3f]
  %36 = vrot.lane.b32.xlu0 %v29, 19
  %v37 = vpop.permute.xlu0 %36
  %38 = vrot.lane.b32.xlu0 %v30, 19
  %v39 = vpop.permute.xlu0 %38
  %40 = vrot.lane.b32.xlu0 %v31, 19
  %v41 = vpop.permute.xlu0 %40
  %42 = vrot.lane.b32.xlu0 %v32, 19
  %v43 = vpop.permute.xlu0 %42
  %44 = vrot.lane.b32.xlu0 %v33, 19
  %v45 = vpop.permute.xlu0 %44
  %46 = vrot.lane.b32.xlu0 %v34, 19
  %v47 = vpop.permute.xlu0 %46
  %v48 = vlaneseq
  %v49 = vand.u32 %v48, 127
  %vm50 = vcmp.lt.s32.totalorder %v49, 19
  %v51 = vsel %vm50, %v45, %v47
  %v52 = vsel %vm50, %v43, %v45
  %v53 = vsel %vm50, %v41, %v43
  %v54 = vsel %vm50, %v39, %v41
  %v55 = vsel %vm50, %v37, %v39
  %v56 = vsel %vm50, %v47, %v37
  %v57 = vld [vmem:[%s2] sm:$0xf]
  %58 = vrot.lane.b32.xlu0 %v29, 18
  %v59 = vpop.permute.xlu0 %58
  %60 = vrot.lane.b32.xlu0 %v30, 18
  %v61 = vpop.permute.xlu0 %60
  %62 = vrot.lane.b32.xlu0 %v31, 18
  %v63 = vpop.permute.xlu0 %62
  %64 = vrot.lane.b32.xlu0 %v32, 18
  %v65 = vpop.permute.xlu0 %64
  %66 = vrot.lane.b32.xlu0 %v33, 18
  %v67 = vpop.permute.xlu0 %66
  %68 = vrot.lane.b32.xlu0 %v34, 18
  %v69 = vpop.permute.xlu0 %68
  %vm70 = vcmp.lt.s32.totalorder %v49, 18
  %v71 = vsel %vm70, %v67, %v69
  %v72 = vsel %vm70, %v65, %v67
  %v73 = vsel %vm70, %v63, %v65
  %v74 = vsel %vm70, %v61, %v63
  %v75 = vsel %vm70, %v59, %v61
  %v76 = vsel %vm70, %v69, %v59
  %s77 = scalar_lea.vmem %s2, 4
  %v78 = vld [vmem:[%s77] sm:$0xf]
  %vm79 = vcmask 64512
  %v81 = vsel %vm79, %v78, 0
  %83 = vmatprep.subr.mxu0 %v75
  %84 = vmatpush1.msra.mxu0 %v76
  %85 = vmatprep.subr.mxu0 0.0
  %86 = vmatpush1.msra.mxu0 0.0
  %87 = vmatprep.subr.mxu0 0.0
  %88 = vmatpush1.msra.mxu0 0.0
  %89 = vmatprep.subr.mxu0 0.0
  %90 = vmatpush1.msra.mxu0 0.0
  %91 = vmatprep.subr.mxu0 0.0
  %92 = vmatpush1.msra.mxu0 0.0
  %93 = vmatprep.subr.mxu0 0.0
  %94 = vmatpush1.msra.mxu0 0.0
  %95 = vmatprep.subr.mxu0 0.0
  %96 = vmatpush1.msra.mxu0 0.0
  %97 = vmatprep.subr.mxu0 0.0
  %98 = vmatpush1.msra.mxu0 0.0
  %99 = vmatprep.subr.mxu0 0.0
  %100 = vmatpush1.msra.mxu0 0.0
  %101 = vmatprep.subr.mxu0 0.0
  %102 = vmatpush1.msra.mxu0 0.0
  %103 = vmatprep.subr.mxu0 0.0
  %104 = vmatpush1.msra.mxu0 0.0
  %105 = vmatprep.subr.mxu0 0.0
  %106 = vmatpush1.msra.mxu0 0.0
  %107 = vmatprep.subr.mxu0 0.0
  %108 = vmatpush1.msra.mxu0 0.0
  %109 = vmatprep.subr.mxu0 0.0
  %110 = vmatpush1.msra.mxu0 0.0
  %111 = vmatprep.subr.mxu0 0.0
  %112 = vmatpush1.msra.mxu0 0.0
  %113 = vmatprep.subr.mxu0 0.0
  %114 = vmatpush1.msra.mxu0 0.0
  %115 = vmatprep.subr.mxu0 0.0
  %116 = vmatpush1.msra.mxu0 0.0
  %117 = vmatprep.subr.mxu0 0.0
  %118 = vmatpush1.msra.mxu0 0.0
  %119 = vmatprep.subr.mxu0 0.0
  %120 = vmatpush1.msra.mxu0 0.0
  %121 = vmatprep.subr.mxu0 0.0
  %122 = vmatpush1.msra.mxu0 0.0
  %123 = vmatprep.subr.mxu0 0.0
  %124 = vmatpush1.msra.mxu0 0.0
  %125 = vmatprep.subr.mxu0 0.0
  %126 = vmatpush1.msra.mxu0 0.0
  %127 = vmatprep.subr.mxu0 0.0
  %128 = vmatpush1.msra.mxu0 0.0
  %129 = vmatprep.subr.mxu0 0.0
  %130 = vmatpush1.msra.mxu0 0.0
  %131 = vmatprep.subr.mxu0 0.0
  %132 = vmatpush1.msra.mxu0 0.0
  %133 = vmatprep.subr.mxu0 0.0
  %134 = vmatpush1.msra.mxu0 0.0
  %135 = vmatprep.subr.mxu0 0.0
  %136 = vmatpush1.msra.mxu0 0.0
  %137 = vmatprep.subr.mxu0 0.0
  %138 = vmatpush1.msra.mxu0 0.0
  %139 = vmatprep.subr.mxu0 0.0
  %140 = vmatpush1.msra.mxu0 0.0
  %141 = vmatprep.subr.mxu0 0.0
  %142 = vmatpush1.msra.mxu0 0.0
  %143 = vmatprep.subr.mxu0 0.0
  %144 = vmatpush1.msra.mxu0 0.0
  %145 = vmatprep.subr.mxu0 0.0
  %146 = vmatpush1.msra.mxu0 0.0
  %147 = vmatprep.mubr.f32.mxu0 0.0
  %148 = vmatmul.mubr.f32.gmra.mrb[0].mxu0 %v81
  %v149 = vpop.f32.mrb[0].mxu0
  %v150 = vadd.f32 0.0, %v149
  %v151 = vpop.f32.mrb[0].mxu0
  %v152 = vadd.f32 0.0, %v151
  %153 = vdwg.mxu0
  %154 = vmatprep.subr.mxu0 %v73
  %155 = vmatpush1.msra.mxu0 %v74
  %156 = vmatprep.subr.mxu0 0.0
  %157 = vmatpush1.msra.mxu0 0.0
  %158 = vmatprep.subr.mxu0 0.0
  %159 = vmatpush1.msra.mxu0 0.0
  %160 = vmatprep.subr.mxu0 0.0
  %161 = vmatpush1.msra.mxu0 0.0
  %162 = vmatprep.subr.mxu0 0.0
  %163 = vmatpush1.msra.mxu0 0.0
  %164 = vmatprep.subr.mxu0 0.0
  %165 = vmatpush1.msra.mxu0 0.0
  %166 = vmatprep.subr.mxu0 0.0
  %167 = vmatpush1.msra.mxu0 0.0
  %168 = vmatprep.subr.mxu0 0.0
  %169 = vmatpush1.msra.mxu0 0.0
  %170 = vmatprep.subr.mxu0 0.0
  %171 = vmatpush1.msra.mxu0 0.0
  %172 = vmatprep.subr.mxu0 0.0
  %173 = vmatpush1.msra.mxu0 0.0
  %174 = vmatprep.subr.mxu0 0.0
  %175 = vmatpush1.msra.mxu0 0.0
  %176 = vmatprep.subr.mxu0 0.0
  %177 = vmatpush1.msra.mxu0 0.0
  %178 = vmatprep.subr.mxu0 0.0
  %179 = vmatpush1.msra.mxu0 0.0
  %180 = vmatprep.subr.mxu0 0.0
  %181 = vmatpush1.msra.mxu0 0.0
  %182 = vmatprep.subr.mxu0 0.0
  %183 = vmatpush1.msra.mxu0 0.0
  %184 = vmatprep.subr.mxu0 0.0
  %185 = vmatpush1.msra.mxu0 0.0
  %186 = vmatprep.subr.mxu0 0.0
  %187 = vmatpush1.msra.mxu0 0.0
  %188 = vmatprep.subr.mxu0 0.0
  %189 = vmatpush1.msra.mxu0 0.0
  %190 = vmatprep.subr.mxu0 0.0
  %191 = vmatpush1.msra.mxu0 0.0
  %192 = vmatprep.subr.mxu0 0.0
  %193 = vmatpush1.msra.mxu0 0.0
  %194 = vmatprep.subr.mxu0 0.0
  %195 = vmatpush1.msra.mxu0 0.0
  %196 = vmatprep.subr.mxu0 0.0
  %197 = vmatpush1.msra.mxu0 0.0
  %198 = vmatprep.subr.mxu0 0.0
  %199 = vmatpush1.msra.mxu0 0.0
  %200 = vmatprep.subr.mxu0 0.0
  %201 = vmatpush1.msra.mxu0 0.0
  %202 = vmatprep.subr.mxu0 0.0
  %203 = vmatpush1.msra.mxu0 0.0
  %204 = vmatprep.subr.mxu0 0.0
  %205 = vmatpush1.msra.mxu0 0.0
  %206 = vmatprep.subr.mxu0 0.0
  %207 = vmatpush1.msra.mxu0 0.0
  %208 = vmatprep.subr.mxu0 0.0
  %209 = vmatpush1.msra.mxu0 0.0
  %210 = vmatprep.subr.mxu0 0.0
  %211 = vmatpush1.msra.mxu0 0.0
  %212 = vmatprep.subr.mxu0 0.0
  %213 = vmatpush1.msra.mxu0 0.0
  %214 = vmatprep.subr.mxu0 0.0
  %215 = vmatpush1.msra.mxu0 0.0
  %216 = vmatprep.subr.mxu0 0.0
  %217 = vmatpush1.msra.mxu0 0.0
  %218 = vmatprep.mubr.f32.mxu0 0.0
  %219 = vmatmul.mubr.f32.gmra.mrb[0].mxu0 %v81
  %v220 = vpop.f32.mrb[0].mxu0
  %v221 = vadd.f32 0.0, %v220
  %v222 = vpop.f32.mrb[0].mxu0
  %v223 = vadd.f32 0.0, %v222
  %224 = vdwg.mxu0
  %225 = vmatprep.subr.mxu0 %v71
  %226 = vmatpush1.msra.mxu0 %v72
  %227 = vmatprep.subr.mxu0 0.0
  %228 = vmatpush1.msra.mxu0 0.0
  %229 = vmatprep.subr.mxu0 0.0
  %230 = vmatpush1.msra.mxu0 0.0
  %231 = vmatprep.subr.mxu0 0.0
  %232 = vmatpush1.msra.mxu0 0.0
  %233 = vmatprep.subr.mxu0 0.0
  %234 = vmatpush1.msra.mxu0 0.0
  %235 = vmatprep.subr.mxu0 0.0
  %236 = vmatpush1.msra.mxu0 0.0
  %237 = vmatprep.subr.mxu0 0.0
  %238 = vmatpush1.msra.mxu0 0.0
  %239 = vmatprep.subr.mxu0 0.0
  %240 = vmatpush1.msra.mxu0 0.0
  %241 = vmatprep.subr.mxu0 0.0
  %242 = vmatpush1.msra.mxu0 0.0
  %243 = vmatprep.subr.mxu0 0.0
  %244 = vmatpush1.msra.mxu0 0.0
  %245 = vmatprep.subr.mxu0 0.0
  %246 = vmatpush1.msra.mxu0 0.0
  %247 = vmatprep.subr.mxu0 0.0
  %248 = vmatpush1.msra.mxu0 0.0
  %249 = vmatprep.subr.mxu0 0.0
  %250 = vmatpush1.msra.mxu0 0.0
  %251 = vmatprep.subr.mxu0 0.0
  %252 = vmatpush1.msra.mxu0 0.0
  %253 = vmatprep.subr.mxu0 0.0
  %254 = vmatpush1.msra.mxu0 0.0
  %255 = vmatprep.subr.mxu0 0.0
  %256 = vmatpush1.msra.mxu0 0.0
  %257 = vmatprep.subr.mxu0 0.0
  %258 = vmatpush1.msra.mxu0 0.0
  %259 = vmatprep.subr.mxu0 0.0
  %260 = vmatpush1.msra.mxu0 0.0
  %261 = vmatprep.subr.mxu0 0.0
  %262 = vmatpush1.msra.mxu0 0.0
  %263 = vmatprep.subr.mxu0 0.0
  %264 = vmatpush1.msra.mxu0 0.0
  %265 = vmatprep.subr.mxu0 0.0
  %266 = vmatpush1.msra.mxu0 0.0
  %267 = vmatprep.subr.mxu0 0.0
  %268 = vmatpush1.msra.mxu0 0.0
  %269 = vmatprep.subr.mxu0 0.0
  %270 = vmatpush1.msra.mxu0 0.0
  %271 = vmatprep.subr.mxu0 0.0
  %272 = vmatpush1.msra.mxu0 0.0
  %273 = vmatprep.subr.mxu0 0.0
  %274 = vmatpush1.msra.mxu0 0.0
  %275 = vmatprep.subr.mxu0 0.0
  %276 = vmatpush1.msra.mxu0 0.0
  %277 = vmatprep.subr.mxu0 0.0
  %278 = vmatpush1.msra.mxu0 0.0
  %279 = vmatprep.subr.mxu0 0.0
  %280 = vmatpush1.msra.mxu0 0.0
  %281 = vmatprep.subr.mxu0 0.0
  %282 = vmatpush1.msra.mxu0 0.0
  %283 = vmatprep.subr.mxu0 0.0
  %284 = vmatpush1.msra.mxu0 0.0
  %285 = vmatprep.subr.mxu0 0.0
  %286 = vmatpush1.msra.mxu0 0.0
  %287 = vmatprep.subr.mxu0 0.0
  %288 = vmatpush1.msra.mxu0 0.0
  %289 = vmatprep.mubr.f32.mxu0 0.0
  %290 = vmatmul.mubr.f32.gmra.mrb[0].mxu0 %v81
  %v291 = vpop.f32.mrb[0].mxu0
  %v292 = vadd.f32 0.0, %v291
  %v293 = vpop.f32.mrb[0].mxu0
  %v294 = vadd.f32 0.0, %v293
  %295 = vdwg.mxu0
  %v297 = vsel %vm79, %v57, 0
  %299 = vmatprep.subr.mxu0 %v55
  %300 = vmatpush1.msra.mxu0 %v56
  %301 = vmatprep.subr.mxu0 0.0
  %302 = vmatpush1.msra.mxu0 0.0
  %303 = vmatprep.subr.mxu0 0.0
  %304 = vmatpush1.msra.mxu0 0.0
  %305 = vmatprep.subr.mxu0 0.0
  %306 = vmatpush1.msra.mxu0 0.0
  %307 = vmatprep.subr.mxu0 0.0
  %308 = vmatpush1.msra.mxu0 0.0
  %309 = vmatprep.subr.mxu0 0.0
  %310 = vmatpush1.msra.mxu0 0.0
  %311 = vmatprep.subr.mxu0 0.0
  %312 = vmatpush1.msra.mxu0 0.0
  %313 = vmatprep.subr.mxu0 0.0
  %314 = vmatpush1.msra.mxu0 0.0
  %315 = vmatprep.subr.mxu0 0.0
  %316 = vmatpush1.msra.mxu0 0.0
  %317 = vmatprep.subr.mxu0 0.0
  %318 = vmatpush1.msra.mxu0 0.0
  %319 = vmatprep.subr.mxu0 0.0
  %320 = vmatpush1.msra.mxu0 0.0
  %321 = vmatprep.subr.mxu0 0.0
  %322 = vmatpush1.msra.mxu0 0.0
  %323 = vmatprep.subr.mxu0 0.0
  %324 = vmatpush1.msra.mxu0 0.0
  %325 = vmatprep.subr.mxu0 0.0
  %326 = vmatpush1.msra.mxu0 0.0
  %327 = vmatprep.subr.mxu0 0.0
  %328 = vmatpush1.msra.mxu0 0.0
  %329 = vmatprep.subr.mxu0 0.0
  %330 = vmatpush1.msra.mxu0 0.0
  %331 = vmatprep.subr.mxu0 0.0
  %332 = vmatpush1.msra.mxu0 0.0
  %333 = vmatprep.subr.mxu0 0.0
  %334 = vmatpush1.msra.mxu0 0.0
  %335 = vmatprep.subr.mxu0 0.0
  %336 = vmatpush1.msra.mxu0 0.0
  %337 = vmatprep.subr.mxu0 0.0
  %338 = vmatpush1.msra.mxu0 0.0
  %339 = vmatprep.subr.mxu0 0.0
  %340 = vmatpush1.msra.mxu0 0.0
  %341 = vmatprep.subr.mxu0 0.0
  %342 = vmatpush1.msra.mxu0 0.0
  %343 = vmatprep.subr.mxu0 0.0
  %344 = vmatpush1.msra.mxu0 0.0
  %345 = vmatprep.subr.mxu0 0.0
  %346 = vmatpush1.msra.mxu0 0.0
  %347 = vmatprep.subr.mxu0 0.0
  %348 = vmatpush1.msra.mxu0 0.0
  %349 = vmatprep.subr.mxu0 0.0
  %350 = vmatpush1.msra.mxu0 0.0
  %351 = vmatprep.subr.mxu0 0.0
  %352 = vmatpush1.msra.mxu0 0.0
  %353 = vmatprep.subr.mxu0 0.0
  %354 = vmatpush1.msra.mxu0 0.0
  %355 = vmatprep.subr.mxu0 0.0
  %356 = vmatpush1.msra.mxu0 0.0
  %357 = vmatprep.subr.mxu0 0.0
  %358 = vmatpush1.msra.mxu0 0.0
  %359 = vmatprep.subr.mxu0 0.0
  %360 = vmatpush1.msra.mxu0 0.0
  %361 = vmatprep.subr.mxu0 0.0
  %362 = vmatpush1.msra.mxu0 0.0
  %363 = vmatprep.mubr.f32.mxu0 0.0
  %364 = vmatmul.mubr.f32.gmra.mrb[0].mxu0 %v297
  %v365 = vpop.f32.mrb[0].mxu0
  %v366 = vadd.f32 %v150, %v365
  %v367 = vpop.f32.mrb[0].mxu0
  %v368 = vadd.f32 %v152, %v367
  %369 = vdwg.mxu0
  %370 = vmatprep.subr.mxu0 %v53
  %371 = vmatpush1.msra.mxu0 %v54
  %372 = vmatprep.subr.mxu0 0.0
  %373 = vmatpush1.msra.mxu0 0.0
  %374 = vmatprep.subr.mxu0 0.0
  %375 = vmatpush1.msra.mxu0 0.0
  %376 = vmatprep.subr.mxu0 0.0
  %377 = vmatpush1.msra.mxu0 0.0
  %378 = vmatprep.subr.mxu0 0.0
  %379 = vmatpush1.msra.mxu0 0.0
  %380 = vmatprep.subr.mxu0 0.0
  %381 = vmatpush1.msra.mxu0 0.0
  %382 = vmatprep.subr.mxu0 0.0
  %383 = vmatpush1.msra.mxu0 0.0
  %384 = vmatprep.subr.mxu0 0.0
  %385 = vmatpush1.msra.mxu0 0.0
  %386 = vmatprep.subr.mxu0 0.0
  %387 = vmatpush1.msra.mxu0 0.0
  %388 = vmatprep.subr.mxu0 0.0
  %389 = vmatpush1.msra.mxu0 0.0
  %390 = vmatprep.subr.mxu0 0.0
  %391 = vmatpush1.msra.mxu0 0.0
  %392 = vmatprep.subr.mxu0 0.0
  %393 = vmatpush1.msra.mxu0 0.0
  %394 = vmatprep.subr.mxu0 0.0
  %395 = vmatpush1.msra.mxu0 0.0
  %396 = vmatprep.subr.mxu0 0.0
  %397 = vmatpush1.msra.mxu0 0.0
  %398 = vmatprep.subr.mxu0 0.0
  %399 = vmatpush1.msra.mxu0 0.0
  %400 = vmatprep.subr.mxu0 0.0
  %401 = vmatpush1.msra.mxu0 0.0
  %402 = vmatprep.subr.mxu0 0.0
  %403 = vmatpush1.msra.mxu0 0.0
  %404 = vmatprep.subr.mxu0 0.0
  %405 = vmatpush1.msra.mxu0 0.0
  %406 = vmatprep.subr.mxu0 0.0
  %407 = vmatpush1.msra.mxu0 0.0
  %408 = vmatprep.subr.mxu0 0.0
  %409 = vmatpush1.msra.mxu0 0.0
  %410 = vmatprep.subr.mxu0 0.0
  %411 = vmatpush1.msra.mxu0 0.0
  %412 = vmatprep.subr.mxu0 0.0
  %413 = vmatpush1.msra.mxu0 0.0
  %414 = vmatprep.subr.mxu0 0.0
  %415 = vmatpush1.msra.mxu0 0.0
  %416 = vmatprep.subr.mxu0 0.0
  %417 = vmatpush1.msra.mxu0 0.0
  %418 = vmatprep.subr.mxu0 0.0
  %419 = vmatpush1.msra.mxu0 0.0
  %420 = vmatprep.subr.mxu0 0.0
  %421 = vmatpush1.msra.mxu0 0.0
  %422 = vmatprep.subr.mxu0 0.0
  %423 = vmatpush1.msra.mxu0 0.0
  %424 = vmatprep.subr.mxu0 0.0
  %425 = vmatpush1.msra.mxu0 0.0
  %426 = vmatprep.subr.mxu0 0.0
  %427 = vmatpush1.msra.mxu0 0.0
  %428 = vmatprep.subr.mxu0 0.0
  %429 = vmatpush1.msra.mxu0 0.0
  %430 = vmatprep.subr.mxu0 0.0
  %431 = vmatpush1.msra.mxu0 0.0
  %432 = vmatprep.subr.mxu0 0.0
  %433 = vmatpush1.msra.mxu0 0.0
  %434 = vmatprep.mubr.f32.mxu0 0.0
  %435 = vmatmul.mubr.f32.gmra.mrb[0].mxu0 %v297
  %v436 = vpop.f32.mrb[0].mxu0
  %v437 = vadd.f32 %v221, %v436
  %v438 = vpop.f32.mrb[0].mxu0
  %v439 = vadd.f32 %v223, %v438
  %440 = vdwg.mxu0
  %441 = vmatprep.subr.mxu0 %v51
  %442 = vmatpush1.msra.mxu0 %v52
  %443 = vmatprep.subr.mxu0 0.0
  %444 = vmatpush1.msra.mxu0 0.0
  %445 = vmatprep.subr.mxu0 0.0
  %446 = vmatpush1.msra.mxu0 0.0
  %447 = vmatprep.subr.mxu0 0.0
  %448 = vmatpush1.msra.mxu0 0.0
  %449 = vmatprep.subr.mxu0 0.0
  %450 = vmatpush1.msra.mxu0 0.0
  %451 = vmatprep.subr.mxu0 0.0
  %452 = vmatpush1.msra.mxu0 0.0
  %453 = vmatprep.subr.mxu0 0.0
  %454 = vmatpush1.msra.mxu0 0.0
  %455 = vmatprep.subr.mxu0 0.0
  %456 = vmatpush1.msra.mxu0 0.0
  %457 = vmatprep.subr.mxu0 0.0
  %458 = vmatpush1.msra.mxu0 0.0
  %459 = vmatprep.subr.mxu0 0.0
  %460 = vmatpush1.msra.mxu0 0.0
  %461 = vmatprep.subr.mxu0 0.0
  %462 = vmatpush1.msra.mxu0 0.0
  %463 = vmatprep.subr.mxu0 0.0
  %464 = vmatpush1.msra.mxu0 0.0
  %465 = vmatprep.subr.mxu0 0.0
  %466 = vmatpush1.msra.mxu0 0.0
  %467 = vmatprep.subr.mxu0 0.0
  %468 = vmatpush1.msra.mxu0 0.0
  %469 = vmatprep.subr.mxu0 0.0
  %470 = vmatpush1.msra.mxu0 0.0
  %471 = vmatprep.subr.mxu0 0.0
  %472 = vmatpush1.msra.mxu0 0.0
  %473 = vmatprep.subr.mxu0 0.0
  %474 = vmatpush1.msra.mxu0 0.0
  %475 = vmatprep.subr.mxu0 0.0
  %476 = vmatpush1.msra.mxu0 0.0
  %477 = vmatprep.subr.mxu0 0.0
  %478 = vmatpush1.msra.mxu0 0.0
  %479 = vmatprep.subr.mxu0 0.0
  %480 = vmatpush1.msra.mxu0 0.0
  %481 = vmatprep.subr.mxu0 0.0
  %482 = vmatpush1.msra.mxu0 0.0
  %483 = vmatprep.subr.mxu0 0.0
  %484 = vmatpush1.msra.mxu0 0.0
  %485 = vmatprep.subr.mxu0 0.0
  %486 = vmatpush1.msra.mxu0 0.0
  %487 = vmatprep.subr.mxu0 0.0
  %488 = vmatpush1.msra.mxu0 0.0
  %489 = vmatprep.subr.mxu0 0.0
  %490 = vmatpush1.msra.mxu0 0.0
  %491 = vmatprep.subr.mxu0 0.0
  %492 = vmatpush1.msra.mxu0 0.0
  %493 = vmatprep.subr.mxu0 0.0
  %494 = vmatpush1.msra.mxu0 0.0
  %495 = vmatprep.subr.mxu0 0.0
  %496 = vmatpush1.msra.mxu0 0.0
  %497 = vmatprep.subr.mxu0 0.0
  %498 = vmatpush1.msra.mxu0 0.0
  %499 = vmatprep.subr.mxu0 0.0
  %500 = vmatpush1.msra.mxu0 0.0
  %501 = vmatprep.subr.mxu0 0.0
  %502 = vmatpush1.msra.mxu0 0.0
  %503 = vmatprep.subr.mxu0 0.0
  %504 = vmatpush1.msra.mxu0 0.0
  %505 = vmatprep.mubr.f32.mxu0 0.0
  %506 = vmatmul.mubr.f32.gmra.mrb[0].mxu0 %v297
  %v507 = vpop.f32.mrb[0].mxu0
  %v508 = vadd.f32 %v292, %v507
  %v509 = vpop.f32.mrb[0].mxu0
  %v510 = vadd.f32 %v294, %v509
  %511 = vdwg.mxu0
  %512 = vrot.lane.b32.xlu0 %v29, 17
  %v513 = vpop.permute.xlu0 %512
  %514 = vrot.lane.b32.xlu0 %v30, 17
  %v515 = vpop.permute.xlu0 %514
  %516 = vrot.lane.b32.xlu0 %v31, 17
  %v517 = vpop.permute.xlu0 %516
  %518 = vrot.lane.b32.xlu0 %v32, 17
  %v519 = vpop.permute.xlu0 %518
  %520 = vrot.lane.b32.xlu0 %v33, 17
  %v521 = vpop.permute.xlu0 %520
  %522 = vrot.lane.b32.xlu0 %v34, 17
  %v523 = vpop.permute.xlu0 %522
  %vm524 = vcmp.lt.s32.totalorder %v49, 17
  %v525 = vsel %vm524, %v521, %v523
  %v526 = vsel %vm524, %v519, %v521
  %v527 = vsel %vm524, %v517, %v519
  %v528 = vsel %vm524, %v515, %v517
  %v529 = vsel %vm524, %v513, %v515
  %v530 = vsel %vm524, %v523, %v513
  %s531 = scalar_lea.vmem %s2, 8
  %v532 = vld [vmem:[%s531] sm:$0xf]
  %v534 = vsel %vm79, %v532, 0
  %536 = vmatprep.subr.mxu0 %v529
  %537 = vmatpush1.msra.mxu0 %v530
  %538 = vmatprep.subr.mxu0 0.0
  %539 = vmatpush1.msra.mxu0 0.0
  %540 = vmatprep.subr.mxu0 0.0
  %541 = vmatpush1.msra.mxu0 0.0
  %542 = vmatprep.subr.mxu0 0.0
  %543 = vmatpush1.msra.mxu0 0.0
  %544 = vmatprep.subr.mxu0 0.0
  %545 = vmatpush1.msra.mxu0 0.0
  %546 = vmatprep.subr.mxu0 0.0
  %547 = vmatpush1.msra.mxu0 0.0
  %548 = vmatprep.subr.mxu0 0.0
  %549 = vmatpush1.msra.mxu0 0.0
  %550 = vmatprep.subr.mxu0 0.0
  %551 = vmatpush1.msra.mxu0 0.0
  %552 = vmatprep.subr.mxu0 0.0
  %553 = vmatpush1.msra.mxu0 0.0
  %554 = vmatprep.subr.mxu0 0.0
  %555 = vmatpush1.msra.mxu0 0.0
  %556 = vmatprep.subr.mxu0 0.0
  %557 = vmatpush1.msra.mxu0 0.0
  %558 = vmatprep.subr.mxu0 0.0
  %559 = vmatpush1.msra.mxu0 0.0
  %560 = vmatprep.subr.mxu0 0.0
  %561 = vmatpush1.msra.mxu0 0.0
  %562 = vmatprep.subr.mxu0 0.0
  %563 = vmatpush1.msra.mxu0 0.0
  %564 = vmatprep.subr.mxu0 0.0
  %565 = vmatpush1.msra.mxu0 0.0
  %566 = vmatprep.subr.mxu0 0.0
  %567 = vmatpush1.msra.mxu0 0.0
  %568 = vmatprep.subr.mxu0 0.0
  %569 = vmatpush1.msra.mxu0 0.0
  %570 = vmatprep.subr.mxu0 0.0
  %571 = vmatpush1.msra.mxu0 0.0
  %572 = vmatprep.subr.mxu0 0.0
  %573 = vmatpush1.msra.mxu0 0.0
  %574 = vmatprep.subr.mxu0 0.0
  %575 = vmatpush1.msra.mxu0 0.0
  %576 = vmatprep.subr.mxu0 0.0
  %577 = vmatpush1.msra.mxu0 0.0
  %578 = vmatprep.subr.mxu0 0.0
  %579 = vmatpush1.msra.mxu0 0.0
  %580 = vmatprep.subr.mxu0 0.0
  %581 = vmatpush1.msra.mxu0 0.0
  %582 = vmatprep.subr.mxu0 0.0
  %583 = vmatpush1.msra.mxu0 0.0
  %584 = vmatprep.subr.mxu0 0.0
  %585 = vmatpush1.msra.mxu0 0.0
  %586 = vmatprep.subr.mxu0 0.0
  %587 = vmatpush1.msra.mxu0 0.0
  %588 = vmatprep.subr.mxu0 0.0
  %589 = vmatpush1.msra.mxu0 0.0
  %590 = vmatprep.subr.mxu0 0.0
  %591 = vmatpush1.msra.mxu0 0.0
  %592 = vmatprep.subr.mxu0 0.0
  %593 = vmatpush1.msra.mxu0 0.0
  %594 = vmatprep.subr.mxu0 0.0
  %595 = vmatpush1.msra.mxu0 0.0
  %596 = vmatprep.subr.mxu0 0.0
  %597 = vmatpush1.msra.mxu0 0.0
  %598 = vmatprep.subr.mxu0 0.0
  %599 = vmatpush1.msra.mxu0 0.0
  %600 = vmatprep.mubr.f32.mxu0 0.0
  %601 = vmatmul.mubr.f32.gmra.mrb[0].mxu0 %v534
  %v602 = vpop.f32.mrb[0].mxu0
  %v603 = vadd.f32 0.0, %v602
  %v604 = vpop.f32.mrb[0].mxu0
  %v605 = vadd.f32 0.0, %v604
  %606 = vdwg.mxu0
  %607 = vmatprep.subr.mxu0 %v527
  %608 = vmatpush1.msra.mxu0 %v528
  %609 = vmatprep.subr.mxu0 0.0
  %610 = vmatpush1.msra.mxu0 0.0
  %611 = vmatprep.subr.mxu0 0.0
  %612 = vmatpush1.msra.mxu0 0.0
  %613 = vmatprep.subr.mxu0 0.0
  %614 = vmatpush1.msra.mxu0 0.0
  %615 = vmatprep.subr.mxu0 0.0
  %616 = vmatpush1.msra.mxu0 0.0
  %617 = vmatprep.subr.mxu0 0.0
  %618 = vmatpush1.msra.mxu0 0.0
  %619 = vmatprep.subr.mxu0 0.0
  %620 = vmatpush1.msra.mxu0 0.0
  %621 = vmatprep.subr.mxu0 0.0
  %622 = vmatpush1.msra.mxu0 0.0
  %623 = vmatprep.subr.mxu0 0.0
  %624 = vmatpush1.msra.mxu0 0.0
  %625 = vmatprep.subr.mxu0 0.0
  %626 = vmatpush1.msra.mxu0 0.0
  %627 = vmatprep.subr.mxu0 0.0
  %628 = vmatpush1.msra.mxu0 0.0
  %629 = vmatprep.subr.mxu0 0.0
  %630 = vmatpush1.msra.mxu0 0.0
  %631 = vmatprep.subr.mxu0 0.0
  %632 = vmatpush1.msra.mxu0 0.0
  %633 = vmatprep.subr.mxu0 0.0
  %634 = vmatpush1.msra.mxu0 0.0
  %635 = vmatprep.subr.mxu0 0.0
  %636 = vmatpush1.msra.mxu0 0.0
  %637 = vmatprep.subr.mxu0 0.0
  %638 = vmatpush1.msra.mxu0 0.0
  %639 = vmatprep.subr.mxu0 0.0
  %640 = vmatpush1.msra.mxu0 0.0
  %641 = vmatprep.subr.mxu0 0.0
  %642 = vmatpush1.msra.mxu0 0.0
  %643 = vmatprep.subr.mxu0 0.0
  %644 = vmatpush1.msra.mxu0 0.0
  %645 = vmatprep.subr.mxu0 0.0
  %646 = vmatpush1.msra.mxu0 0.0
  %647 = vmatprep.subr.mxu0 0.0
  %648 = vmatpush1.msra.mxu0 0.0
  %649 = vmatprep.subr.mxu0 0.0
  %650 = vmatpush1.msra.mxu0 0.0
  %651 = vmatprep.subr.mxu0 0.0
  %652 = vmatpush1.msra.mxu0 0.0
  %653 = vmatprep.subr.mxu0 0.0
  %654 = vmatpush1.msra.mxu0 0.0
  %655 = vmatprep.subr.mxu0 0.0
  %656 = vmatpush1.msra.mxu0 0.0
  %657 = vmatprep.subr.mxu0 0.0
  %658 = vmatpush1.msra.mxu0 0.0
  %659 = vmatprep.subr.mxu0 0.0
  %660 = vmatpush1.msra.mxu0 0.0
  %661 = vmatprep.subr.mxu0 0.0
  %662 = vmatpush1.msra.mxu0 0.0
  %663 = vmatprep.subr.mxu0 0.0
  %664 = vmatpush1.msra.mxu0 0.0
  %665 = vmatprep.subr.mxu0 0.0
  %666 = vmatpush1.msra.mxu0 0.0
  %667 = vmatprep.subr.mxu0 0.0
  %668 = vmatpush1.msra.mxu0 0.0
  %669 = vmatprep.subr.mxu0 0.0
  %670 = vmatpush1.msra.mxu0 0.0
  %671 = vmatprep.mubr.f32.mxu0 0.0
  %672 = vmatmul.mubr.f32.gmra.mrb[0].mxu0 %v534
  %v673 = vpop.f32.mrb[0].mxu0
  %v674 = vadd.f32 0.0, %v673
  %v675 = vpop.f32.mrb[0].mxu0
  %v676 = vadd.f32 0.0, %v675
  %677 = vdwg.mxu0
  %678 = vmatprep.subr.mxu0 %v525
  %679 = vmatpush1.msra.mxu0 %v526
  %680 = vmatprep.subr.mxu0 0.0
  %681 = vmatpush1.msra.mxu0 0.0
  %682 = vmatprep.subr.mxu0 0.0
  %683 = vmatpush1.msra.mxu0 0.0
  %684 = vmatprep.subr.mxu0 0.0
  %685 = vmatpush1.msra.mxu0 0.0
  %686 = vmatprep.subr.mxu0 0.0
  %687 = vmatpush1.msra.mxu0 0.0
  %688 = vmatprep.subr.mxu0 0.0
  %689 = vmatpush1.msra.mxu0 0.0
  %690 = vmatprep.subr.mxu0 0.0
  %691 = vmatpush1.msra.mxu0 0.0
  %692 = vmatprep.subr.mxu0 0.0
  %693 = vmatpush1.msra.mxu0 0.0
  %694 = vmatprep.subr.mxu0 0.0
  %695 = vmatpush1.msra.mxu0 0.0
  %696 = vmatprep.subr.mxu0 0.0
  %697 = vmatpush1.msra.mxu0 0.0
  %698 = vmatprep.subr.mxu0 0.0
  %699 = vmatpush1.msra.mxu0 0.0
  %700 = vmatprep.subr.mxu0 0.0
  %701 = vmatpush1.msra.mxu0 0.0
  %702 = vmatprep.subr.mxu0 0.0
  %703 = vmatpush1.msra.mxu0 0.0
  %704 = vmatprep.subr.mxu0 0.0
  %705 = vmatpush1.msra.mxu0 0.0
  %706 = vmatprep.subr.mxu0 0.0
  %707 = vmatpush1.msra.mxu0 0.0
  %708 = vmatprep.subr.mxu0 0.0
  %709 = vmatpush1.msra.mxu0 0.0
  %710 = vmatprep.subr.mxu0 0.0
  %711 = vmatpush1.msra.mxu0 0.0
  %712 = vmatprep.subr.mxu0 0.0
  %713 = vmatpush1.msra.mxu0 0.0
  %714 = vmatprep.subr.mxu0 0.0
  %715 = vmatpush1.msra.mxu0 0.0
  %716 = vmatprep.subr.mxu0 0.0
  %717 = vmatpush1.msra.mxu0 0.0
  %718 = vmatprep.subr.mxu0 0.0
  %719 = vmatpush1.msra.mxu0 0.0
  %720 = vmatprep.subr.mxu0 0.0
  %721 = vmatpush1.msra.mxu0 0.0
  %722 = vmatprep.subr.mxu0 0.0
  %723 = vmatpush1.msra.mxu0 0.0
  %724 = vmatprep.subr.mxu0 0.0
  %725 = vmatpush1.msra.mxu0 0.0
  %726 = vmatprep.subr.mxu0 0.0
  %727 = vmatpush1.msra.mxu0 0.0
  %728 = vmatprep.subr.mxu0 0.0
  %729 = vmatpush1.msra.mxu0 0.0
  %730 = vmatprep.subr.mxu0 0.0
  %731 = vmatpush1.msra.mxu0 0.0
  %732 = vmatprep.subr.mxu0 0.0
  %733 = vmatpush1.msra.mxu0 0.0
  %734 = vmatprep.subr.mxu0 0.0
  %735 = vmatpush1.msra.mxu0 0.0
  %736 = vmatprep.subr.mxu0 0.0
  %737 = vmatpush1.msra.mxu0 0.0
  %738 = vmatprep.subr.mxu0 0.0
  %739 = vmatpush1.msra.mxu0 0.0
  %740 = vmatprep.subr.mxu0 0.0
  %741 = vmatpush1.msra.mxu0 0.0
  %742 = vmatprep.mubr.f32.mxu0 0.0
  %743 = vmatmul.mubr.f32.gmra.mrb[0].mxu0 %v534
  %v744 = vpop.f32.mrb[0].mxu0
  %v745 = vadd.f32 0.0, %v744
  %v746 = vpop.f32.mrb[0].mxu0
  %v747 = vadd.f32 0.0, %v746
  %748 = vdwg.mxu0
  %v749 = vadd.f32 %v366, %v603
  %v750 = vadd.f32 %v368, %v605
  %v751 = vadd.f32 %v437, %v674
  %v752 = vadd.f32 %v439, %v676
  %v753 = vadd.f32 %v508, %v745
  %v754 = vadd.f32 %v510, %v747
  %755 = vrot.lane.b32.xlu0 %v29, 1
  %v756 = vpop.permute.xlu0 %755
  %757 = vrot.lane.b32.xlu0 %v30, 1
  %v758 = vpop.permute.xlu0 %757
  %759 = vrot.lane.b32.xlu0 %v31, 1
  %v760 = vpop.permute.xlu0 %759
  %761 = vrot.lane.b32.xlu0 %v32, 1
  %v762 = vpop.permute.xlu0 %761
  %763 = vrot.lane.b32.xlu0 %v33, 1
  %v764 = vpop.permute.xlu0 %763
  %765 = vrot.lane.b32.xlu0 %v34, 1
  %v766 = vpop.permute.xlu0 %765
  %vm767 = vcmp.lt.s32.totalorder %v49, 1
  %v768 = vsel %vm767, %v764, %v766
  %v769 = vsel %vm767, %v762, %v764
  %v770 = vsel %vm767, %v760, %v762
  %v771 = vsel %vm767, %v758, %v760
  %v772 = vsel %vm767, %v756, %v758
  %v773 = vsel %vm767, %v766, %v756
  %s774 = scalar_lea.vmem %s2, 12
  %v775 = vld [vmem:[%s774] sm:$0xf]
  %v777 = vsel %vm79, %v775, 0
  %779 = vmatprep.subr.mxu0 %v772
  %780 = vmatpush1.msra.mxu0 %v773
  %781 = vmatprep.subr.mxu0 0.0
  %782 = vmatpush1.msra.mxu0 0.0
  %783 = vmatprep.subr.mxu0 0.0
  %784 = vmatpush1.msra.mxu0 0.0
  %785 = vmatprep.subr.mxu0 0.0
  %786 = vmatpush1.msra.mxu0 0.0
  %787 = vmatprep.subr.mxu0 0.0
  %788 = vmatpush1.msra.mxu0 0.0
  %789 = vmatprep.subr.mxu0 0.0
  %790 = vmatpush1.msra.mxu0 0.0
  %791 = vmatprep.subr.mxu0 0.0
  %792 = vmatpush1.msra.mxu0 0.0
  %793 = vmatprep.subr.mxu0 0.0
  %794 = vmatpush1.msra.mxu0 0.0
  %795 = vmatprep.subr.mxu0 0.0
  %796 = vmatpush1.msra.mxu0 0.0
  %797 = vmatprep.subr.mxu0 0.0
  %798 = vmatpush1.msra.mxu0 0.0
  %799 = vmatprep.subr.mxu0 0.0
  %800 = vmatpush1.msra.mxu0 0.0
  %801 = vmatprep.subr.mxu0 0.0
  %802 = vmatpush1.msra.mxu0 0.0
  %803 = vmatprep.subr.mxu0 0.0
  %804 = vmatpush1.msra.mxu0 0.0
  %805 = vmatprep.subr.mxu0 0.0
  %806 = vmatpush1.msra.mxu0 0.0
  %807 = vmatprep.subr.mxu0 0.0
  %808 = vmatpush1.msra.mxu0 0.0
  %809 = vmatprep.subr.mxu0 0.0
  %810 = vmatpush1.msra.mxu0 0.0
  %811 = vmatprep.subr.mxu0 0.0
  %812 = vmatpush1.msra.mxu0 0.0
  %813 = vmatprep.subr.mxu0 0.0
  %814 = vmatpush1.msra.mxu0 0.0
  %815 = vmatprep.subr.mxu0 0.0
  %816 = vmatpush1.msra.mxu0 0.0
  %817 = vmatprep.subr.mxu0 0.0
  %818 = vmatpush1.msra.mxu0 0.0
  %819 = vmatprep.subr.mxu0 0.0
  %820 = vmatpush1.msra.mxu0 0.0
  %821 = vmatprep.subr.mxu0 0.0
  %822 = vmatpush1.msra.mxu0 0.0
  %823 = vmatprep.subr.mxu0 0.0
  %824 = vmatpush1.msra.mxu0 0.0
  %825 = vmatprep.subr.mxu0 0.0
  %826 = vmatpush1.msra.mxu0 0.0
  %827 = vmatprep.subr.mxu0 0.0
  %828 = vmatpush1.msra.mxu0 0.0
  %829 = vmatprep.subr.mxu0 0.0
  %830 = vmatpush1.msra.mxu0 0.0
  %831 = vmatprep.subr.mxu0 0.0
  %832 = vmatpush1.msra.mxu0 0.0
  %833 = vmatprep.subr.mxu0 0.0
  %834 = vmatpush1.msra.mxu0 0.0
  %835 = vmatprep.subr.mxu0 0.0
  %836 = vmatpush1.msra.mxu0 0.0
  %837 = vmatprep.subr.mxu0 0.0
  %838 = vmatpush1.msra.mxu0 0.0
  %839 = vmatprep.subr.mxu0 0.0
  %840 = vmatpush1.msra.mxu0 0.0
  %841 = vmatprep.subr.mxu0 0.0
  %842 = vmatpush1.msra.mxu0 0.0
  %843 = vmatprep.mubr.f32.mxu0 0.0
  %844 = vmatmul.mubr.f32.gmra.mrb[0].mxu0 %v777
  %v845 = vpop.f32.mrb[0].mxu0
  %v846 = vadd.f32 0.0, %v845
  %v847 = vpop.f32.mrb[0].mxu0
  %v848 = vadd.f32 0.0, %v847
  %849 = vdwg.mxu0
  %850 = vmatprep.subr.mxu0 %v770
  %851 = vmatpush1.msra.mxu0 %v771
  %852 = vmatprep.subr.mxu0 0.0
  %853 = vmatpush1.msra.mxu0 0.0
  %854 = vmatprep.subr.mxu0 0.0
  %855 = vmatpush1.msra.mxu0 0.0
  %856 = vmatprep.subr.mxu0 0.0
  %857 = vmatpush1.msra.mxu0 0.0
  %858 = vmatprep.subr.mxu0 0.0
  %859 = vmatpush1.msra.mxu0 0.0
  %860 = vmatprep.subr.mxu0 0.0
  %861 = vmatpush1.msra.mxu0 0.0
  %862 = vmatprep.subr.mxu0 0.0
  %863 = vmatpush1.msra.mxu0 0.0
  %864 = vmatprep.subr.mxu0 0.0
  %865 = vmatpush1.msra.mxu0 0.0
  %866 = vmatprep.subr.mxu0 0.0
  %867 = vmatpush1.msra.mxu0 0.0
  %868 = vmatprep.subr.mxu0 0.0
  %869 = vmatpush1.msra.mxu0 0.0
  %870 = vmatprep.subr.mxu0 0.0
  %871 = vmatpush1.msra.mxu0 0.0
  %872 = vmatprep.subr.mxu0 0.0
  %873 = vmatpush1.msra.mxu0 0.0
  %874 = vmatprep.subr.mxu0 0.0
  %875 = vmatpush1.msra.mxu0 0.0
  %876 = vmatprep.subr.mxu0 0.0
  %877 = vmatpush1.msra.mxu0 0.0
  %878 = vmatprep.subr.mxu0 0.0
  %879 = vmatpush1.msra.mxu0 0.0
  %880 = vmatprep.subr.mxu0 0.0
  %881 = vmatpush1.msra.mxu0 0.0
  %882 = vmatprep.subr.mxu0 0.0
  %883 = vmatpush1.msra.mxu0 0.0
  %884 = vmatprep.subr.mxu0 0.0
  %885 = vmatpush1.msra.mxu0 0.0
  %886 = vmatprep.subr.mxu0 0.0
  %887 = vmatpush1.msra.mxu0 0.0
  %888 = vmatprep.subr.mxu0 0.0
  %889 = vmatpush1.msra.mxu0 0.0
  %890 = vmatprep.subr.mxu0 0.0
  %891 = vmatpush1.msra.mxu0 0.0
  %892 = vmatprep.subr.mxu0 0.0
  %893 = vmatpush1.msra.mxu0 0.0
  %894 = vmatprep.subr.mxu0 0.0
  %895 = vmatpush1.msra.mxu0 0.0
  %896 = vmatprep.subr.mxu0 0.0
  %897 = vmatpush1.msra.mxu0 0.0
  %898 = vmatprep.subr.mxu0 0.0
  %899 = vmatpush1.msra.mxu0 0.0
  %900 = vmatprep.subr.mxu0 0.0
  %901 = vmatpush1.msra.mxu0 0.0
  %902 = vmatprep.subr.mxu0 0.0
  %903 = vmatpush1.msra.mxu0 0.0
  %904 = vmatprep.subr.mxu0 0.0
  %905 = vmatpush1.msra.mxu0 0.0
  %906 = vmatprep.subr.mxu0 0.0
  %907 = vmatpush1.msra.mxu0 0.0
  %908 = vmatprep.subr.mxu0 0.0
  %909 = vmatpush1.msra.mxu0 0.0
  %910 = vmatprep.subr.mxu0 0.0
  %911 = vmatpush1.msra.mxu0 0.0
  %912 = vmatprep.subr.mxu0 0.0
  %913 = vmatpush1.msra.mxu0 0.0
  %914 = vmatprep.mubr.f32.mxu0 0.0
  %915 = vmatmul.mubr.f32.gmra.mrb[0].mxu0 %v777
  %v916 = vpop.f32.mrb[0].mxu0
  %v917 = vadd.f32 0.0, %v916
  %v918 = vpop.f32.mrb[0].mxu0
  %v919 = vadd.f32 0.0, %v918
  %920 = vdwg.mxu0
  %921 = vmatprep.subr.mxu0 %v768
  %922 = vmatpush1.msra.mxu0 %v769
  %923 = vmatprep.subr.mxu0 0.0
  %924 = vmatpush1.msra.mxu0 0.0
  %925 = vmatprep.subr.mxu0 0.0
  %926 = vmatpush1.msra.mxu0 0.0
  %927 = vmatprep.subr.mxu0 0.0
  %928 = vmatpush1.msra.mxu0 0.0
  %929 = vmatprep.subr.mxu0 0.0
  %930 = vmatpush1.msra.mxu0 0.0
  %931 = vmatprep.subr.mxu0 0.0
  %932 = vmatpush1.msra.mxu0 0.0
  %933 = vmatprep.subr.mxu0 0.0
  %934 = vmatpush1.msra.mxu0 0.0
  %935 = vmatprep.subr.mxu0 0.0
  %936 = vmatpush1.msra.mxu0 0.0
  %937 = vmatprep.subr.mxu0 0.0
  %938 = vmatpush1.msra.mxu0 0.0
  %939 = vmatprep.subr.mxu0 0.0
  %940 = vmatpush1.msra.mxu0 0.0
  %941 = vmatprep.subr.mxu0 0.0
  %942 = vmatpush1.msra.mxu0 0.0
  %943 = vmatprep.subr.mxu0 0.0
  %944 = vmatpush1.msra.mxu0 0.0
  %945 = vmatprep.subr.mxu0 0.0
  %946 = vmatpush1.msra.mxu0 0.0
  %947 = vmatprep.subr.mxu0 0.0
  %948 = vmatpush1.msra.mxu0 0.0
  %949 = vmatprep.subr.mxu0 0.0
  %950 = vmatpush1.msra.mxu0 0.0
  %951 = vmatprep.subr.mxu0 0.0
  %952 = vmatpush1.msra.mxu0 0.0
  %953 = vmatprep.subr.mxu0 0.0
  %954 = vmatpush1.msra.mxu0 0.0
  %955 = vmatprep.subr.mxu0 0.0
  %956 = vmatpush1.msra.mxu0 0.0
  %957 = vmatprep.subr.mxu0 0.0
  %958 = vmatpush1.msra.mxu0 0.0
  %959 = vmatprep.subr.mxu0 0.0
  %960 = vmatpush1.msra.mxu0 0.0
  %961 = vmatprep.subr.mxu0 0.0
  %962 = vmatpush1.msra.mxu0 0.0
  %963 = vmatprep.subr.mxu0 0.0
  %964 = vmatpush1.msra.mxu0 0.0
  %965 = vmatprep.subr.mxu0 0.0
  %966 = vmatpush1.msra.mxu0 0.0
  %967 = vmatprep.subr.mxu0 0.0
  %968 = vmatpush1.msra.mxu0 0.0
  %969 = vmatprep.subr.mxu0 0.0
  %970 = vmatpush1.msra.mxu0 0.0
  %971 = vmatprep.subr.mxu0 0.0
  %972 = vmatpush1.msra.mxu0 0.0
  %973 = vmatprep.subr.mxu0 0.0
  %974 = vmatpush1.msra.mxu0 0.0
  %975 = vmatprep.subr.mxu0 0.0
  %976 = vmatpush1.msra.mxu0 0.0
  %977 = vmatprep.subr.mxu0 0.0
  %978 = vmatpush1.msra.mxu0 0.0
  %979 = vmatprep.subr.mxu0 0.0
  %980 = vmatpush1.msra.mxu0 0.0
  %981 = vmatprep.subr.mxu0 0.0
  %982 = vmatpush1.msra.mxu0 0.0
  %983 = vmatprep.subr.mxu0 0.0
  %984 = vmatpush1.msra.mxu0 0.0
  %985 = vmatprep.mubr.f32.mxu0 0.0
  %986 = vmatmul.mubr.f32.gmra.mrb[0].mxu0 %v777
  %v987 = vpop.f32.mrb[0].mxu0
  %v988 = vadd.f32 0.0, %v987
  %v989 = vpop.f32.mrb[0].mxu0
  %v990 = vadd.f32 0.0, %v989
  %991 = vdwg.mxu0
  %v992 = vadd.f32 %v749, %v846
  %v993 = vadd.f32 %v750, %v848
  %v994 = vadd.f32 %v751, %v917
  %v995 = vadd.f32 %v752, %v919
  %v996 = vadd.f32 %v753, %v988
  %v997 = vadd.f32 %v754, %v990
  %s998 = scalar_lea.vmem %s2, 16
  %v999 = vld [vmem:[%s998] sm:$0xf]
  %v1001 = vsel %vm79, %v999, 0
  %1003 = vmatprep.subr.mxu0 %v30
  %1004 = vmatpush1.msra.mxu0 %v29
  %1005 = vmatprep.subr.mxu0 0.0
  %1006 = vmatpush1.msra.mxu0 0.0
  %1007 = vmatprep.subr.mxu0 0.0
  %1008 = vmatpush1.msra.mxu0 0.0
  %1009 = vmatprep.subr.mxu0 0.0
  %1010 = vmatpush1.msra.mxu0 0.0
  %1011 = vmatprep.subr.mxu0 0.0
  %1012 = vmatpush1.msra.mxu0 0.0
  %1013 = vmatprep.subr.mxu0 0.0
  %1014 = vmatpush1.msra.mxu0 0.0
  %1015 = vmatprep.subr.mxu0 0.0
  %1016 = vmatpush1.msra.mxu0 0.0
  %1017 = vmatprep.subr.mxu0 0.0
  %1018 = vmatpush1.msra.mxu0 0.0
  %1019 = vmatprep.subr.mxu0 0.0
  %1020 = vmatpush1.msra.mxu0 0.0
  %1021 = vmatprep.subr.mxu0 0.0
  %1022 = vmatpush1.msra.mxu0 0.0
  %1023 = vmatprep.subr.mxu0 0.0
  %1024 = vmatpush1.msra.mxu0 0.0
  %1025 = vmatprep.subr.mxu0 0.0
  %1026 = vmatpush1.msra.mxu0 0.0
  %1027 = vmatprep.subr.mxu0 0.0
  %1028 = vmatpush1.msra.mxu0 0.0
  %1029 = vmatprep.subr.mxu0 0.0
  %1030 = vmatpush1.msra.mxu0 0.0
  %1031 = vmatprep.subr.mxu0 0.0
  %1032 = vmatpush1.msra.mxu0 0.0
  %1033 = vmatprep.subr.mxu0 0.0
  %1034 = vmatpush1.msra.mxu0 0.0
  %1035 = vmatprep.subr.mxu0 0.0
  %1036 = vmatpush1.msra.mxu0 0.0
  %1037 = vmatprep.subr.mxu0 0.0
  %1038 = vmatpush1.msra.mxu0 0.0
  %1039 = vmatprep.subr.mxu0 0.0
  %1040 = vmatpush1.msra.mxu0 0.0
  %1041 = vmatprep.subr.mxu0 0.0
  %1042 = vmatpush1.msra.mxu0 0.0
  %1043 = vmatprep.subr.mxu0 0.0
  %1044 = vmatpush1.msra.mxu0 0.0
  %1045 = vmatprep.subr.mxu0 0.0
  %1046 = vmatpush1.msra.mxu0 0.0
  %1047 = vmatprep.subr.mxu0 0.0
  %1048 = vmatpush1.msra.mxu0 0.0
  %1049 = vmatprep.subr.mxu0 0.0
  %1050 = vmatpush1.msra.mxu0 0.0
  %1051 = vmatprep.subr.mxu0 0.0
  %1052 = vmatpush1.msra.mxu0 0.0
  %1053 = vmatprep.subr.mxu0 0.0
  %1054 = vmatpush1.msra.mxu0 0.0
  %1055 = vmatprep.subr.mxu0 0.0
  %1056 = vmatpush1.msra.mxu0 0.0
  %1057 = vmatprep.subr.mxu0 0.0
  %1058 = vmatpush1.msra.mxu0 0.0
  %1059 = vmatprep.subr.mxu0 0.0
  %1060 = vmatpush1.msra.mxu0 0.0
  %1061 = vmatprep.subr.mxu0 0.0
  %1062 = vmatpush1.msra.mxu0 0.0
  %1063 = vmatprep.subr.mxu0 0.0
  %1064 = vmatpush1.msra.mxu0 0.0
  %1065 = vmatprep.subr.mxu0 0.0
  %1066 = vmatpush1.msra.mxu0 0.0
  %1067 = vmatprep.mubr.f32.mxu0 0.0
  %1068 = vmatmul.mubr.f32.gmra.mrb[0].mxu0 %v1001
  %v1069 = vpop.f32.mrb[0].mxu0
  %v1070 = vadd.f32 0.0, %v1069
  %v1071 = vpop.f32.mrb[0].mxu0
  %v1072 = vadd.f32 0.0, %v1071
  %1073 = vdwg.mxu0
  %1074 = vmatprep.subr.mxu0 %v32
  %1075 = vmatpush1.msra.mxu0 %v31
  %1076 = vmatprep.subr.mxu0 0.0
  %1077 = vmatpush1.msra.mxu0 0.0
  %1078 = vmatprep.subr.mxu0 0.0
  %1079 = vmatpush1.msra.mxu0 0.0
  %1080 = vmatprep.subr.mxu0 0.0
  %1081 = vmatpush1.msra.mxu0 0.0
  %1082 = vmatprep.subr.mxu0 0.0
  %1083 = vmatpush1.msra.mxu0 0.0
  %1084 = vmatprep.subr.mxu0 0.0
  %1085 = vmatpush1.msra.mxu0 0.0
  %1086 = vmatprep.subr.mxu0 0.0
  %1087 = vmatpush1.msra.mxu0 0.0
  %1088 = vmatprep.subr.mxu0 0.0
  %1089 = vmatpush1.msra.mxu0 0.0
  %1090 = vmatprep.subr.mxu0 0.0
  %1091 = vmatpush1.msra.mxu0 0.0
  %1092 = vmatprep.subr.mxu0 0.0
  %1093 = vmatpush1.msra.mxu0 0.0
  %1094 = vmatprep.subr.mxu0 0.0
  %1095 = vmatpush1.msra.mxu0 0.0
  %1096 = vmatprep.subr.mxu0 0.0
  %1097 = vmatpush1.msra.mxu0 0.0
  %1098 = vmatprep.subr.mxu0 0.0
  %1099 = vmatpush1.msra.mxu0 0.0
  %1100 = vmatprep.subr.mxu0 0.0
  %1101 = vmatpush1.msra.mxu0 0.0
  %1102 = vmatprep.subr.mxu0 0.0
  %1103 = vmatpush1.msra.mxu0 0.0
  %1104 = vmatprep.subr.mxu0 0.0
  %1105 = vmatpush1.msra.mxu0 0.0
  %1106 = vmatprep.subr.mxu0 0.0
  %1107 = vmatpush1.msra.mxu0 0.0
  %1108 = vmatprep.subr.mxu0 0.0
  %1109 = vmatpush1.msra.mxu0 0.0
  %1110 = vmatprep.subr.mxu0 0.0
  %1111 = vmatpush1.msra.mxu0 0.0
  %1112 = vmatprep.subr.mxu0 0.0
  %1113 = vmatpush1.msra.mxu0 0.0
  %1114 = vmatprep.subr.mxu0 0.0
  %1115 = vmatpush1.msra.mxu0 0.0
  %1116 = vmatprep.subr.mxu0 0.0
  %1117 = vmatpush1.msra.mxu0 0.0
  %1118 = vmatprep.subr.mxu0 0.0
  %1119 = vmatpush1.msra.mxu0 0.0
  %1120 = vmatprep.subr.mxu0 0.0
  %1121 = vmatpush1.msra.mxu0 0.0
  %1122 = vmatprep.subr.mxu0 0.0
  %1123 = vmatpush1.msra.mxu0 0.0
  %1124 = vmatprep.subr.mxu0 0.0
  %1125 = vmatpush1.msra.mxu0 0.0
  %1126 = vmatprep.subr.mxu0 0.0
  %1127 = vmatpush1.msra.mxu0 0.0
  %1128 = vmatprep.subr.mxu0 0.0
  %1129 = vmatpush1.msra.mxu0 0.0
  %1130 = vmatprep.subr.mxu0 0.0
  %1131 = vmatpush1.msra.mxu0 0.0
  %1132 = vmatprep.subr.mxu0 0.0
  %1133 = vmatpush1.msra.mxu0 0.0
  %1134 = vmatprep.subr.mxu0 0.0
  %1135 = vmatpush1.msra.mxu0 0.0
  %1136 = vmatprep.subr.mxu0 0.0
  %1137 = vmatpush1.msra.mxu0 0.0
  %1138 = vmatprep.mubr.f32.mxu0 0.0
  %1139 = vmatmul.mubr.f32.gmra.mrb[0].mxu0 %v1001
  %v1140 = vpop.f32.mrb[0].mxu0
  %v1141 = vadd.f32 0.0, %v1140
  %v1142 = vpop.f32.mrb[0].mxu0
  %v1143 = vadd.f32 0.0, %v1142
  %1144 = vdwg.mxu0
  %1145 = vmatprep.subr.mxu0 %v34
  %1146 = vmatpush1.msra.mxu0 %v33
  %1147 = vmatprep.subr.mxu0 0.0
  %1148 = vmatpush1.msra.mxu0 0.0
  %1149 = vmatprep.subr.mxu0 0.0
  %1150 = vmatpush1.msra.mxu0 0.0
  %1151 = vmatprep.subr.mxu0 0.0
  %1152 = vmatpush1.msra.mxu0 0.0
  %1153 = vmatprep.subr.mxu0 0.0
  %1154 = vmatpush1.msra.mxu0 0.0
  %1155 = vmatprep.subr.mxu0 0.0
  %1156 = vmatpush1.msra.mxu0 0.0
  %1157 = vmatprep.subr.mxu0 0.0
  %1158 = vmatpush1.msra.mxu0 0.0
  %1159 = vmatprep.subr.mxu0 0.0
  %1160 = vmatpush1.msra.mxu0 0.0
  %1161 = vmatprep.subr.mxu0 0.0
  %1162 = vmatpush1.msra.mxu0 0.0
  %1163 = vmatprep.subr.mxu0 0.0
  %1164 = vmatpush1.msra.mxu0 0.0
  %1165 = vmatprep.subr.mxu0 0.0
  %1166 = vmatpush1.msra.mxu0 0.0
  %1167 = vmatprep.subr.mxu0 0.0
  %1168 = vmatpush1.msra.mxu0 0.0
  %1169 = vmatprep.subr.mxu0 0.0
  %1170 = vmatpush1.msra.mxu0 0.0
  %1171 = vmatprep.subr.mxu0 0.0
  %1172 = vmatpush1.msra.mxu0 0.0
  %1173 = vmatprep.subr.mxu0 0.0
  %1174 = vmatpush1.msra.mxu0 0.0
  %1175 = vmatprep.subr.mxu0 0.0
  %1176 = vmatpush1.msra.mxu0 0.0
  %1177 = vmatprep.subr.mxu0 0.0
  %1178 = vmatpush1.msra.mxu0 0.0
  %1179 = vmatprep.subr.mxu0 0.0
  %1180 = vmatpush1.msra.mxu0 0.0
  %1181 = vmatprep.subr.mxu0 0.0
  %1182 = vmatpush1.msra.mxu0 0.0
  %1183 = vmatprep.subr.mxu0 0.0
  %1184 = vmatpush1.msra.mxu0 0.0
  %1185 = vmatprep.subr.mxu0 0.0
  %1186 = vmatpush1.msra.mxu0 0.0
  %1187 = vmatprep.subr.mxu0 0.0
  %1188 = vmatpush1.msra.mxu0 0.0
  %1189 = vmatprep.subr.mxu0 0.0
  %1190 = vmatpush1.msra.mxu0 0.0
  %1191 = vmatprep.subr.mxu0 0.0
  %1192 = vmatpush1.msra.mxu0 0.0
  %1193 = vmatprep.subr.mxu0 0.0
  %1194 = vmatpush1.msra.mxu0 0.0
  %1195 = vmatprep.subr.mxu0 0.0
  %1196 = vmatpush1.msra.mxu0 0.0
  %1197 = vmatprep.subr.mxu0 0.0
  %1198 = vmatpush1.msra.mxu0 0.0
  %1199 = vmatprep.subr.mxu0 0.0
  %1200 = vmatpush1.msra.mxu0 0.0
  %1201 = vmatprep.subr.mxu0 0.0
  %1202 = vmatpush1.msra.mxu0 0.0
  %1203 = vmatprep.subr.mxu0 0.0
  %1204 = vmatpush1.msra.mxu0 0.0
  %1205 = vmatprep.subr.mxu0 0.0
  %1206 = vmatpush1.msra.mxu0 0.0
  %1207 = vmatprep.subr.mxu0 0.0
  %1208 = vmatpush1.msra.mxu0 0.0
  %1209 = vmatprep.mubr.f32.mxu0 0.0
  %1210 = vmatmul.mubr.f32.gmra.mrb[0].mxu0 %v1001
  %v1211 = vpop.f32.mrb[0].mxu0
  %v1212 = vadd.f32 0.0, %v1211
  %v1213 = vpop.f32.mrb[0].mxu0
  %v1214 = vadd.f32 0.0, %v1213
  %1215 = vdwg.mxu0
  %v1216 = vadd.f32 %v992, %v1070
  %v1217 = vadd.f32 %v993, %v1072
  %v1218 = vadd.f32 %v994, %v1141
  %v1219 = vadd.f32 %v995, %v1143
  %v1220 = vadd.f32 %v996, %v1212
  %v1221 = vadd.f32 %v997, %v1214
  %1222 = vrot.lane.b32.xlu0 %v29, 127
  %v1223 = vpop.permute.xlu0 %1222
  %1224 = vrot.lane.b32.xlu0 %v30, 127
  %v1225 = vpop.permute.xlu0 %1224
  %1226 = vrot.lane.b32.xlu0 %v31, 127
  %v1227 = vpop.permute.xlu0 %1226
  %1228 = vrot.lane.b32.xlu0 %v32, 127
  %v1229 = vpop.permute.xlu0 %1228
  %1230 = vrot.lane.b32.xlu0 %v33, 127
  %v1231 = vpop.permute.xlu0 %1230
  %1232 = vrot.lane.b32.xlu0 %v34, 127
  %v1233 = vpop.permute.xlu0 %1232
  %vm1234 = vcmp.lt.s32.totalorder %v49, 127
  %v1235 = vsel %vm1234, %v1231, %v1233
  %v1236 = vsel %vm1234, %v1229, %v1231
  %v1237 = vsel %vm1234, %v1227, %v1229
  %v1238 = vsel %vm1234, %v1225, %v1227
  %v1239 = vsel %vm1234, %v1223, %v1225
  %v1240 = vsel %vm1234, %v1233, %v1223
  %s1241 = scalar_lea.vmem %s2, 20
  %v1242 = vld [vmem:[%s1241] sm:$0xf]
  %v1244 = vsel %vm79, %v1242, 0
  %1246 = vmatprep.subr.mxu0 %v1238
  %1247 = vmatpush1.msra.mxu0 %v1239
  %1248 = vmatprep.subr.mxu0 0.0
  %1249 = vmatpush1.msra.mxu0 0.0
  %1250 = vmatprep.subr.mxu0 0.0
  %1251 = vmatpush1.msra.mxu0 0.0
  %1252 = vmatprep.subr.mxu0 0.0
  %1253 = vmatpush1.msra.mxu0 0.0
  %1254 = vmatprep.subr.mxu0 0.0
  %1255 = vmatpush1.msra.mxu0 0.0
  %1256 = vmatprep.subr.mxu0 0.0
  %1257 = vmatpush1.msra.mxu0 0.0
  %1258 = vmatprep.subr.mxu0 0.0
  %1259 = vmatpush1.msra.mxu0 0.0
  %1260 = vmatprep.subr.mxu0 0.0
  %1261 = vmatpush1.msra.mxu0 0.0
  %1262 = vmatprep.subr.mxu0 0.0
  %1263 = vmatpush1.msra.mxu0 0.0
  %1264 = vmatprep.subr.mxu0 0.0
  %1265 = vmatpush1.msra.mxu0 0.0
  %1266 = vmatprep.subr.mxu0 0.0
  %1267 = vmatpush1.msra.mxu0 0.0
  %1268 = vmatprep.subr.mxu0 0.0
  %1269 = vmatpush1.msra.mxu0 0.0
  %1270 = vmatprep.subr.mxu0 0.0
  %1271 = vmatpush1.msra.mxu0 0.0
  %1272 = vmatprep.subr.mxu0 0.0
  %1273 = vmatpush1.msra.mxu0 0.0
  %1274 = vmatprep.subr.mxu0 0.0
  %1275 = vmatpush1.msra.mxu0 0.0
  %1276 = vmatprep.subr.mxu0 0.0
  %1277 = vmatpush1.msra.mxu0 0.0
  %1278 = vmatprep.subr.mxu0 0.0
  %1279 = vmatpush1.msra.mxu0 0.0
  %1280 = vmatprep.subr.mxu0 0.0
  %1281 = vmatpush1.msra.mxu0 0.0
  %1282 = vmatprep.subr.mxu0 0.0
  %1283 = vmatpush1.msra.mxu0 0.0
  %1284 = vmatprep.subr.mxu0 0.0
  %1285 = vmatpush1.msra.mxu0 0.0
  %1286 = vmatprep.subr.mxu0 0.0
  %1287 = vmatpush1.msra.mxu0 0.0
  %1288 = vmatprep.subr.mxu0 0.0
  %1289 = vmatpush1.msra.mxu0 0.0
  %1290 = vmatprep.subr.mxu0 0.0
  %1291 = vmatpush1.msra.mxu0 0.0
  %1292 = vmatprep.subr.mxu0 0.0
  %1293 = vmatpush1.msra.mxu0 0.0
  %1294 = vmatprep.subr.mxu0 0.0
  %1295 = vmatpush1.msra.mxu0 0.0
  %1296 = vmatprep.subr.mxu0 0.0
  %1297 = vmatpush1.msra.mxu0 0.0
  %1298 = vmatprep.subr.mxu0 0.0
  %1299 = vmatpush1.msra.mxu0 0.0
  %1300 = vmatprep.subr.mxu0 0.0
  %1301 = vmatpush1.msra.mxu0 0.0
  %1302 = vmatprep.subr.mxu0 0.0
  %1303 = vmatpush1.msra.mxu0 0.0
  %1304 = vmatprep.subr.mxu0 0.0
  %1305 = vmatpush1.msra.mxu0 0.0
  %1306 = vmatprep.subr.mxu0 0.0
  %1307 = vmatpush1.msra.mxu0 0.0
  %1308 = vmatprep.subr.mxu0 0.0
  %1309 = vmatpush1.msra.mxu0 0.0
  %1310 = vmatprep.mubr.f32.mxu0 0.0
  %1311 = vmatmul.mubr.f32.gmra.mrb[0].mxu0 %v1244
  %v1312 = vpop.f32.mrb[0].mxu0
  %v1313 = vadd.f32 0.0, %v1312
  %v1314 = vpop.f32.mrb[0].mxu0
  %v1315 = vadd.f32 0.0, %v1314
  %1316 = vdwg.mxu0
  %1317 = vmatprep.subr.mxu0 %v1236
  %1318 = vmatpush1.msra.mxu0 %v1237
  %1319 = vmatprep.subr.mxu0 0.0
  %1320 = vmatpush1.msra.mxu0 0.0
  %1321 = vmatprep.subr.mxu0 0.0
  %1322 = vmatpush1.msra.mxu0 0.0
  %1323 = vmatprep.subr.mxu0 0.0
  %1324 = vmatpush1.msra.mxu0 0.0
  %1325 = vmatprep.subr.mxu0 0.0
  %1326 = vmatpush1.msra.mxu0 0.0
  %1327 = vmatprep.subr.mxu0 0.0
  %1328 = vmatpush1.msra.mxu0 0.0
  %1329 = vmatprep.subr.mxu0 0.0
  %1330 = vmatpush1.msra.mxu0 0.0
  %1331 = vmatprep.subr.mxu0 0.0
  %1332 = vmatpush1.msra.mxu0 0.0
  %1333 = vmatprep.subr.mxu0 0.0
  %1334 = vmatpush1.msra.mxu0 0.0
  %1335 = vmatprep.subr.mxu0 0.0
  %1336 = vmatpush1.msra.mxu0 0.0
  %1337 = vmatprep.subr.mxu0 0.0
  %1338 = vmatpush1.msra.mxu0 0.0
  %1339 = vmatprep.subr.mxu0 0.0
  %1340 = vmatpush1.msra.mxu0 0.0
  %1341 = vmatprep.subr.mxu0 0.0
  %1342 = vmatpush1.msra.mxu0 0.0
  %1343 = vmatprep.subr.mxu0 0.0
  %1344 = vmatpush1.msra.mxu0 0.0
  %1345 = vmatprep.subr.mxu0 0.0
  %1346 = vmatpush1.msra.mxu0 0.0
  %1347 = vmatprep.subr.mxu0 0.0
  %1348 = vmatpush1.msra.mxu0 0.0
  %1349 = vmatprep.subr.mxu0 0.0
  %1350 = vmatpush1.msra.mxu0 0.0
  %1351 = vmatprep.subr.mxu0 0.0
  %1352 = vmatpush1.msra.mxu0 0.0
  %1353 = vmatprep.subr.mxu0 0.0
  %1354 = vmatpush1.msra.mxu0 0.0
  %1355 = vmatprep.subr.mxu0 0.0
  %1356 = vmatpush1.msra.mxu0 0.0
  %1357 = vmatprep.subr.mxu0 0.0
  %1358 = vmatpush1.msra.mxu0 0.0
  %1359 = vmatprep.subr.mxu0 0.0
  %1360 = vmatpush1.msra.mxu0 0.0
  %1361 = vmatprep.subr.mxu0 0.0
  %1362 = vmatpush1.msra.mxu0 0.0
  %1363 = vmatprep.subr.mxu0 0.0
  %1364 = vmatpush1.msra.mxu0 0.0
  %1365 = vmatprep.subr.mxu0 0.0
  %1366 = vmatpush1.msra.mxu0 0.0
  %1367 = vmatprep.subr.mxu0 0.0
  %1368 = vmatpush1.msra.mxu0 0.0
  %1369 = vmatprep.subr.mxu0 0.0
  %1370 = vmatpush1.msra.mxu0 0.0
  %1371 = vmatprep.subr.mxu0 0.0
  %1372 = vmatpush1.msra.mxu0 0.0
  %1373 = vmatprep.subr.mxu0 0.0
  %1374 = vmatpush1.msra.mxu0 0.0
  %1375 = vmatprep.subr.mxu0 0.0
  %1376 = vmatpush1.msra.mxu0 0.0
  %1377 = vmatprep.subr.mxu0 0.0
  %1378 = vmatpush1.msra.mxu0 0.0
  %1379 = vmatprep.subr.mxu0 0.0
  %1380 = vmatpush1.msra.mxu0 0.0
  %1381 = vmatprep.mubr.f32.mxu0 0.0
  %1382 = vmatmul.mubr.f32.gmra.mrb[0].mxu0 %v1244
  %v1383 = vpop.f32.mrb[0].mxu0
  %v1384 = vadd.f32 0.0, %v1383
  %v1385 = vpop.f32.mrb[0].mxu0
  %v1386 = vadd.f32 0.0, %v1385
  %1387 = vdwg.mxu0
  %1388 = vmatprep.subr.mxu0 %v1240
  %1389 = vmatpush1.msra.mxu0 %v1235
  %1390 = vmatprep.subr.mxu0 0.0
  %1391 = vmatpush1.msra.mxu0 0.0
  %1392 = vmatprep.subr.mxu0 0.0
  %1393 = vmatpush1.msra.mxu0 0.0
  %1394 = vmatprep.subr.mxu0 0.0
  %1395 = vmatpush1.msra.mxu0 0.0
  %1396 = vmatprep.subr.mxu0 0.0
  %1397 = vmatpush1.msra.mxu0 0.0
  %1398 = vmatprep.subr.mxu0 0.0
  %1399 = vmatpush1.msra.mxu0 0.0
  %1400 = vmatprep.subr.mxu0 0.0
  %1401 = vmatpush1.msra.mxu0 0.0
  %1402 = vmatprep.subr.mxu0 0.0
  %1403 = vmatpush1.msra.mxu0 0.0
  %1404 = vmatprep.subr.mxu0 0.0
  %1405 = vmatpush1.msra.mxu0 0.0
  %1406 = vmatprep.subr.mxu0 0.0
  %1407 = vmatpush1.msra.mxu0 0.0
  %1408 = vmatprep.subr.mxu0 0.0
  %1409 = vmatpush1.msra.mxu0 0.0
  %1410 = vmatprep.subr.mxu0 0.0
  %1411 = vmatpush1.msra.mxu0 0.0
  %1412 = vmatprep.subr.mxu0 0.0
  %1413 = vmatpush1.msra.mxu0 0.0
  %1414 = vmatprep.subr.mxu0 0.0
  %1415 = vmatpush1.msra.mxu0 0.0
  %1416 = vmatprep.subr.mxu0 0.0
  %1417 = vmatpush1.msra.mxu0 0.0
  %1418 = vmatprep.subr.mxu0 0.0
  %1419 = vmatpush1.msra.mxu0 0.0
  %1420 = vmatprep.subr.mxu0 0.0
  %1421 = vmatpush1.msra.mxu0 0.0
  %1422 = vmatprep.subr.mxu0 0.0
  %1423 = vmatpush1.msra.mxu0 0.0
  %1424 = vmatprep.subr.mxu0 0.0
  %1425 = vmatpush1.msra.mxu0 0.0
  %1426 = vmatprep.subr.mxu0 0.0
  %1427 = vmatpush1.msra.mxu0 0.0
  %1428 = vmatprep.subr.mxu0 0.0
  %1429 = vmatpush1.msra.mxu0 0.0
  %1430 = vmatprep.subr.mxu0 0.0
  %1431 = vmatpush1.msra.mxu0 0.0
  %1432 = vmatprep.subr.mxu0 0.0
  %1433 = vmatpush1.msra.mxu0 0.0
  %1434 = vmatprep.subr.mxu0 0.0
  %1435 = vmatpush1.msra.mxu0 0.0
  %1436 = vmatprep.subr.mxu0 0.0
  %1437 = vmatpush1.msra.mxu0 0.0
  %1438 = vmatprep.subr.mxu0 0.0
  %1439 = vmatpush1.msra.mxu0 0.0
  %1440 = vmatprep.subr.mxu0 0.0
  %1441 = vmatpush1.msra.mxu0 0.0
  %1442 = vmatprep.subr.mxu0 0.0
  %1443 = vmatpush1.msra.mxu0 0.0
  %1444 = vmatprep.subr.mxu0 0.0
  %1445 = vmatpush1.msra.mxu0 0.0
  %1446 = vmatprep.subr.mxu0 0.0
  %1447 = vmatpush1.msra.mxu0 0.0
  %1448 = vmatprep.subr.mxu0 0.0
  %1449 = vmatpush1.msra.mxu0 0.0
  %1450 = vmatprep.subr.mxu0 0.0
  %1451 = vmatpush1.msra.mxu0 0.0
  %1452 = vmatprep.mubr.f32.mxu0 0.0
  %1453 = vmatmul.mubr.f32.gmra.mrb[0].mxu0 %v1244
  %v1454 = vpop.f32.mrb[0].mxu0
  %v1455 = vadd.f32 0.0, %v1454
  %v1456 = vpop.f32.mrb[0].mxu0
  %v1457 = vadd.f32 0.0, %v1456
  %1458 = vdwg.mxu0
  %v1459 = vadd.f32 %v1216, %v1313
  %v1460 = vadd.f32 %v1217, %v1315
  %v1461 = vadd.f32 %v1218, %v1384
  %v1462 = vadd.f32 %v1219, %v1386
  %v1463 = vadd.f32 %v1220, %v1455
  %v1464 = vadd.f32 %v1221, %v1457
  %1465 = vrot.lane.b32.xlu0 %v29, 111
  %v1466 = vpop.permute.xlu0 %1465
  %1467 = vrot.lane.b32.xlu0 %v30, 111
  %v1468 = vpop.permute.xlu0 %1467
  %1469 = vrot.lane.b32.xlu0 %v31, 111
  %v1470 = vpop.permute.xlu0 %1469
  %1471 = vrot.lane.b32.xlu0 %v32, 111
  %v1472 = vpop.permute.xlu0 %1471
  %1473 = vrot.lane.b32.xlu0 %v33, 111
  %v1474 = vpop.permute.xlu0 %1473
  %1475 = vrot.lane.b32.xlu0 %v34, 111
  %v1476 = vpop.permute.xlu0 %1475
  %vm1477 = vcmp.lt.s32.totalorder %v49, 111
  %v1478 = vsel %vm1477, %v1474, %v1476
  %v1479 = vsel %vm1477, %v1472, %v1474
  %v1480 = vsel %vm1477, %v1470, %v1472
  %v1481 = vsel %vm1477, %v1468, %v1470
  %v1482 = vsel %vm1477, %v1466, %v1468
  %v1483 = vsel %vm1477, %v1476, %v1466
  %s1484 = scalar_lea.vmem %s2, 24
  %v1485 = vld [vmem:[%s1484] sm:$0xf]
  %v1487 = vsel %vm79, %v1485, 0
  %1489 = vmatprep.subr.mxu0 %v1481
  %1490 = vmatpush1.msra.mxu0 %v1482
  %1491 = vmatprep.subr.mxu0 0.0
  %1492 = vmatpush1.msra.mxu0 0.0
  %1493 = vmatprep.subr.mxu0 0.0
  %1494 = vmatpush1.msra.mxu0 0.0
  %1495 = vmatprep.subr.mxu0 0.0
  %1496 = vmatpush1.msra.mxu0 0.0
  %1497 = vmatprep.subr.mxu0 0.0
  %1498 = vmatpush1.msra.mxu0 0.0
  %1499 = vmatprep.subr.mxu0 0.0
  %1500 = vmatpush1.msra.mxu0 0.0
  %1501 = vmatprep.subr.mxu0 0.0
  %1502 = vmatpush1.msra.mxu0 0.0
  %1503 = vmatprep.subr.mxu0 0.0
  %1504 = vmatpush1.msra.mxu0 0.0
  %1505 = vmatprep.subr.mxu0 0.0
  %1506 = vmatpush1.msra.mxu0 0.0
  %1507 = vmatprep.subr.mxu0 0.0
  %1508 = vmatpush1.msra.mxu0 0.0
  %1509 = vmatprep.subr.mxu0 0.0
  %1510 = vmatpush1.msra.mxu0 0.0
  %1511 = vmatprep.subr.mxu0 0.0
  %1512 = vmatpush1.msra.mxu0 0.0
  %1513 = vmatprep.subr.mxu0 0.0
  %1514 = vmatpush1.msra.mxu0 0.0
  %1515 = vmatprep.subr.mxu0 0.0
  %1516 = vmatpush1.msra.mxu0 0.0
  %1517 = vmatprep.subr.mxu0 0.0
  %1518 = vmatpush1.msra.mxu0 0.0
  %1519 = vmatprep.subr.mxu0 0.0
  %1520 = vmatpush1.msra.mxu0 0.0
  %1521 = vmatprep.subr.mxu0 0.0
  %1522 = vmatpush1.msra.mxu0 0.0
  %1523 = vmatprep.subr.mxu0 0.0
  %1524 = vmatpush1.msra.mxu0 0.0
  %1525 = vmatprep.subr.mxu0 0.0
  %1526 = vmatpush1.msra.mxu0 0.0
  %1527 = vmatprep.subr.mxu0 0.0
  %1528 = vmatpush1.msra.mxu0 0.0
  %1529 = vmatprep.subr.mxu0 0.0
  %1530 = vmatpush1.msra.mxu0 0.0
  %1531 = vmatprep.subr.mxu0 0.0
  %1532 = vmatpush1.msra.mxu0 0.0
  %1533 = vmatprep.subr.mxu0 0.0
  %1534 = vmatpush1.msra.mxu0 0.0
  %1535 = vmatprep.subr.mxu0 0.0
  %1536 = vmatpush1.msra.mxu0 0.0
  %1537 = vmatprep.subr.mxu0 0.0
  %1538 = vmatpush1.msra.mxu0 0.0
  %1539 = vmatprep.subr.mxu0 0.0
  %1540 = vmatpush1.msra.mxu0 0.0
  %1541 = vmatprep.subr.mxu0 0.0
  %1542 = vmatpush1.msra.mxu0 0.0
  %1543 = vmatprep.subr.mxu0 0.0
  %1544 = vmatpush1.msra.mxu0 0.0
  %1545 = vmatprep.subr.mxu0 0.0
  %1546 = vmatpush1.msra.mxu0 0.0
  %1547 = vmatprep.subr.mxu0 0.0
  %1548 = vmatpush1.msra.mxu0 0.0
  %1549 = vmatprep.subr.mxu0 0.0
  %1550 = vmatpush1.msra.mxu0 0.0
  %1551 = vmatprep.subr.mxu0 0.0
  %1552 = vmatpush1.msra.mxu0 0.0
  %1553 = vmatprep.mubr.f32.mxu0 0.0
  %1554 = vmatmul.mubr.f32.gmra.mrb[0].mxu0 %v1487
  %v1555 = vpop.f32.mrb[0].mxu0
  %v1556 = vadd.f32 0.0, %v1555
  %v1557 = vpop.f32.mrb[0].mxu0
  %v1558 = vadd.f32 0.0, %v1557
  %1559 = vdwg.mxu0
  %1560 = vmatprep.subr.mxu0 %v1479
  %1561 = vmatpush1.msra.mxu0 %v1480
  %1562 = vmatprep.subr.mxu0 0.0
  %1563 = vmatpush1.msra.mxu0 0.0
  %1564 = vmatprep.subr.mxu0 0.0
  %1565 = vmatpush1.msra.mxu0 0.0
  %1566 = vmatprep.subr.mxu0 0.0
  %1567 = vmatpush1.msra.mxu0 0.0
  %1568 = vmatprep.subr.mxu0 0.0
  %1569 = vmatpush1.msra.mxu0 0.0
  %1570 = vmatprep.subr.mxu0 0.0
  %1571 = vmatpush1.msra.mxu0 0.0
  %1572 = vmatprep.subr.mxu0 0.0
  %1573 = vmatpush1.msra.mxu0 0.0
  %1574 = vmatprep.subr.mxu0 0.0
  %1575 = vmatpush1.msra.mxu0 0.0
  %1576 = vmatprep.subr.mxu0 0.0
  %1577 = vmatpush1.msra.mxu0 0.0
  %1578 = vmatprep.subr.mxu0 0.0
  %1579 = vmatpush1.msra.mxu0 0.0
  %1580 = vmatprep.subr.mxu0 0.0
  %1581 = vmatpush1.msra.mxu0 0.0
  %1582 = vmatprep.subr.mxu0 0.0
  %1583 = vmatpush1.msra.mxu0 0.0
  %1584 = vmatprep.subr.mxu0 0.0
  %1585 = vmatpush1.msra.mxu0 0.0
  %1586 = vmatprep.subr.mxu0 0.0
  %1587 = vmatpush1.msra.mxu0 0.0
  %1588 = vmatprep.subr.mxu0 0.0
  %1589 = vmatpush1.msra.mxu0 0.0
  %1590 = vmatprep.subr.mxu0 0.0
  %1591 = vmatpush1.msra.mxu0 0.0
  %1592 = vmatprep.subr.mxu0 0.0
  %1593 = vmatpush1.msra.mxu0 0.0
  %1594 = vmatprep.subr.mxu0 0.0
  %1595 = vmatpush1.msra.mxu0 0.0
  %1596 = vmatprep.subr.mxu0 0.0
  %1597 = vmatpush1.msra.mxu0 0.0
  %1598 = vmatprep.subr.mxu0 0.0
  %1599 = vmatpush1.msra.mxu0 0.0
  %1600 = vmatprep.subr.mxu0 0.0
  %1601 = vmatpush1.msra.mxu0 0.0
  %1602 = vmatprep.subr.mxu0 0.0
  %1603 = vmatpush1.msra.mxu0 0.0
  %1604 = vmatprep.subr.mxu0 0.0
  %1605 = vmatpush1.msra.mxu0 0.0
  %1606 = vmatprep.subr.mxu0 0.0
  %1607 = vmatpush1.msra.mxu0 0.0
  %1608 = vmatprep.subr.mxu0 0.0
  %1609 = vmatpush1.msra.mxu0 0.0
  %1610 = vmatprep.subr.mxu0 0.0
  %1611 = vmatpush1.msra.mxu0 0.0
  %1612 = vmatprep.subr.mxu0 0.0
  %1613 = vmatpush1.msra.mxu0 0.0
  %1614 = vmatprep.subr.mxu0 0.0
  %1615 = vmatpush1.msra.mxu0 0.0
  %1616 = vmatprep.subr.mxu0 0.0
  %1617 = vmatpush1.msra.mxu0 0.0
  %1618 = vmatprep.subr.mxu0 0.0
  %1619 = vmatpush1.msra.mxu0 0.0
  %1620 = vmatprep.subr.mxu0 0.0
  %1621 = vmatpush1.msra.mxu0 0.0
  %1622 = vmatprep.subr.mxu0 0.0
  %1623 = vmatpush1.msra.mxu0 0.0
  %1624 = vmatprep.mubr.f32.mxu0 0.0
  %1625 = vmatmul.mubr.f32.gmra.mrb[0].mxu0 %v1487
  %v1626 = vpop.f32.mrb[0].mxu0
  %v1627 = vadd.f32 0.0, %v1626
  %v1628 = vpop.f32.mrb[0].mxu0
  %v1629 = vadd.f32 0.0, %v1628
  %1630 = vdwg.mxu0
  %1631 = vmatprep.subr.mxu0 %v1483
  %1632 = vmatpush1.msra.mxu0 %v1478
  %1633 = vmatprep.subr.mxu0 0.0
  %1634 = vmatpush1.msra.mxu0 0.0
  %1635 = vmatprep.subr.mxu0 0.0
  %1636 = vmatpush1.msra.mxu0 0.0
  %1637 = vmatprep.subr.mxu0 0.0
  %1638 = vmatpush1.msra.mxu0 0.0
  %1639 = vmatprep.subr.mxu0 0.0
  %1640 = vmatpush1.msra.mxu0 0.0
  %1641 = vmatprep.subr.mxu0 0.0
  %1642 = vmatpush1.msra.mxu0 0.0
  %1643 = vmatprep.subr.mxu0 0.0
  %1644 = vmatpush1.msra.mxu0 0.0
  %1645 = vmatprep.subr.mxu0 0.0
  %1646 = vmatpush1.msra.mxu0 0.0
  %1647 = vmatprep.subr.mxu0 0.0
  %1648 = vmatpush1.msra.mxu0 0.0
  %1649 = vmatprep.subr.mxu0 0.0
  %1650 = vmatpush1.msra.mxu0 0.0
  %1651 = vmatprep.subr.mxu0 0.0
  %1652 = vmatpush1.msra.mxu0 0.0
  %1653 = vmatprep.subr.mxu0 0.0
  %1654 = vmatpush1.msra.mxu0 0.0
  %1655 = vmatprep.subr.mxu0 0.0
  %1656 = vmatpush1.msra.mxu0 0.0
  %1657 = vmatprep.subr.mxu0 0.0
  %1658 = vmatpush1.msra.mxu0 0.0
  %1659 = vmatprep.subr.mxu0 0.0
  %1660 = vmatpush1.msra.mxu0 0.0
  %1661 = vmatprep.subr.mxu0 0.0
  %1662 = vmatpush1.msra.mxu0 0.0
  %1663 = vmatprep.subr.mxu0 0.0
  %1664 = vmatpush1.msra.mxu0 0.0
  %1665 = vmatprep.subr.mxu0 0.0
  %1666 = vmatpush1.msra.mxu0 0.0
  %1667 = vmatprep.subr.mxu0 0.0
  %1668 = vmatpush1.msra.mxu0 0.0
  %1669 = vmatprep.subr.mxu0 0.0
  %1670 = vmatpush1.msra.mxu0 0.0
  %1671 = vmatprep.subr.mxu0 0.0
  %1672 = vmatpush1.msra.mxu0 0.0
  %1673 = vmatprep.subr.mxu0 0.0
  %1674 = vmatpush1.msra.mxu0 0.0
  %1675 = vmatprep.subr.mxu0 0.0
  %1676 = vmatpush1.msra.mxu0 0.0
  %1677 = vmatprep.subr.mxu0 0.0
  %1678 = vmatpush1.msra.mxu0 0.0
  %1679 = vmatprep.subr.mxu0 0.0
  %1680 = vmatpush1.msra.mxu0 0.0
  %1681 = vmatprep.subr.mxu0 0.0
  %1682 = vmatpush1.msra.mxu0 0.0
  %1683 = vmatprep.subr.mxu0 0.0
  %1684 = vmatpush1.msra.mxu0 0.0
  %1685 = vmatprep.subr.mxu0 0.0
  %1686 = vmatpush1.msra.mxu0 0.0
  %1687 = vmatprep.subr.mxu0 0.0
  %1688 = vmatpush1.msra.mxu0 0.0
  %1689 = vmatprep.subr.mxu0 0.0
  %1690 = vmatpush1.msra.mxu0 0.0
  %1691 = vmatprep.subr.mxu0 0.0
  %1692 = vmatpush1.msra.mxu0 0.0
  %1693 = vmatprep.subr.mxu0 0.0
  %1694 = vmatpush1.msra.mxu0 0.0
  %1695 = vmatprep.mubr.f32.mxu0 0.0
  %1696 = vmatmul.mubr.f32.gmra.mrb[0].mxu0 %v1487
  %v1697 = vpop.f32.mrb[0].mxu0
  %v1698 = vadd.f32 0.0, %v1697
  %v1699 = vpop.f32.mrb[0].mxu0
  %v1700 = vadd.f32 0.0, %v1699
  %1701 = vdwg.mxu0
  %v1702 = vadd.f32 %v1459, %v1556
  %v1703 = vadd.f32 %v1460, %v1558
  %v1704 = vadd.f32 %v1461, %v1627
  %v1705 = vadd.f32 %v1462, %v1629
  %v1706 = vadd.f32 %v1463, %v1698
  %v1707 = vadd.f32 %v1464, %v1700
  %1708 = vrot.lane.b32.xlu0 %v29, 110
  %v1709 = vpop.permute.xlu0 %1708
  %1710 = vrot.lane.b32.xlu0 %v30, 110
  %v1711 = vpop.permute.xlu0 %1710
  %1712 = vrot.lane.b32.xlu0 %v31, 110
  %v1713 = vpop.permute.xlu0 %1712
  %1714 = vrot.lane.b32.xlu0 %v32, 110
  %v1715 = vpop.permute.xlu0 %1714
  %1716 = vrot.lane.b32.xlu0 %v33, 110
  %v1717 = vpop.permute.xlu0 %1716
  %1718 = vrot.lane.b32.xlu0 %v34, 110
  %v1719 = vpop.permute.xlu0 %1718
  %vm1720 = vcmp.lt.s32.totalorder %v49, 110
  %v1721 = vsel %vm1720, %v1717, %v1719
  %v1722 = vsel %vm1720, %v1715, %v1717
  %v1723 = vsel %vm1720, %v1713, %v1715
  %v1724 = vsel %vm1720, %v1711, %v1713
  %v1725 = vsel %vm1720, %v1709, %v1711
  %v1726 = vsel %vm1720, %v1719, %v1709
  %s1727 = scalar_lea.vmem %s2, 28
  %v1728 = vld [vmem:[%s1727] sm:$0xf]
  %v1730 = vsel %vm79, %v1728, 0
  %1732 = vmatprep.subr.mxu0 %v1724
  %1733 = vmatpush1.msra.mxu0 %v1725
  %1734 = vmatprep.subr.mxu0 0.0
  %1735 = vmatpush1.msra.mxu0 0.0
  %1736 = vmatprep.subr.mxu0 0.0
  %1737 = vmatpush1.msra.mxu0 0.0
  %1738 = vmatprep.subr.mxu0 0.0
  %1739 = vmatpush1.msra.mxu0 0.0
  %1740 = vmatprep.subr.mxu0 0.0
  %1741 = vmatpush1.msra.mxu0 0.0
  %1742 = vmatprep.subr.mxu0 0.0
  %1743 = vmatpush1.msra.mxu0 0.0
  %1744 = vmatprep.subr.mxu0 0.0
  %1745 = vmatpush1.msra.mxu0 0.0
  %1746 = vmatprep.subr.mxu0 0.0
  %1747 = vmatpush1.msra.mxu0 0.0
  %1748 = vmatprep.subr.mxu0 0.0
  %1749 = vmatpush1.msra.mxu0 0.0
  %1750 = vmatprep.subr.mxu0 0.0
  %1751 = vmatpush1.msra.mxu0 0.0
  %1752 = vmatprep.subr.mxu0 0.0
  %1753 = vmatpush1.msra.mxu0 0.0
  %1754 = vmatprep.subr.mxu0 0.0
  %1755 = vmatpush1.msra.mxu0 0.0
  %1756 = vmatprep.subr.mxu0 0.0
  %1757 = vmatpush1.msra.mxu0 0.0
  %1758 = vmatprep.subr.mxu0 0.0
  %1759 = vmatpush1.msra.mxu0 0.0
  %1760 = vmatprep.subr.mxu0 0.0
  %1761 = vmatpush1.msra.mxu0 0.0
  %1762 = vmatprep.subr.mxu0 0.0
  %1763 = vmatpush1.msra.mxu0 0.0
  %1764 = vmatprep.subr.mxu0 0.0
  %1765 = vmatpush1.msra.mxu0 0.0
  %1766 = vmatprep.subr.mxu0 0.0
  %1767 = vmatpush1.msra.mxu0 0.0
  %1768 = vmatprep.subr.mxu0 0.0
  %1769 = vmatpush1.msra.mxu0 0.0
  %1770 = vmatprep.subr.mxu0 0.0
  %1771 = vmatpush1.msra.mxu0 0.0
  %1772 = vmatprep.subr.mxu0 0.0
  %1773 = vmatpush1.msra.mxu0 0.0
  %1774 = vmatprep.subr.mxu0 0.0
  %1775 = vmatpush1.msra.mxu0 0.0
  %1776 = vmatprep.subr.mxu0 0.0
  %1777 = vmatpush1.msra.mxu0 0.0
  %1778 = vmatprep.subr.mxu0 0.0
  %1779 = vmatpush1.msra.mxu0 0.0
  %1780 = vmatprep.subr.mxu0 0.0
  %1781 = vmatpush1.msra.mxu0 0.0
  %1782 = vmatprep.subr.mxu0 0.0
  %1783 = vmatpush1.msra.mxu0 0.0
  %1784 = vmatprep.subr.mxu0 0.0
  %1785 = vmatpush1.msra.mxu0 0.0
  %1786 = vmatprep.subr.mxu0 0.0
  %1787 = vmatpush1.msra.mxu0 0.0
  %1788 = vmatprep.subr.mxu0 0.0
  %1789 = vmatpush1.msra.mxu0 0.0
  %1790 = vmatprep.subr.mxu0 0.0
  %1791 = vmatpush1.msra.mxu0 0.0
  %1792 = vmatprep.subr.mxu0 0.0
  %1793 = vmatpush1.msra.mxu0 0.0
  %1794 = vmatprep.subr.mxu0 0.0
  %1795 = vmatpush1.msra.mxu0 0.0
  %1796 = vmatprep.mubr.f32.mxu0 0.0
  %1797 = vmatmul.mubr.f32.gmra.mrb[0].mxu0 %v1730
  %v1798 = vpop.f32.mrb[0].mxu0
  %v1799 = vadd.f32 0.0, %v1798
  %v1800 = vpop.f32.mrb[0].mxu0
  %v1801 = vadd.f32 0.0, %v1800
  %1802 = vdwg.mxu0
  %1803 = vmatprep.subr.mxu0 %v1722
  %1804 = vmatpush1.msra.mxu0 %v1723
  %1805 = vmatprep.subr.mxu0 0.0
  %1806 = vmatpush1.msra.mxu0 0.0
  %1807 = vmatprep.subr.mxu0 0.0
  %1808 = vmatpush1.msra.mxu0 0.0
  %1809 = vmatprep.subr.mxu0 0.0
  %1810 = vmatpush1.msra.mxu0 0.0
  %1811 = vmatprep.subr.mxu0 0.0
  %1812 = vmatpush1.msra.mxu0 0.0
  %1813 = vmatprep.subr.mxu0 0.0
  %1814 = vmatpush1.msra.mxu0 0.0
  %1815 = vmatprep.subr.mxu0 0.0
  %1816 = vmatpush1.msra.mxu0 0.0
  %1817 = vmatprep.subr.mxu0 0.0
  %1818 = vmatpush1.msra.mxu0 0.0
  %1819 = vmatprep.subr.mxu0 0.0
  %1820 = vmatpush1.msra.mxu0 0.0
  %1821 = vmatprep.subr.mxu0 0.0
  %1822 = vmatpush1.msra.mxu0 0.0
  %1823 = vmatprep.subr.mxu0 0.0
  %1824 = vmatpush1.msra.mxu0 0.0
  %1825 = vmatprep.subr.mxu0 0.0
  %1826 = vmatpush1.msra.mxu0 0.0
  %1827 = vmatprep.subr.mxu0 0.0
  %1828 = vmatpush1.msra.mxu0 0.0
  %1829 = vmatprep.subr.mxu0 0.0
  %1830 = vmatpush1.msra.mxu0 0.0
  %1831 = vmatprep.subr.mxu0 0.0
  %1832 = vmatpush1.msra.mxu0 0.0
  %1833 = vmatprep.subr.mxu0 0.0
  %1834 = vmatpush1.msra.mxu0 0.0
  %1835 = vmatprep.subr.mxu0 0.0
  %1836 = vmatpush1.msra.mxu0 0.0
  %1837 = vmatprep.subr.mxu0 0.0
  %1838 = vmatpush1.msra.mxu0 0.0
  %1839 = vmatprep.subr.mxu0 0.0
  %1840 = vmatpush1.msra.mxu0 0.0
  %1841 = vmatprep.subr.mxu0 0.0
  %1842 = vmatpush1.msra.mxu0 0.0
  %1843 = vmatprep.subr.mxu0 0.0
  %1844 = vmatpush1.msra.mxu0 0.0
  %1845 = vmatprep.subr.mxu0 0.0
  %1846 = vmatpush1.msra.mxu0 0.0
  %1847 = vmatprep.subr.mxu0 0.0
  %1848 = vmatpush1.msra.mxu0 0.0
  %1849 = vmatprep.subr.mxu0 0.0
  %1850 = vmatpush1.msra.mxu0 0.0
  %1851 = vmatprep.subr.mxu0 0.0
  %1852 = vmatpush1.msra.mxu0 0.0
  %1853 = vmatprep.subr.mxu0 0.0
  %1854 = vmatpush1.msra.mxu0 0.0
  %1855 = vmatprep.subr.mxu0 0.0
  %1856 = vmatpush1.msra.mxu0 0.0
  %1857 = vmatprep.subr.mxu0 0.0
  %1858 = vmatpush1.msra.mxu0 0.0
  %1859 = vmatprep.subr.mxu0 0.0
  %1860 = vmatpush1.msra.mxu0 0.0
  %1861 = vmatprep.subr.mxu0 0.0
  %1862 = vmatpush1.msra.mxu0 0.0
  %1863 = vmatprep.subr.mxu0 0.0
  %1864 = vmatpush1.msra.mxu0 0.0
  %1865 = vmatprep.subr.mxu0 0.0
  %1866 = vmatpush1.msra.mxu0 0.0
  %1867 = vmatprep.mubr.f32.mxu0 0.0
  %1868 = vmatmul.mubr.f32.gmra.mrb[0].mxu0 %v1730
  %v1869 = vpop.f32.mrb[0].mxu0
  %v1870 = vadd.f32 0.0, %v1869
  %v1871 = vpop.f32.mrb[0].mxu0
  %v1872 = vadd.f32 0.0, %v1871
  %1873 = vdwg.mxu0
  %1874 = vmatprep.subr.mxu0 %v1726
  %1875 = vmatpush1.msra.mxu0 %v1721
  %1876 = vmatprep.subr.mxu0 0.0
  %1877 = vmatpush1.msra.mxu0 0.0
  %1878 = vmatprep.subr.mxu0 0.0
  %1879 = vmatpush1.msra.mxu0 0.0
  %1880 = vmatprep.subr.mxu0 0.0
  %1881 = vmatpush1.msra.mxu0 0.0
  %1882 = vmatprep.subr.mxu0 0.0
  %1883 = vmatpush1.msra.mxu0 0.0
  %1884 = vmatprep.subr.mxu0 0.0
  %1885 = vmatpush1.msra.mxu0 0.0
  %1886 = vmatprep.subr.mxu0 0.0
  %1887 = vmatpush1.msra.mxu0 0.0
  %1888 = vmatprep.subr.mxu0 0.0
  %1889 = vmatpush1.msra.mxu0 0.0
  %1890 = vmatprep.subr.mxu0 0.0
  %1891 = vmatpush1.msra.mxu0 0.0
  %1892 = vmatprep.subr.mxu0 0.0
  %1893 = vmatpush1.msra.mxu0 0.0
  %1894 = vmatprep.subr.mxu0 0.0
  %1895 = vmatpush1.msra.mxu0 0.0
  %1896 = vmatprep.subr.mxu0 0.0
  %1897 = vmatpush1.msra.mxu0 0.0
  %1898 = vmatprep.subr.mxu0 0.0
  %1899 = vmatpush1.msra.mxu0 0.0
  %1900 = vmatprep.subr.mxu0 0.0
  %1901 = vmatpush1.msra.mxu0 0.0
  %1902 = vmatprep.subr.mxu0 0.0
  %1903 = vmatpush1.msra.mxu0 0.0
  %1904 = vmatprep.subr.mxu0 0.0
  %1905 = vmatpush1.msra.mxu0 0.0
  %1906 = vmatprep.subr.mxu0 0.0
  %1907 = vmatpush1.msra.mxu0 0.0
  %1908 = vmatprep.subr.mxu0 0.0
  %1909 = vmatpush1.msra.mxu0 0.0
  %1910 = vmatprep.subr.mxu0 0.0
  %1911 = vmatpush1.msra.mxu0 0.0
  %1912 = vmatprep.subr.mxu0 0.0
  %1913 = vmatpush1.msra.mxu0 0.0
  %1914 = vmatprep.subr.mxu0 0.0
  %1915 = vmatpush1.msra.mxu0 0.0
  %1916 = vmatprep.subr.mxu0 0.0
  %1917 = vmatpush1.msra.mxu0 0.0
  %1918 = vmatprep.subr.mxu0 0.0
  %1919 = vmatpush1.msra.mxu0 0.0
  %1920 = vmatprep.subr.mxu0 0.0
  %1921 = vmatpush1.msra.mxu0 0.0
  %1922 = vmatprep.subr.mxu0 0.0
  %1923 = vmatpush1.msra.mxu0 0.0
  %1924 = vmatprep.subr.mxu0 0.0
  %1925 = vmatpush1.msra.mxu0 0.0
  %1926 = vmatprep.subr.mxu0 0.0
  %1927 = vmatpush1.msra.mxu0 0.0
  %1928 = vmatprep.subr.mxu0 0.0
  %1929 = vmatpush1.msra.mxu0 0.0
  %1930 = vmatprep.subr.mxu0 0.0
  %1931 = vmatpush1.msra.mxu0 0.0
  %1932 = vmatprep.subr.mxu0 0.0
  %1933 = vmatpush1.msra.mxu0 0.0
  %1934 = vmatprep.subr.mxu0 0.0
  %1935 = vmatpush1.msra.mxu0 0.0
  %1936 = vmatprep.subr.mxu0 0.0
  %1937 = vmatpush1.msra.mxu0 0.0
  %1938 = vmatprep.mubr.f32.mxu0 0.0
  %1939 = vmatmul.mubr.f32.gmra.mrb[0].mxu0 %v1730
  %v1940 = vpop.f32.mrb[0].mxu0
  %v1941 = vadd.f32 0.0, %v1940
  %v1942 = vpop.f32.mrb[0].mxu0
  %v1943 = vadd.f32 0.0, %v1942
  %1944 = vdwg.mxu0
  %v1945 = vadd.f32 %v1702, %v1799
  %v1946 = vadd.f32 %v1703, %v1801
  %v1947 = vadd.f32 %v1704, %v1870
  %v1948 = vadd.f32 %v1705, %v1872
  %v1949 = vadd.f32 %v1706, %v1941
  %v1950 = vadd.f32 %v1707, %v1943
  %1951 = vrot.lane.b32.xlu0 %v29, 109
  %v1952 = vpop.permute.xlu0 %1951
  %1953 = vrot.lane.b32.xlu0 %v30, 109
  %v1954 = vpop.permute.xlu0 %1953
  %1955 = vrot.lane.b32.xlu0 %v31, 109
  %v1956 = vpop.permute.xlu0 %1955
  %1957 = vrot.lane.b32.xlu0 %v32, 109
  %v1958 = vpop.permute.xlu0 %1957
  %1959 = vrot.lane.b32.xlu0 %v33, 109
  %v1960 = vpop.permute.xlu0 %1959
  %1961 = vrot.lane.b32.xlu0 %v34, 109
  %v1962 = vpop.permute.xlu0 %1961
  %vm1963 = vcmp.lt.s32.totalorder %v49, 109
  %v1964 = vsel %vm1963, %v1960, %v1962
  %v1965 = vsel %vm1963, %v1958, %v1960
  %v1966 = vsel %vm1963, %v1956, %v1958
  %v1967 = vsel %vm1963, %v1954, %v1956
  %v1968 = vsel %vm1963, %v1952, %v1954
  %v1969 = vsel %vm1963, %v1962, %v1952
  %s1970 = scalar_lea.vmem %s2, 32
  %v1971 = vld [vmem:[%s1970] sm:$0xf]
  %v1973 = vsel %vm79, %v1971, 0
  %1975 = vmatprep.subr.mxu0 %v1967
  %1976 = vmatpush1.msra.mxu0 %v1968
  %1977 = vmatprep.subr.mxu0 0.0
  %1978 = vmatpush1.msra.mxu0 0.0
  %1979 = vmatprep.subr.mxu0 0.0
  %1980 = vmatpush1.msra.mxu0 0.0
  %1981 = vmatprep.subr.mxu0 0.0
  %1982 = vmatpush1.msra.mxu0 0.0
  %1983 = vmatprep.subr.mxu0 0.0
  %1984 = vmatpush1.msra.mxu0 0.0
  %1985 = vmatprep.subr.mxu0 0.0
  %1986 = vmatpush1.msra.mxu0 0.0
  %1987 = vmatprep.subr.mxu0 0.0
  %1988 = vmatpush1.msra.mxu0 0.0
  %1989 = vmatprep.subr.mxu0 0.0
  %1990 = vmatpush1.msra.mxu0 0.0
  %1991 = vmatprep.subr.mxu0 0.0
  %1992 = vmatpush1.msra.mxu0 0.0
  %1993 = vmatprep.subr.mxu0 0.0
  %1994 = vmatpush1.msra.mxu0 0.0
  %1995 = vmatprep.subr.mxu0 0.0
  %1996 = vmatpush1.msra.mxu0 0.0
  %1997 = vmatprep.subr.mxu0 0.0
  %1998 = vmatpush1.msra.mxu0 0.0
  %1999 = vmatprep.subr.mxu0 0.0
  %2000 = vmatpush1.msra.mxu0 0.0
  %2001 = vmatprep.subr.mxu0 0.0
  %2002 = vmatpush1.msra.mxu0 0.0
  %2003 = vmatprep.subr.mxu0 0.0
  %2004 = vmatpush1.msra.mxu0 0.0
  %2005 = vmatprep.subr.mxu0 0.0
  %2006 = vmatpush1.msra.mxu0 0.0
  %2007 = vmatprep.subr.mxu0 0.0
  %2008 = vmatpush1.msra.mxu0 0.0
  %2009 = vmatprep.subr.mxu0 0.0
  %2010 = vmatpush1.msra.mxu0 0.0
  %2011 = vmatprep.subr.mxu0 0.0
  %2012 = vmatpush1.msra.mxu0 0.0
  %2013 = vmatprep.subr.mxu0 0.0
  %2014 = vmatpush1.msra.mxu0 0.0
  %2015 = vmatprep.subr.mxu0 0.0
  %2016 = vmatpush1.msra.mxu0 0.0
  %2017 = vmatprep.subr.mxu0 0.0
  %2018 = vmatpush1.msra.mxu0 0.0
  %2019 = vmatprep.subr.mxu0 0.0
  %2020 = vmatpush1.msra.mxu0 0.0
  %2021 = vmatprep.subr.mxu0 0.0
  %2022 = vmatpush1.msra.mxu0 0.0
  %2023 = vmatprep.subr.mxu0 0.0
  %2024 = vmatpush1.msra.mxu0 0.0
  %2025 = vmatprep.subr.mxu0 0.0
  %2026 = vmatpush1.msra.mxu0 0.0
  %2027 = vmatprep.subr.mxu0 0.0
  %2028 = vmatpush1.msra.mxu0 0.0
  %2029 = vmatprep.subr.mxu0 0.0
  %2030 = vmatpush1.msra.mxu0 0.0
  %2031 = vmatprep.subr.mxu0 0.0
  %2032 = vmatpush1.msra.mxu0 0.0
  %2033 = vmatprep.subr.mxu0 0.0
  %2034 = vmatpush1.msra.mxu0 0.0
  %2035 = vmatprep.subr.mxu0 0.0
  %2036 = vmatpush1.msra.mxu0 0.0
  %2037 = vmatprep.subr.mxu0 0.0
  %2038 = vmatpush1.msra.mxu0 0.0
  %2039 = vmatprep.mubr.f32.mxu0 0.0
  %2040 = vmatmul.mubr.f32.gmra.mrb[0].mxu0 %v1973
  %v2041 = vpop.f32.mrb[0].mxu0
  %v2042 = vadd.f32 0.0, %v2041
  %v2043 = vpop.f32.mrb[0].mxu0
  %v2044 = vadd.f32 0.0, %v2043
  %2045 = vdwg.mxu0
  %2046 = vmatprep.subr.mxu0 %v1965
  %2047 = vmatpush1.msra.mxu0 %v1966
  %2048 = vmatprep.subr.mxu0 0.0
  %2049 = vmatpush1.msra.mxu0 0.0
  %2050 = vmatprep.subr.mxu0 0.0
  %2051 = vmatpush1.msra.mxu0 0.0
  %2052 = vmatprep.subr.mxu0 0.0
  %2053 = vmatpush1.msra.mxu0 0.0
  %2054 = vmatprep.subr.mxu0 0.0
  %2055 = vmatpush1.msra.mxu0 0.0
  %2056 = vmatprep.subr.mxu0 0.0
  %2057 = vmatpush1.msra.mxu0 0.0
  %2058 = vmatprep.subr.mxu0 0.0
  %2059 = vmatpush1.msra.mxu0 0.0
  %2060 = vmatprep.subr.mxu0 0.0
  %2061 = vmatpush1.msra.mxu0 0.0
  %2062 = vmatprep.subr.mxu0 0.0
  %2063 = vmatpush1.msra.mxu0 0.0
  %2064 = vmatprep.subr.mxu0 0.0
  %2065 = vmatpush1.msra.mxu0 0.0
  %2066 = vmatprep.subr.mxu0 0.0
  %2067 = vmatpush1.msra.mxu0 0.0
  %2068 = vmatprep.subr.mxu0 0.0
  %2069 = vmatpush1.msra.mxu0 0.0
  %2070 = vmatprep.subr.mxu0 0.0
  %2071 = vmatpush1.msra.mxu0 0.0
  %2072 = vmatprep.subr.mxu0 0.0
  %2073 = vmatpush1.msra.mxu0 0.0
  %2074 = vmatprep.subr.mxu0 0.0
  %2075 = vmatpush1.msra.mxu0 0.0
  %2076 = vmatprep.subr.mxu0 0.0
  %2077 = vmatpush1.msra.mxu0 0.0
  %2078 = vmatprep.subr.mxu0 0.0
  %2079 = vmatpush1.msra.mxu0 0.0
  %2080 = vmatprep.subr.mxu0 0.0
  %2081 = vmatpush1.msra.mxu0 0.0
  %2082 = vmatprep.subr.mxu0 0.0
  %2083 = vmatpush1.msra.mxu0 0.0
  %2084 = vmatprep.subr.mxu0 0.0
  %2085 = vmatpush1.msra.mxu0 0.0
  %2086 = vmatprep.subr.mxu0 0.0
  %2087 = vmatpush1.msra.mxu0 0.0
  %2088 = vmatprep.subr.mxu0 0.0
  %2089 = vmatpush1.msra.mxu0 0.0
  %2090 = vmatprep.subr.mxu0 0.0
  %2091 = vmatpush1.msra.mxu0 0.0
  %2092 = vmatprep.subr.mxu0 0.0
  %2093 = vmatpush1.msra.mxu0 0.0
  %2094 = vmatprep.subr.mxu0 0.0
  %2095 = vmatpush1.msra.mxu0 0.0
  %2096 = vmatprep.subr.mxu0 0.0
  %2097 = vmatpush1.msra.mxu0 0.0
  %2098 = vmatprep.subr.mxu0 0.0
  %2099 = vmatpush1.msra.mxu0 0.0
  %2100 = vmatprep.subr.mxu0 0.0
  %2101 = vmatpush1.msra.mxu0 0.0
  %2102 = vmatprep.subr.mxu0 0.0
  %2103 = vmatpush1.msra.mxu0 0.0
  %2104 = vmatprep.subr.mxu0 0.0
  %2105 = vmatpush1.msra.mxu0 0.0
  %2106 = vmatprep.subr.mxu0 0.0
  %2107 = vmatpush1.msra.mxu0 0.0
  %2108 = vmatprep.subr.mxu0 0.0
  %2109 = vmatpush1.msra.mxu0 0.0
  %2110 = vmatprep.mubr.f32.mxu0 0.0
  %2111 = vmatmul.mubr.f32.gmra.mrb[0].mxu0 %v1973
  %v2112 = vpop.f32.mrb[0].mxu0
  %v2113 = vadd.f32 0.0, %v2112
  %v2114 = vpop.f32.mrb[0].mxu0
  %v2115 = vadd.f32 0.0, %v2114
  %2116 = vdwg.mxu0
  %2117 = vmatprep.subr.mxu0 %v1969
  %2118 = vmatpush1.msra.mxu0 %v1964
  %2119 = vmatprep.subr.mxu0 0.0
  %2120 = vmatpush1.msra.mxu0 0.0
  %2121 = vmatprep.subr.mxu0 0.0
  %2122 = vmatpush1.msra.mxu0 0.0
  %2123 = vmatprep.subr.mxu0 0.0
  %2124 = vmatpush1.msra.mxu0 0.0
  %2125 = vmatprep.subr.mxu0 0.0
  %2126 = vmatpush1.msra.mxu0 0.0
  %2127 = vmatprep.subr.mxu0 0.0
  %2128 = vmatpush1.msra.mxu0 0.0
  %2129 = vmatprep.subr.mxu0 0.0
  %2130 = vmatpush1.msra.mxu0 0.0
  %2131 = vmatprep.subr.mxu0 0.0
  %2132 = vmatpush1.msra.mxu0 0.0
  %2133 = vmatprep.subr.mxu0 0.0
  %2134 = vmatpush1.msra.mxu0 0.0
  %2135 = vmatprep.subr.mxu0 0.0
  %2136 = vmatpush1.msra.mxu0 0.0
  %2137 = vmatprep.subr.mxu0 0.0
  %2138 = vmatpush1.msra.mxu0 0.0
  %2139 = vmatprep.subr.mxu0 0.0
  %2140 = vmatpush1.msra.mxu0 0.0
  %2141 = vmatprep.subr.mxu0 0.0
  %2142 = vmatpush1.msra.mxu0 0.0
  %2143 = vmatprep.subr.mxu0 0.0
  %2144 = vmatpush1.msra.mxu0 0.0
  %2145 = vmatprep.subr.mxu0 0.0
  %2146 = vmatpush1.msra.mxu0 0.0
  %2147 = vmatprep.subr.mxu0 0.0
  %2148 = vmatpush1.msra.mxu0 0.0
  %2149 = vmatprep.subr.mxu0 0.0
  %2150 = vmatpush1.msra.mxu0 0.0
  %2151 = vmatprep.subr.mxu0 0.0
  %2152 = vmatpush1.msra.mxu0 0.0
  %2153 = vmatprep.subr.mxu0 0.0
  %2154 = vmatpush1.msra.mxu0 0.0
  %2155 = vmatprep.subr.mxu0 0.0
  %2156 = vmatpush1.msra.mxu0 0.0
  %2157 = vmatprep.subr.mxu0 0.0
  %2158 = vmatpush1.msra.mxu0 0.0
  %2159 = vmatprep.subr.mxu0 0.0
  %2160 = vmatpush1.msra.mxu0 0.0
  %2161 = vmatprep.subr.mxu0 0.0
  %2162 = vmatpush1.msra.mxu0 0.0
  %2163 = vmatprep.subr.mxu0 0.0
  %2164 = vmatpush1.msra.mxu0 0.0
  %2165 = vmatprep.subr.mxu0 0.0
  %2166 = vmatpush1.msra.mxu0 0.0
  %2167 = vmatprep.subr.mxu0 0.0
  %2168 = vmatpush1.msra.mxu0 0.0
  %2169 = vmatprep.subr.mxu0 0.0
  %2170 = vmatpush1.msra.mxu0 0.0
  %2171 = vmatprep.subr.mxu0 0.0
  %2172 = vmatpush1.msra.mxu0 0.0
  %2173 = vmatprep.subr.mxu0 0.0
  %2174 = vmatpush1.msra.mxu0 0.0
  %2175 = vmatprep.subr.mxu0 0.0
  %2176 = vmatpush1.msra.mxu0 0.0
  %2177 = vmatprep.subr.mxu0 0.0
  %2178 = vmatpush1.msra.mxu0 0.0
  %2179 = vmatprep.subr.mxu0 0.0
  %2180 = vmatpush1.msra.mxu0 0.0
  %2181 = vmatprep.mubr.f32.mxu0 0.0
  %2182 = vmatmul.mubr.f32.gmra.mrb[0].mxu0 %v1973
  %v2183 = vpop.f32.mrb[0].mxu0
  %v2184 = vadd.f32 0.0, %v2183
  %v2185 = vpop.f32.mrb[0].mxu0
  %v2186 = vadd.f32 0.0, %v2185
  %2187 = vdwg.mxu0
  %v2188 = vadd.f32 %v1945, %v2042
  %v2189 = vadd.f32 %v1946, %v2044
  %v2190 = vadd.f32 %v1947, %v2113
  %v2191 = vadd.f32 %v1948, %v2115
  %v2192 = vadd.f32 %v1949, %v2184
  %v2193 = vadd.f32 %v1950, %v2186
  %v2195 = vlaneseq
  %v2196 = vshrl.u32 %v2195, 7
  %v2197 = vsub.s32 0, %v2196
  %v2198 = vrot.slane %v35, %v2197
  %v2199 = vlaneseq
  %v2200 = vshrl.u32 %v2199, 7
  %v2201 = vsub.s32 1, %v2200
  %v2202 = vrot.slane %v35, %v2201
  %v2203 = vlaneseq
  %v2204 = vshrl.u32 %v2203, 7
  %v2205 = vsub.s32 2, %v2204
  %v2206 = vrot.slane %v35, %v2205
  %v2207 = vlaneseq
  %v2208 = vshrl.u32 %v2207, 7
  %v2209 = vsub.s32 3, %v2208
  %v2210 = vrot.slane %v35, %v2209
  %v2211 = vlaneseq
  %v2212 = vshrl.u32 %v2211, 7
  %v2213 = vsub.s32 4, %v2212
  %v2214 = vrot.slane %v35, %v2213
  %v2215 = vlaneseq
  %v2216 = vshrl.u32 %v2215, 7
  %v2217 = vsub.s32 5, %v2216
  %v2218 = vrot.slane %v35, %v2217
  %v2225 = vmul.f32 %v2188, %v2198
  %v2226 = vmul.f32 %v2189, %v2202
  %v2227 = vmul.f32 %v2190, %v2206
  %v2228 = vmul.f32 %v2191, %v2210
  %v2229 = vmul.f32 %v2192, %v2214
  %v2230 = vmul.f32 %v2193, %v2218
  %vm2231 = vcmask 1043456
  %v2232 = vsel %vm2231, %v2225, 0.0
  %v2233 = vsel %vm2231, %v2226, 0.0
  %v2234 = vadd.f32 %v2232, %v2233
  %v2235 = vsel %vm2231, %v2227, 0.0
  %v2236 = vadd.f32 %v2234, %v2235
  %v2237 = vsel %vm2231, %v2228, 0.0
  %v2238 = vadd.f32 %v2236, %v2237
  %v2239 = vsel %vm2231, %v2229, 0.0
  %v2240 = vadd.f32 %v2238, %v2239
  %v2241 = vsel %vm2231, %v2230, 0.0
  %v2242 = vadd.f32 %v2240, %v2241
  %2243 = vadd.xlane.f32.xlu0 %v2242
  %v2244 = vpop.xlane.xlu0 %2243
  %v2245 = vmul.f32 %v2244, 0.001953125
  %v2246 = vsub.f32 %v2188, %v2245
  %v2247 = vsub.f32 %v2189, %v2245
  %v2248 = vsub.f32 %v2190, %v2245
  %v2249 = vsub.f32 %v2191, %v2245
  %v2250 = vsub.f32 %v2192, %v2245
  %v2251 = vsub.f32 %v2193, %v2245
  %v2252 = vmul.f32 %v2246, %v2246
  %v2253 = vmul.f32 %v2247, %v2247
  %v2254 = vmul.f32 %v2248, %v2248
  %v2255 = vmul.f32 %v2249, %v2249
  %v2256 = vmul.f32 %v2250, %v2250
  %v2257 = vmul.f32 %v2251, %v2251
  %v2258 = vmul.f32 %v2252, %v2198
  %v2259 = vmul.f32 %v2253, %v2202
  %v2260 = vmul.f32 %v2254, %v2206
  %v2261 = vmul.f32 %v2255, %v2210
  %v2262 = vmul.f32 %v2256, %v2214
  %v2263 = vmul.f32 %v2257, %v2218
  %v2264 = vsel %vm2231, %v2258, 0.0
  %v2265 = vsel %vm2231, %v2259, 0.0
  %v2266 = vadd.f32 %v2264, %v2265
  %v2267 = vsel %vm2231, %v2260, 0.0
  %v2268 = vadd.f32 %v2266, %v2267
  %v2269 = vsel %vm2231, %v2261, 0.0
  %v2270 = vadd.f32 %v2268, %v2269
  %v2271 = vsel %vm2231, %v2262, 0.0
  %v2272 = vadd.f32 %v2270, %v2271
  %v2273 = vsel %vm2231, %v2263, 0.0
  %v2274 = vadd.f32 %v2272, %v2273
  %2275 = vadd.xlane.f32.xlu0 %v2274
  %v2276 = vpop.xlane.xlu0 %2275
  %v2277 = vmul.f32 %v2276, 0.001953125
  %v2278 = vadd.f32 %v2277, 1e-05
  %v2279 = vrsqrt.pop %v2278
  %v2280 = vmul.f32 %v2246, %v2279
  %v2281 = vmul.f32 %v2247, %v2279
  %v2282 = vmul.f32 %v2248, %v2279
  %v2283 = vmul.f32 %v2249, %v2279
  %v2284 = vmul.f32 %v2250, %v2279
  %v2285 = vmul.f32 %v2251, %v2279
  %v2286 = vld [vmem:[%s3] sm:$0xf]
  %2288 = vset.pattern.permute.xlu0 0
  %2289 = vperm.xlu0 %2288, %v2286
  %v2290 = vpop.permute.xlu0 %2289
  %v2292 = vmul.f32 %v2280, %v2290
  %v2293 = vmul.f32 %v2281, %v2290
  %v2294 = vmul.f32 %v2282, %v2290
  %v2295 = vmul.f32 %v2283, %v2290
  %v2296 = vmul.f32 %v2284, %v2290
  %v2297 = vmul.f32 %v2285, %v2290
  %v2298 = vld [vmem:[%s4] sm:$0xf]
  %2300 = vset.pattern.permute.xlu0 0
  %2301 = vperm.xlu0 %2300, %v2298
  %v2302 = vpop.permute.xlu0 %2301
  %v2304 = vadd.f32 %v2292, %v2302
  %v2305 = vadd.f32 %v2293, %v2302
  %v2306 = vadd.f32 %v2294, %v2302
  %v2307 = vadd.f32 %v2295, %v2302
  %v2308 = vadd.f32 %v2296, %v2302
  %v2309 = vadd.f32 %v2297, %v2302
  %v2310 = vmax.f32 %v2304, 0.0
  %v2311 = vmax.f32 %v2305, 0.0
  %v2312 = vmax.f32 %v2306, 0.0
  %v2313 = vmax.f32 %v2307, 0.0
  %v2314 = vmax.f32 %v2308, 0.0
  %v2315 = vmax.f32 %v2309, 0.0
  %v2316 = vmul.f32 %v2310, %v2198
  %v2317 = vmul.f32 %v2311, %v2202
  %v2318 = vmul.f32 %v2312, %v2206
  %v2319 = vmul.f32 %v2313, %v2210
  %v2320 = vmul.f32 %v2314, %v2214
  %v2321 = vmul.f32 %v2315, %v2218
  %2322 = vrot.lane.b32.xlu0 %v2316, 19
  %v2323 = vpop.permute.xlu0 %2322
  %2324 = vrot.lane.b32.xlu0 %v2317, 19
  %v2325 = vpop.permute.xlu0 %2324
  %2326 = vrot.lane.b32.xlu0 %v2318, 19
  %v2327 = vpop.permute.xlu0 %2326
  %2328 = vrot.lane.b32.xlu0 %v2319, 19
  %v2329 = vpop.permute.xlu0 %2328
  %2330 = vrot.lane.b32.xlu0 %v2320, 19
  %v2331 = vpop.permute.xlu0 %2330
  %2332 = vrot.lane.b32.xlu0 %v2321, 19
  %v2333 = vpop.permute.xlu0 %2332
  %v2334 = vsel %vm50, %v2331, %v2333
  %v2335 = vsel %vm50, %v2329, %v2331
  %v2336 = vsel %vm50, %v2327, %v2329
  %v2337 = vsel %vm50, %v2325, %v2327
  %v2338 = vsel %vm50, %v2323, %v2325
  %v2339 = vsel %vm50, %v2333, %v2323
  %v2340 = vld [vmem:[%s5] sm:$0xf]
  %2341 = vrot.lane.b32.xlu0 %v2316, 18
  %v2342 = vpop.permute.xlu0 %2341
  %2343 = vrot.lane.b32.xlu0 %v2317, 18
  %v2344 = vpop.permute.xlu0 %2343
  %2345 = vrot.lane.b32.xlu0 %v2318, 18
  %v2346 = vpop.permute.xlu0 %2345
  %2347 = vrot.lane.b32.xlu0 %v2319, 18
  %v2348 = vpop.permute.xlu0 %2347
  %2349 = vrot.lane.b32.xlu0 %v2320, 18
  %v2350 = vpop.permute.xlu0 %2349
  %2351 = vrot.lane.b32.xlu0 %v2321, 18
  %v2352 = vpop.permute.xlu0 %2351
  %v2353 = vsel %vm70, %v2350, %v2352
  %v2354 = vsel %vm70, %v2348, %v2350
  %v2355 = vsel %vm70, %v2346, %v2348
  %v2356 = vsel %vm70, %v2344, %v2346
  %v2357 = vsel %vm70, %v2342, %v2344
  %v2358 = vsel %vm70, %v2352, %v2342
  %s2359 = scalar_lea.vmem %s5, 4
  %v2360 = vld [vmem:[%s2359] sm:$0xf]
  %vm2361 = vcmask 31744
  %v2363 = vsel %vm2361, %v2360, 0
  %v2366 = vsel %vm2231, %v2358, 0
  %v2369 = vsel %vm2231, %v2357, 0
  %v2372 = vsel %vm2231, %v2356, 0
  %v2375 = vsel %vm2231, %v2355, 0
  %v2378 = vsel %vm2231, %v2354, 0
  %v2381 = vsel %vm2231, %v2353, 0
  %2383 = vmatprep.subr.mxu0 %v2369
  %2384 = vmatpush1.msra.mxu0 %v2366
  %2385 = vmatprep.subr.mxu0 0.0
  %2386 = vmatpush1.msra.mxu0 0.0
  %2387 = vmatprep.subr.mxu0 0.0
  %2388 = vmatpush1.msra.mxu0 0.0
  %2389 = vmatprep.subr.mxu0 0.0
  %2390 = vmatpush1.msra.mxu0 0.0
  %2391 = vmatprep.subr.mxu0 0.0
  %2392 = vmatpush1.msra.mxu0 0.0
  %2393 = vmatprep.subr.mxu0 0.0
  %2394 = vmatpush1.msra.mxu0 0.0
  %2395 = vmatprep.subr.mxu0 0.0
  %2396 = vmatpush1.msra.mxu0 0.0
  %2397 = vmatprep.subr.mxu0 0.0
  %2398 = vmatpush1.msra.mxu0 0.0
  %2399 = vmatprep.subr.mxu0 0.0
  %2400 = vmatpush1.msra.mxu0 0.0
  %2401 = vmatprep.subr.mxu0 0.0
  %2402 = vmatpush1.msra.mxu0 0.0
  %2403 = vmatprep.subr.mxu0 0.0
  %2404 = vmatpush1.msra.mxu0 0.0
  %2405 = vmatprep.subr.mxu0 0.0
  %2406 = vmatpush1.msra.mxu0 0.0
  %2407 = vmatprep.subr.mxu0 0.0
  %2408 = vmatpush1.msra.mxu0 0.0
  %2409 = vmatprep.subr.mxu0 0.0
  %2410 = vmatpush1.msra.mxu0 0.0
  %2411 = vmatprep.subr.mxu0 0.0
  %2412 = vmatpush1.msra.mxu0 0.0
  %2413 = vmatprep.subr.mxu0 0.0
  %2414 = vmatpush1.msra.mxu0 0.0
  %2415 = vmatprep.subr.mxu0 0.0
  %2416 = vmatpush1.msra.mxu0 0.0
  %2417 = vmatprep.subr.mxu0 0.0
  %2418 = vmatpush1.msra.mxu0 0.0
  %2419 = vmatprep.subr.mxu0 0.0
  %2420 = vmatpush1.msra.mxu0 0.0
  %2421 = vmatprep.subr.mxu0 0.0
  %2422 = vmatpush1.msra.mxu0 0.0
  %2423 = vmatprep.subr.mxu0 0.0
  %2424 = vmatpush1.msra.mxu0 0.0
  %2425 = vmatprep.subr.mxu0 0.0
  %2426 = vmatpush1.msra.mxu0 0.0
  %2427 = vmatprep.subr.mxu0 0.0
  %2428 = vmatpush1.msra.mxu0 0.0
  %2429 = vmatprep.subr.mxu0 0.0
  %2430 = vmatpush1.msra.mxu0 0.0
  %2431 = vmatprep.subr.mxu0 0.0
  %2432 = vmatpush1.msra.mxu0 0.0
  %2433 = vmatprep.subr.mxu0 0.0
  %2434 = vmatpush1.msra.mxu0 0.0
  %2435 = vmatprep.subr.mxu0 0.0
  %2436 = vmatpush1.msra.mxu0 0.0
  %2437 = vmatprep.subr.mxu0 0.0
  %2438 = vmatpush1.msra.mxu0 0.0
  %2439 = vmatprep.subr.mxu0 0.0
  %2440 = vmatpush1.msra.mxu0 0.0
  %2441 = vmatprep.subr.mxu0 0.0
  %2442 = vmatpush1.msra.mxu0 0.0
  %2443 = vmatprep.subr.mxu0 0.0
  %2444 = vmatpush1.msra.mxu0 0.0
  %2445 = vmatprep.subr.mxu0 0.0
  %2446 = vmatpush1.msra.mxu0 0.0
  %2447 = vmatprep.mubr.f32.mxu0 0.0
  %2448 = vmatmul.mubr.f32.gmra.mrb[0].mxu0 %v2363
  %v2449 = vpop.f32.mrb[0].mxu0
  %v2450 = vadd.f32 0.0, %v2449
  %v2451 = vpop.f32.mrb[0].mxu0
  %v2452 = vadd.f32 0.0, %v2451
  %2453 = vdwg.mxu0
  %2454 = vmatprep.subr.mxu0 %v2375
  %2455 = vmatpush1.msra.mxu0 %v2372
  %2456 = vmatprep.subr.mxu0 0.0
  %2457 = vmatpush1.msra.mxu0 0.0
  %2458 = vmatprep.subr.mxu0 0.0
  %2459 = vmatpush1.msra.mxu0 0.0
  %2460 = vmatprep.subr.mxu0 0.0
  %2461 = vmatpush1.msra.mxu0 0.0
  %2462 = vmatprep.subr.mxu0 0.0
  %2463 = vmatpush1.msra.mxu0 0.0
  %2464 = vmatprep.subr.mxu0 0.0
  %2465 = vmatpush1.msra.mxu0 0.0
  %2466 = vmatprep.subr.mxu0 0.0
  %2467 = vmatpush1.msra.mxu0 0.0
  %2468 = vmatprep.subr.mxu0 0.0
  %2469 = vmatpush1.msra.mxu0 0.0
  %2470 = vmatprep.subr.mxu0 0.0
  %2471 = vmatpush1.msra.mxu0 0.0
  %2472 = vmatprep.subr.mxu0 0.0
  %2473 = vmatpush1.msra.mxu0 0.0
  %2474 = vmatprep.subr.mxu0 0.0
  %2475 = vmatpush1.msra.mxu0 0.0
  %2476 = vmatprep.subr.mxu0 0.0
  %2477 = vmatpush1.msra.mxu0 0.0
  %2478 = vmatprep.subr.mxu0 0.0
  %2479 = vmatpush1.msra.mxu0 0.0
  %2480 = vmatprep.subr.mxu0 0.0
  %2481 = vmatpush1.msra.mxu0 0.0
  %2482 = vmatprep.subr.mxu0 0.0
  %2483 = vmatpush1.msra.mxu0 0.0
  %2484 = vmatprep.subr.mxu0 0.0
  %2485 = vmatpush1.msra.mxu0 0.0
  %2486 = vmatprep.subr.mxu0 0.0
  %2487 = vmatpush1.msra.mxu0 0.0
  %2488 = vmatprep.subr.mxu0 0.0
  %2489 = vmatpush1.msra.mxu0 0.0
  %2490 = vmatprep.subr.mxu0 0.0
  %2491 = vmatpush1.msra.mxu0 0.0
  %2492 = vmatprep.subr.mxu0 0.0
  %2493 = vmatpush1.msra.mxu0 0.0
  %2494 = vmatprep.subr.mxu0 0.0
  %2495 = vmatpush1.msra.mxu0 0.0
  %2496 = vmatprep.subr.mxu0 0.0
  %2497 = vmatpush1.msra.mxu0 0.0
  %2498 = vmatprep.subr.mxu0 0.0
  %2499 = vmatpush1.msra.mxu0 0.0
  %2500 = vmatprep.subr.mxu0 0.0
  %2501 = vmatpush1.msra.mxu0 0.0
  %2502 = vmatprep.subr.mxu0 0.0
  %2503 = vmatpush1.msra.mxu0 0.0
  %2504 = vmatprep.subr.mxu0 0.0
  %2505 = vmatpush1.msra.mxu0 0.0
  %2506 = vmatprep.subr.mxu0 0.0
  %2507 = vmatpush1.msra.mxu0 0.0
  %2508 = vmatprep.subr.mxu0 0.0
  %2509 = vmatpush1.msra.mxu0 0.0
  %2510 = vmatprep.subr.mxu0 0.0
  %2511 = vmatpush1.msra.mxu0 0.0
  %2512 = vmatprep.subr.mxu0 0.0
  %2513 = vmatpush1.msra.mxu0 0.0
  %2514 = vmatprep.subr.mxu0 0.0
  %2515 = vmatpush1.msra.mxu0 0.0
  %2516 = vmatprep.subr.mxu0 0.0
  %2517 = vmatpush1.msra.mxu0 0.0
  %2518 = vmatprep.mubr.f32.mxu0 0.0
  %2519 = vmatmul.mubr.f32.gmra.mrb[0].mxu0 %v2363
  %v2520 = vpop.f32.mrb[0].mxu0
  %v2521 = vadd.f32 0.0, %v2520
  %v2522 = vpop.f32.mrb[0].mxu0
  %v2523 = vadd.f32 0.0, %v2522
  %2524 = vdwg.mxu0
  %2525 = vmatprep.subr.mxu0 %v2381
  %2526 = vmatpush1.msra.mxu0 %v2378
  %2527 = vmatprep.subr.mxu0 0.0
  %2528 = vmatpush1.msra.mxu0 0.0
  %2529 = vmatprep.subr.mxu0 0.0
  %2530 = vmatpush1.msra.mxu0 0.0
  %2531 = vmatprep.subr.mxu0 0.0
  %2532 = vmatpush1.msra.mxu0 0.0
  %2533 = vmatprep.subr.mxu0 0.0
  %2534 = vmatpush1.msra.mxu0 0.0
  %2535 = vmatprep.subr.mxu0 0.0
  %2536 = vmatpush1.msra.mxu0 0.0
  %2537 = vmatprep.subr.mxu0 0.0
  %2538 = vmatpush1.msra.mxu0 0.0
  %2539 = vmatprep.subr.mxu0 0.0
  %2540 = vmatpush1.msra.mxu0 0.0
  %2541 = vmatprep.subr.mxu0 0.0
  %2542 = vmatpush1.msra.mxu0 0.0
  %2543 = vmatprep.subr.mxu0 0.0
  %2544 = vmatpush1.msra.mxu0 0.0
  %2545 = vmatprep.subr.mxu0 0.0
  %2546 = vmatpush1.msra.mxu0 0.0
  %2547 = vmatprep.subr.mxu0 0.0
  %2548 = vmatpush1.msra.mxu0 0.0
  %2549 = vmatprep.subr.mxu0 0.0
  %2550 = vmatpush1.msra.mxu0 0.0
  %2551 = vmatprep.subr.mxu0 0.0
  %2552 = vmatpush1.msra.mxu0 0.0
  %2553 = vmatprep.subr.mxu0 0.0
  %2554 = vmatpush1.msra.mxu0 0.0
  %2555 = vmatprep.subr.mxu0 0.0
  %2556 = vmatpush1.msra.mxu0 0.0
  %2557 = vmatprep.subr.mxu0 0.0
  %2558 = vmatpush1.msra.mxu0 0.0
  %2559 = vmatprep.subr.mxu0 0.0
  %2560 = vmatpush1.msra.mxu0 0.0
  %2561 = vmatprep.subr.mxu0 0.0
  %2562 = vmatpush1.msra.mxu0 0.0
  %2563 = vmatprep.subr.mxu0 0.0
  %2564 = vmatpush1.msra.mxu0 0.0
  %2565 = vmatprep.subr.mxu0 0.0
  %2566 = vmatpush1.msra.mxu0 0.0
  %2567 = vmatprep.subr.mxu0 0.0
  %2568 = vmatpush1.msra.mxu0 0.0
  %2569 = vmatprep.subr.mxu0 0.0
  %2570 = vmatpush1.msra.mxu0 0.0
  %2571 = vmatprep.subr.mxu0 0.0
  %2572 = vmatpush1.msra.mxu0 0.0
  %2573 = vmatprep.subr.mxu0 0.0
  %2574 = vmatpush1.msra.mxu0 0.0
  %2575 = vmatprep.subr.mxu0 0.0
  %2576 = vmatpush1.msra.mxu0 0.0
  %2577 = vmatprep.subr.mxu0 0.0
  %2578 = vmatpush1.msra.mxu0 0.0
  %2579 = vmatprep.subr.mxu0 0.0
  %2580 = vmatpush1.msra.mxu0 0.0
  %2581 = vmatprep.subr.mxu0 0.0
  %2582 = vmatpush1.msra.mxu0 0.0
  %2583 = vmatprep.subr.mxu0 0.0
  %2584 = vmatpush1.msra.mxu0 0.0
  %2585 = vmatprep.subr.mxu0 0.0
  %2586 = vmatpush1.msra.mxu0 0.0
  %2587 = vmatprep.subr.mxu0 0.0
  %2588 = vmatpush1.msra.mxu0 0.0
  %2589 = vmatprep.mubr.f32.mxu0 0.0
  %2590 = vmatmul.mubr.f32.gmra.mrb[0].mxu0 %v2363
  %v2591 = vpop.f32.mrb[0].mxu0
  %v2592 = vadd.f32 0.0, %v2591
  %v2593 = vpop.f32.mrb[0].mxu0
  %v2594 = vadd.f32 0.0, %v2593
  %2595 = vdwg.mxu0
  %v2597 = vsel %vm2361, %v2340, 0
  %v2600 = vsel %vm2231, %v2339, 0
  %v2603 = vsel %vm2231, %v2338, 0
  %v2606 = vsel %vm2231, %v2337, 0
  %v2609 = vsel %vm2231, %v2336, 0
  %v2612 = vsel %vm2231, %v2335, 0
  %v2615 = vsel %vm2231, %v2334, 0
  %2617 = vmatprep.subr.mxu0 %v2603
  %2618 = vmatpush1.msra.mxu0 %v2600
  %2619 = vmatprep.subr.mxu0 0.0
  %2620 = vmatpush1.msra.mxu0 0.0
  %2621 = vmatprep.subr.mxu0 0.0
  %2622 = vmatpush1.msra.mxu0 0.0
  %2623 = vmatprep.subr.mxu0 0.0
  %2624 = vmatpush1.msra.mxu0 0.0
  %2625 = vmatprep.subr.mxu0 0.0
  %2626 = vmatpush1.msra.mxu0 0.0
  %2627 = vmatprep.subr.mxu0 0.0
  %2628 = vmatpush1.msra.mxu0 0.0
  %2629 = vmatprep.subr.mxu0 0.0
  %2630 = vmatpush1.msra.mxu0 0.0
  %2631 = vmatprep.subr.mxu0 0.0
  %2632 = vmatpush1.msra.mxu0 0.0
  %2633 = vmatprep.subr.mxu0 0.0
  %2634 = vmatpush1.msra.mxu0 0.0
  %2635 = vmatprep.subr.mxu0 0.0
  %2636 = vmatpush1.msra.mxu0 0.0
  %2637 = vmatprep.subr.mxu0 0.0
  %2638 = vmatpush1.msra.mxu0 0.0
  %2639 = vmatprep.subr.mxu0 0.0
  %2640 = vmatpush1.msra.mxu0 0.0
  %2641 = vmatprep.subr.mxu0 0.0
  %2642 = vmatpush1.msra.mxu0 0.0
  %2643 = vmatprep.subr.mxu0 0.0
  %2644 = vmatpush1.msra.mxu0 0.0
  %2645 = vmatprep.subr.mxu0 0.0
  %2646 = vmatpush1.msra.mxu0 0.0
  %2647 = vmatprep.subr.mxu0 0.0
  %2648 = vmatpush1.msra.mxu0 0.0
  %2649 = vmatprep.subr.mxu0 0.0
  %2650 = vmatpush1.msra.mxu0 0.0
  %2651 = vmatprep.subr.mxu0 0.0
  %2652 = vmatpush1.msra.mxu0 0.0
  %2653 = vmatprep.subr.mxu0 0.0
  %2654 = vmatpush1.msra.mxu0 0.0
  %2655 = vmatprep.subr.mxu0 0.0
  %2656 = vmatpush1.msra.mxu0 0.0
  %2657 = vmatprep.subr.mxu0 0.0
  %2658 = vmatpush1.msra.mxu0 0.0
  %2659 = vmatprep.subr.mxu0 0.0
  %2660 = vmatpush1.msra.mxu0 0.0
  %2661 = vmatprep.subr.mxu0 0.0
  %2662 = vmatpush1.msra.mxu0 0.0
  %2663 = vmatprep.subr.mxu0 0.0
  %2664 = vmatpush1.msra.mxu0 0.0
  %2665 = vmatprep.subr.mxu0 0.0
  %2666 = vmatpush1.msra.mxu0 0.0
  %2667 = vmatprep.subr.mxu0 0.0
  %2668 = vmatpush1.msra.mxu0 0.0
  %2669 = vmatprep.subr.mxu0 0.0
  %2670 = vmatpush1.msra.mxu0 0.0
  %2671 = vmatprep.subr.mxu0 0.0
  %2672 = vmatpush1.msra.mxu0 0.0
  %2673 = vmatprep.subr.mxu0 0.0
  %2674 = vmatpush1.msra.mxu0 0.0
  %2675 = vmatprep.subr.mxu0 0.0
  %2676 = vmatpush1.msra.mxu0 0.0
  %2677 = vmatprep.subr.mxu0 0.0
  %2678 = vmatpush1.msra.mxu0 0.0
  %2679 = vmatprep.subr.mxu0 0.0
  %2680 = vmatpush1.msra.mxu0 0.0
  %2681 = vmatprep.mubr.f32.mxu0 0.0
  %2682 = vmatmul.mubr.f32.gmra.mrb[0].mxu0 %v2597
  %v2683 = vpop.f32.mrb[0].mxu0
  %v2684 = vadd.f32 %v2450, %v2683
  %v2685 = vpop.f32.mrb[0].mxu0
  %v2686 = vadd.f32 %v2452, %v2685
  %2687 = vdwg.mxu0
  %2688 = vmatprep.subr.mxu0 %v2609
  %2689 = vmatpush1.msra.mxu0 %v2606
  %2690 = vmatprep.subr.mxu0 0.0
  %2691 = vmatpush1.msra.mxu0 0.0
  %2692 = vmatprep.subr.mxu0 0.0
  %2693 = vmatpush1.msra.mxu0 0.0
  %2694 = vmatprep.subr.mxu0 0.0
  %2695 = vmatpush1.msra.mxu0 0.0
  %2696 = vmatprep.subr.mxu0 0.0
  %2697 = vmatpush1.msra.mxu0 0.0
  %2698 = vmatprep.subr.mxu0 0.0
  %2699 = vmatpush1.msra.mxu0 0.0
  %2700 = vmatprep.subr.mxu0 0.0
  %2701 = vmatpush1.msra.mxu0 0.0
  %2702 = vmatprep.subr.mxu0 0.0
  %2703 = vmatpush1.msra.mxu0 0.0
  %2704 = vmatprep.subr.mxu0 0.0
  %2705 = vmatpush1.msra.mxu0 0.0
  %2706 = vmatprep.subr.mxu0 0.0
  %2707 = vmatpush1.msra.mxu0 0.0
  %2708 = vmatprep.subr.mxu0 0.0
  %2709 = vmatpush1.msra.mxu0 0.0
  %2710 = vmatprep.subr.mxu0 0.0
  %2711 = vmatpush1.msra.mxu0 0.0
  %2712 = vmatprep.subr.mxu0 0.0
  %2713 = vmatpush1.msra.mxu0 0.0
  %2714 = vmatprep.subr.mxu0 0.0
  %2715 = vmatpush1.msra.mxu0 0.0
  %2716 = vmatprep.subr.mxu0 0.0
  %2717 = vmatpush1.msra.mxu0 0.0
  %2718 = vmatprep.subr.mxu0 0.0
  %2719 = vmatpush1.msra.mxu0 0.0
  %2720 = vmatprep.subr.mxu0 0.0
  %2721 = vmatpush1.msra.mxu0 0.0
  %2722 = vmatprep.subr.mxu0 0.0
  %2723 = vmatpush1.msra.mxu0 0.0
  %2724 = vmatprep.subr.mxu0 0.0
  %2725 = vmatpush1.msra.mxu0 0.0
  %2726 = vmatprep.subr.mxu0 0.0
  %2727 = vmatpush1.msra.mxu0 0.0
  %2728 = vmatprep.subr.mxu0 0.0
  %2729 = vmatpush1.msra.mxu0 0.0
  %2730 = vmatprep.subr.mxu0 0.0
  %2731 = vmatpush1.msra.mxu0 0.0
  %2732 = vmatprep.subr.mxu0 0.0
  %2733 = vmatpush1.msra.mxu0 0.0
  %2734 = vmatprep.subr.mxu0 0.0
  %2735 = vmatpush1.msra.mxu0 0.0
  %2736 = vmatprep.subr.mxu0 0.0
  %2737 = vmatpush1.msra.mxu0 0.0
  %2738 = vmatprep.subr.mxu0 0.0
  %2739 = vmatpush1.msra.mxu0 0.0
  %2740 = vmatprep.subr.mxu0 0.0
  %2741 = vmatpush1.msra.mxu0 0.0
  %2742 = vmatprep.subr.mxu0 0.0
  %2743 = vmatpush1.msra.mxu0 0.0
  %2744 = vmatprep.subr.mxu0 0.0
  %2745 = vmatpush1.msra.mxu0 0.0
  %2746 = vmatprep.subr.mxu0 0.0
  %2747 = vmatpush1.msra.mxu0 0.0
  %2748 = vmatprep.subr.mxu0 0.0
  %2749 = vmatpush1.msra.mxu0 0.0
  %2750 = vmatprep.subr.mxu0 0.0
  %2751 = vmatpush1.msra.mxu0 0.0
  %2752 = vmatprep.mubr.f32.mxu0 0.0
  %2753 = vmatmul.mubr.f32.gmra.mrb[0].mxu0 %v2597
  %v2754 = vpop.f32.mrb[0].mxu0
  %v2755 = vadd.f32 %v2521, %v2754
  %v2756 = vpop.f32.mrb[0].mxu0
  %v2757 = vadd.f32 %v2523, %v2756
  %2758 = vdwg.mxu0
  %2759 = vmatprep.subr.mxu0 %v2615
  %2760 = vmatpush1.msra.mxu0 %v2612
  %2761 = vmatprep.subr.mxu0 0.0
  %2762 = vmatpush1.msra.mxu0 0.0
  %2763 = vmatprep.subr.mxu0 0.0
  %2764 = vmatpush1.msra.mxu0 0.0
  %2765 = vmatprep.subr.mxu0 0.0
  %2766 = vmatpush1.msra.mxu0 0.0
  %2767 = vmatprep.subr.mxu0 0.0
  %2768 = vmatpush1.msra.mxu0 0.0
  %2769 = vmatprep.subr.mxu0 0.0
  %2770 = vmatpush1.msra.mxu0 0.0
  %2771 = vmatprep.subr.mxu0 0.0
  %2772 = vmatpush1.msra.mxu0 0.0
  %2773 = vmatprep.subr.mxu0 0.0
  %2774 = vmatpush1.msra.mxu0 0.0
  %2775 = vmatprep.subr.mxu0 0.0
  %2776 = vmatpush1.msra.mxu0 0.0
  %2777 = vmatprep.subr.mxu0 0.0
  %2778 = vmatpush1.msra.mxu0 0.0
  %2779 = vmatprep.subr.mxu0 0.0
  %2780 = vmatpush1.msra.mxu0 0.0
  %2781 = vmatprep.subr.mxu0 0.0
  %2782 = vmatpush1.msra.mxu0 0.0
  %2783 = vmatprep.subr.mxu0 0.0
  %2784 = vmatpush1.msra.mxu0 0.0
  %2785 = vmatprep.subr.mxu0 0.0
  %2786 = vmatpush1.msra.mxu0 0.0
  %2787 = vmatprep.subr.mxu0 0.0
  %2788 = vmatpush1.msra.mxu0 0.0
  %2789 = vmatprep.subr.mxu0 0.0
  %2790 = vmatpush1.msra.mxu0 0.0
  %2791 = vmatprep.subr.mxu0 0.0
  %2792 = vmatpush1.msra.mxu0 0.0
  %2793 = vmatprep.subr.mxu0 0.0
  %2794 = vmatpush1.msra.mxu0 0.0
  %2795 = vmatprep.subr.mxu0 0.0
  %2796 = vmatpush1.msra.mxu0 0.0
  %2797 = vmatprep.subr.mxu0 0.0
  %2798 = vmatpush1.msra.mxu0 0.0
  %2799 = vmatprep.subr.mxu0 0.0
  %2800 = vmatpush1.msra.mxu0 0.0
  %2801 = vmatprep.subr.mxu0 0.0
  %2802 = vmatpush1.msra.mxu0 0.0
  %2803 = vmatprep.subr.mxu0 0.0
  %2804 = vmatpush1.msra.mxu0 0.0
  %2805 = vmatprep.subr.mxu0 0.0
  %2806 = vmatpush1.msra.mxu0 0.0
  %2807 = vmatprep.subr.mxu0 0.0
  %2808 = vmatpush1.msra.mxu0 0.0
  %2809 = vmatprep.subr.mxu0 0.0
  %2810 = vmatpush1.msra.mxu0 0.0
  %2811 = vmatprep.subr.mxu0 0.0
  %2812 = vmatpush1.msra.mxu0 0.0
  %2813 = vmatprep.subr.mxu0 0.0
  %2814 = vmatpush1.msra.mxu0 0.0
  %2815 = vmatprep.subr.mxu0 0.0
  %2816 = vmatpush1.msra.mxu0 0.0
  %2817 = vmatprep.subr.mxu0 0.0
  %2818 = vmatpush1.msra.mxu0 0.0
  %2819 = vmatprep.subr.mxu0 0.0
  %2820 = vmatpush1.msra.mxu0 0.0
  %2821 = vmatprep.subr.mxu0 0.0
  %2822 = vmatpush1.msra.mxu0 0.0
  %2823 = vmatprep.mubr.f32.mxu0 0.0
  %2824 = vmatmul.mubr.f32.gmra.mrb[0].mxu0 %v2597
  %v2825 = vpop.f32.mrb[0].mxu0
  %v2826 = vadd.f32 %v2592, %v2825
  %v2827 = vpop.f32.mrb[0].mxu0
  %v2828 = vadd.f32 %v2594, %v2827
  %2829 = vdwg.mxu0
  %2830 = vrot.lane.b32.xlu0 %v2316, 17
  %v2831 = vpop.permute.xlu0 %2830
  %2832 = vrot.lane.b32.xlu0 %v2317, 17
  %v2833 = vpop.permute.xlu0 %2832
  %2834 = vrot.lane.b32.xlu0 %v2318, 17
  %v2835 = vpop.permute.xlu0 %2834
  %2836 = vrot.lane.b32.xlu0 %v2319, 17
  %v2837 = vpop.permute.xlu0 %2836
  %2838 = vrot.lane.b32.xlu0 %v2320, 17
  %v2839 = vpop.permute.xlu0 %2838
  %2840 = vrot.lane.b32.xlu0 %v2321, 17
  %v2841 = vpop.permute.xlu0 %2840
  %v2842 = vsel %vm524, %v2839, %v2841
  %v2843 = vsel %vm524, %v2837, %v2839
  %v2844 = vsel %vm524, %v2835, %v2837
  %v2845 = vsel %vm524, %v2833, %v2835
  %v2846 = vsel %vm524, %v2831, %v2833
  %v2847 = vsel %vm524, %v2841, %v2831
  %s2848 = scalar_lea.vmem %s5, 8
  %v2849 = vld [vmem:[%s2848] sm:$0xf]
  %v2851 = vsel %vm2361, %v2849, 0
  %v2854 = vsel %vm2231, %v2847, 0
  %v2857 = vsel %vm2231, %v2846, 0
  %v2860 = vsel %vm2231, %v2845, 0
  %v2863 = vsel %vm2231, %v2844, 0
  %v2866 = vsel %vm2231, %v2843, 0
  %v2869 = vsel %vm2231, %v2842, 0
  %2871 = vmatprep.subr.mxu0 %v2857
  %2872 = vmatpush1.msra.mxu0 %v2854
  %2873 = vmatprep.subr.mxu0 0.0
  %2874 = vmatpush1.msra.mxu0 0.0
  %2875 = vmatprep.subr.mxu0 0.0
  %2876 = vmatpush1.msra.mxu0 0.0
  %2877 = vmatprep.subr.mxu0 0.0
  %2878 = vmatpush1.msra.mxu0 0.0
  %2879 = vmatprep.subr.mxu0 0.0
  %2880 = vmatpush1.msra.mxu0 0.0
  %2881 = vmatprep.subr.mxu0 0.0
  %2882 = vmatpush1.msra.mxu0 0.0
  %2883 = vmatprep.subr.mxu0 0.0
  %2884 = vmatpush1.msra.mxu0 0.0
  %2885 = vmatprep.subr.mxu0 0.0
  %2886 = vmatpush1.msra.mxu0 0.0
  %2887 = vmatprep.subr.mxu0 0.0
  %2888 = vmatpush1.msra.mxu0 0.0
  %2889 = vmatprep.subr.mxu0 0.0
  %2890 = vmatpush1.msra.mxu0 0.0
  %2891 = vmatprep.subr.mxu0 0.0
  %2892 = vmatpush1.msra.mxu0 0.0
  %2893 = vmatprep.subr.mxu0 0.0
  %2894 = vmatpush1.msra.mxu0 0.0
  %2895 = vmatprep.subr.mxu0 0.0
  %2896 = vmatpush1.msra.mxu0 0.0
  %2897 = vmatprep.subr.mxu0 0.0
  %2898 = vmatpush1.msra.mxu0 0.0
  %2899 = vmatprep.subr.mxu0 0.0
  %2900 = vmatpush1.msra.mxu0 0.0
  %2901 = vmatprep.subr.mxu0 0.0
  %2902 = vmatpush1.msra.mxu0 0.0
  %2903 = vmatprep.subr.mxu0 0.0
  %2904 = vmatpush1.msra.mxu0 0.0
  %2905 = vmatprep.subr.mxu0 0.0
  %2906 = vmatpush1.msra.mxu0 0.0
  %2907 = vmatprep.subr.mxu0 0.0
  %2908 = vmatpush1.msra.mxu0 0.0
  %2909 = vmatprep.subr.mxu0 0.0
  %2910 = vmatpush1.msra.mxu0 0.0
  %2911 = vmatprep.subr.mxu0 0.0
  %2912 = vmatpush1.msra.mxu0 0.0
  %2913 = vmatprep.subr.mxu0 0.0
  %2914 = vmatpush1.msra.mxu0 0.0
  %2915 = vmatprep.subr.mxu0 0.0
  %2916 = vmatpush1.msra.mxu0 0.0
  %2917 = vmatprep.subr.mxu0 0.0
  %2918 = vmatpush1.msra.mxu0 0.0
  %2919 = vmatprep.subr.mxu0 0.0
  %2920 = vmatpush1.msra.mxu0 0.0
  %2921 = vmatprep.subr.mxu0 0.0
  %2922 = vmatpush1.msra.mxu0 0.0
  %2923 = vmatprep.subr.mxu0 0.0
  %2924 = vmatpush1.msra.mxu0 0.0
  %2925 = vmatprep.subr.mxu0 0.0
  %2926 = vmatpush1.msra.mxu0 0.0
  %2927 = vmatprep.subr.mxu0 0.0
  %2928 = vmatpush1.msra.mxu0 0.0
  %2929 = vmatprep.subr.mxu0 0.0
  %2930 = vmatpush1.msra.mxu0 0.0
  %2931 = vmatprep.subr.mxu0 0.0
  %2932 = vmatpush1.msra.mxu0 0.0
  %2933 = vmatprep.subr.mxu0 0.0
  %2934 = vmatpush1.msra.mxu0 0.0
  %2935 = vmatprep.mubr.f32.mxu0 0.0
  %2936 = vmatmul.mubr.f32.gmra.mrb[0].mxu0 %v2851
  %v2937 = vpop.f32.mrb[0].mxu0
  %v2938 = vadd.f32 0.0, %v2937
  %v2939 = vpop.f32.mrb[0].mxu0
  %v2940 = vadd.f32 0.0, %v2939
  %2941 = vdwg.mxu0
  %2942 = vmatprep.subr.mxu0 %v2863
  %2943 = vmatpush1.msra.mxu0 %v2860
  %2944 = vmatprep.subr.mxu0 0.0
  %2945 = vmatpush1.msra.mxu0 0.0
  %2946 = vmatprep.subr.mxu0 0.0
  %2947 = vmatpush1.msra.mxu0 0.0
  %2948 = vmatprep.subr.mxu0 0.0
  %2949 = vmatpush1.msra.mxu0 0.0
  %2950 = vmatprep.subr.mxu0 0.0
  %2951 = vmatpush1.msra.mxu0 0.0
  %2952 = vmatprep.subr.mxu0 0.0
  %2953 = vmatpush1.msra.mxu0 0.0
  %2954 = vmatprep.subr.mxu0 0.0
  %2955 = vmatpush1.msra.mxu0 0.0
  %2956 = vmatprep.subr.mxu0 0.0
  %2957 = vmatpush1.msra.mxu0 0.0
  %2958 = vmatprep.subr.mxu0 0.0
  %2959 = vmatpush1.msra.mxu0 0.0
  %2960 = vmatprep.subr.mxu0 0.0
  %2961 = vmatpush1.msra.mxu0 0.0
  %2962 = vmatprep.subr.mxu0 0.0
  %2963 = vmatpush1.msra.mxu0 0.0
  %2964 = vmatprep.subr.mxu0 0.0
  %2965 = vmatpush1.msra.mxu0 0.0
  %2966 = vmatprep.subr.mxu0 0.0
  %2967 = vmatpush1.msra.mxu0 0.0
  %2968 = vmatprep.subr.mxu0 0.0
  %2969 = vmatpush1.msra.mxu0 0.0
  %2970 = vmatprep.subr.mxu0 0.0
  %2971 = vmatpush1.msra.mxu0 0.0
  %2972 = vmatprep.subr.mxu0 0.0
  %2973 = vmatpush1.msra.mxu0 0.0
  %2974 = vmatprep.subr.mxu0 0.0
  %2975 = vmatpush1.msra.mxu0 0.0
  %2976 = vmatprep.subr.mxu0 0.0
  %2977 = vmatpush1.msra.mxu0 0.0
  %2978 = vmatprep.subr.mxu0 0.0
  %2979 = vmatpush1.msra.mxu0 0.0
  %2980 = vmatprep.subr.mxu0 0.0
  %2981 = vmatpush1.msra.mxu0 0.0
  %2982 = vmatprep.subr.mxu0 0.0
  %2983 = vmatpush1.msra.mxu0 0.0
  %2984 = vmatprep.subr.mxu0 0.0
  %2985 = vmatpush1.msra.mxu0 0.0
  %2986 = vmatprep.subr.mxu0 0.0
  %2987 = vmatpush1.msra.mxu0 0.0
  %2988 = vmatprep.subr.mxu0 0.0
  %2989 = vmatpush1.msra.mxu0 0.0
  %2990 = vmatprep.subr.mxu0 0.0
  %2991 = vmatpush1.msra.mxu0 0.0
  %2992 = vmatprep.subr.mxu0 0.0
  %2993 = vmatpush1.msra.mxu0 0.0
  %2994 = vmatprep.subr.mxu0 0.0
  %2995 = vmatpush1.msra.mxu0 0.0
  %2996 = vmatprep.subr.mxu0 0.0
  %2997 = vmatpush1.msra.mxu0 0.0
  %2998 = vmatprep.subr.mxu0 0.0
  %2999 = vmatpush1.msra.mxu0 0.0
  %3000 = vmatprep.subr.mxu0 0.0
  %3001 = vmatpush1.msra.mxu0 0.0
  %3002 = vmatprep.subr.mxu0 0.0
  %3003 = vmatpush1.msra.mxu0 0.0
  %3004 = vmatprep.subr.mxu0 0.0
  %3005 = vmatpush1.msra.mxu0 0.0
  %3006 = vmatprep.mubr.f32.mxu0 0.0
  %3007 = vmatmul.mubr.f32.gmra.mrb[0].mxu0 %v2851
  %v3008 = vpop.f32.mrb[0].mxu0
  %v3009 = vadd.f32 0.0, %v3008
  %v3010 = vpop.f32.mrb[0].mxu0
  %v3011 = vadd.f32 0.0, %v3010
  %3012 = vdwg.mxu0
  %3013 = vmatprep.subr.mxu0 %v2869
  %3014 = vmatpush1.msra.mxu0 %v2866
  %3015 = vmatprep.subr.mxu0 0.0
  %3016 = vmatpush1.msra.mxu0 0.0
  %3017 = vmatprep.subr.mxu0 0.0
  %3018 = vmatpush1.msra.mxu0 0.0
  %3019 = vmatprep.subr.mxu0 0.0
  %3020 = vmatpush1.msra.mxu0 0.0
  %3021 = vmatprep.subr.mxu0 0.0
  %3022 = vmatpush1.msra.mxu0 0.0
  %3023 = vmatprep.subr.mxu0 0.0
  %3024 = vmatpush1.msra.mxu0 0.0
  %3025 = vmatprep.subr.mxu0 0.0
  %3026 = vmatpush1.msra.mxu0 0.0
  %3027 = vmatprep.subr.mxu0 0.0
  %3028 = vmatpush1.msra.mxu0 0.0
  %3029 = vmatprep.subr.mxu0 0.0
  %3030 = vmatpush1.msra.mxu0 0.0
  %3031 = vmatprep.subr.mxu0 0.0
  %3032 = vmatpush1.msra.mxu0 0.0
  %3033 = vmatprep.subr.mxu0 0.0
  %3034 = vmatpush1.msra.mxu0 0.0
  %3035 = vmatprep.subr.mxu0 0.0
  %3036 = vmatpush1.msra.mxu0 0.0
  %3037 = vmatprep.subr.mxu0 0.0
  %3038 = vmatpush1.msra.mxu0 0.0
  %3039 = vmatprep.subr.mxu0 0.0
  %3040 = vmatpush1.msra.mxu0 0.0
  %3041 = vmatprep.subr.mxu0 0.0
  %3042 = vmatpush1.msra.mxu0 0.0
  %3043 = vmatprep.subr.mxu0 0.0
  %3044 = vmatpush1.msra.mxu0 0.0
  %3045 = vmatprep.subr.mxu0 0.0
  %3046 = vmatpush1.msra.mxu0 0.0
  %3047 = vmatprep.subr.mxu0 0.0
  %3048 = vmatpush1.msra.mxu0 0.0
  %3049 = vmatprep.subr.mxu0 0.0
  %3050 = vmatpush1.msra.mxu0 0.0
  %3051 = vmatprep.subr.mxu0 0.0
  %3052 = vmatpush1.msra.mxu0 0.0
  %3053 = vmatprep.subr.mxu0 0.0
  %3054 = vmatpush1.msra.mxu0 0.0
  %3055 = vmatprep.subr.mxu0 0.0
  %3056 = vmatpush1.msra.mxu0 0.0
  %3057 = vmatprep.subr.mxu0 0.0
  %3058 = vmatpush1.msra.mxu0 0.0
  %3059 = vmatprep.subr.mxu0 0.0
  %3060 = vmatpush1.msra.mxu0 0.0
  %3061 = vmatprep.subr.mxu0 0.0
  %3062 = vmatpush1.msra.mxu0 0.0
  %3063 = vmatprep.subr.mxu0 0.0
  %3064 = vmatpush1.msra.mxu0 0.0
  %3065 = vmatprep.subr.mxu0 0.0
  %3066 = vmatpush1.msra.mxu0 0.0
  %3067 = vmatprep.subr.mxu0 0.0
  %3068 = vmatpush1.msra.mxu0 0.0
  %3069 = vmatprep.subr.mxu0 0.0
  %3070 = vmatpush1.msra.mxu0 0.0
  %3071 = vmatprep.subr.mxu0 0.0
  %3072 = vmatpush1.msra.mxu0 0.0
  %3073 = vmatprep.subr.mxu0 0.0
  %3074 = vmatpush1.msra.mxu0 0.0
  %3075 = vmatprep.subr.mxu0 0.0
  %3076 = vmatpush1.msra.mxu0 0.0
  %3077 = vmatprep.mubr.f32.mxu0 0.0
  %3078 = vmatmul.mubr.f32.gmra.mrb[0].mxu0 %v2851
  %v3079 = vpop.f32.mrb[0].mxu0
  %v3080 = vadd.f32 0.0, %v3079
  %v3081 = vpop.f32.mrb[0].mxu0
  %v3082 = vadd.f32 0.0, %v3081
  %3083 = vdwg.mxu0
  %v3084 = vadd.f32 %v2684, %v2938
  %v3085 = vadd.f32 %v2686, %v2940
  %v3086 = vadd.f32 %v2755, %v3009
  %v3087 = vadd.f32 %v2757, %v3011
  %v3088 = vadd.f32 %v2826, %v3080
  %v3089 = vadd.f32 %v2828, %v3082
  %3090 = vrot.lane.b32.xlu0 %v2316, 1
  %v3091 = vpop.permute.xlu0 %3090
  %3092 = vrot.lane.b32.xlu0 %v2317, 1
  %v3093 = vpop.permute.xlu0 %3092
  %3094 = vrot.lane.b32.xlu0 %v2318, 1
  %v3095 = vpop.permute.xlu0 %3094
  %3096 = vrot.lane.b32.xlu0 %v2319, 1
  %v3097 = vpop.permute.xlu0 %3096
  %3098 = vrot.lane.b32.xlu0 %v2320, 1
  %v3099 = vpop.permute.xlu0 %3098
  %3100 = vrot.lane.b32.xlu0 %v2321, 1
  %v3101 = vpop.permute.xlu0 %3100
  %v3102 = vsel %vm767, %v3099, %v3101
  %v3103 = vsel %vm767, %v3097, %v3099
  %v3104 = vsel %vm767, %v3095, %v3097
  %v3105 = vsel %vm767, %v3093, %v3095
  %v3106 = vsel %vm767, %v3091, %v3093
  %v3107 = vsel %vm767, %v3101, %v3091
  %s3108 = scalar_lea.vmem %s5, 12
  %v3109 = vld [vmem:[%s3108] sm:$0xf]
  %v3111 = vsel %vm2361, %v3109, 0
  %v3114 = vsel %vm2231, %v3107, 0
  %v3117 = vsel %vm2231, %v3106, 0
  %v3120 = vsel %vm2231, %v3105, 0
  %v3123 = vsel %vm2231, %v3104, 0
  %v3126 = vsel %vm2231, %v3103, 0
  %v3129 = vsel %vm2231, %v3102, 0
  %3131 = vmatprep.subr.mxu0 %v3117
  %3132 = vmatpush1.msra.mxu0 %v3114
  %3133 = vmatprep.subr.mxu0 0.0
  %3134 = vmatpush1.msra.mxu0 0.0
  %3135 = vmatprep.subr.mxu0 0.0
  %3136 = vmatpush1.msra.mxu0 0.0
  %3137 = vmatprep.subr.mxu0 0.0
  %3138 = vmatpush1.msra.mxu0 0.0
  %3139 = vmatprep.subr.mxu0 0.0
  %3140 = vmatpush1.msra.mxu0 0.0
  %3141 = vmatprep.subr.mxu0 0.0
  %3142 = vmatpush1.msra.mxu0 0.0
  %3143 = vmatprep.subr.mxu0 0.0
  %3144 = vmatpush1.msra.mxu0 0.0
  %3145 = vmatprep.subr.mxu0 0.0
  %3146 = vmatpush1.msra.mxu0 0.0
  %3147 = vmatprep.subr.mxu0 0.0
  %3148 = vmatpush1.msra.mxu0 0.0
  %3149 = vmatprep.subr.mxu0 0.0
  %3150 = vmatpush1.msra.mxu0 0.0
  %3151 = vmatprep.subr.mxu0 0.0
  %3152 = vmatpush1.msra.mxu0 0.0
  %3153 = vmatprep.subr.mxu0 0.0
  %3154 = vmatpush1.msra.mxu0 0.0
  %3155 = vmatprep.subr.mxu0 0.0
  %3156 = vmatpush1.msra.mxu0 0.0
  %3157 = vmatprep.subr.mxu0 0.0
  %3158 = vmatpush1.msra.mxu0 0.0
  %3159 = vmatprep.subr.mxu0 0.0
  %3160 = vmatpush1.msra.mxu0 0.0
  %3161 = vmatprep.subr.mxu0 0.0
  %3162 = vmatpush1.msra.mxu0 0.0
  %3163 = vmatprep.subr.mxu0 0.0
  %3164 = vmatpush1.msra.mxu0 0.0
  %3165 = vmatprep.subr.mxu0 0.0
  %3166 = vmatpush1.msra.mxu0 0.0
  %3167 = vmatprep.subr.mxu0 0.0
  %3168 = vmatpush1.msra.mxu0 0.0
  %3169 = vmatprep.subr.mxu0 0.0
  %3170 = vmatpush1.msra.mxu0 0.0
  %3171 = vmatprep.subr.mxu0 0.0
  %3172 = vmatpush1.msra.mxu0 0.0
  %3173 = vmatprep.subr.mxu0 0.0
  %3174 = vmatpush1.msra.mxu0 0.0
  %3175 = vmatprep.subr.mxu0 0.0
  %3176 = vmatpush1.msra.mxu0 0.0
  %3177 = vmatprep.subr.mxu0 0.0
  %3178 = vmatpush1.msra.mxu0 0.0
  %3179 = vmatprep.subr.mxu0 0.0
  %3180 = vmatpush1.msra.mxu0 0.0
  %3181 = vmatprep.subr.mxu0 0.0
  %3182 = vmatpush1.msra.mxu0 0.0
  %3183 = vmatprep.subr.mxu0 0.0
  %3184 = vmatpush1.msra.mxu0 0.0
  %3185 = vmatprep.subr.mxu0 0.0
  %3186 = vmatpush1.msra.mxu0 0.0
  %3187 = vmatprep.subr.mxu0 0.0
  %3188 = vmatpush1.msra.mxu0 0.0
  %3189 = vmatprep.subr.mxu0 0.0
  %3190 = vmatpush1.msra.mxu0 0.0
  %3191 = vmatprep.subr.mxu0 0.0
  %3192 = vmatpush1.msra.mxu0 0.0
  %3193 = vmatprep.subr.mxu0 0.0
  %3194 = vmatpush1.msra.mxu0 0.0
  %3195 = vmatprep.mubr.f32.mxu0 0.0
  %3196 = vmatmul.mubr.f32.gmra.mrb[0].mxu0 %v3111
  %v3197 = vpop.f32.mrb[0].mxu0
  %v3198 = vadd.f32 0.0, %v3197
  %v3199 = vpop.f32.mrb[0].mxu0
  %v3200 = vadd.f32 0.0, %v3199
  %3201 = vdwg.mxu0
  %3202 = vmatprep.subr.mxu0 %v3123
  %3203 = vmatpush1.msra.mxu0 %v3120
  %3204 = vmatprep.subr.mxu0 0.0
  %3205 = vmatpush1.msra.mxu0 0.0
  %3206 = vmatprep.subr.mxu0 0.0
  %3207 = vmatpush1.msra.mxu0 0.0
  %3208 = vmatprep.subr.mxu0 0.0
  %3209 = vmatpush1.msra.mxu0 0.0
  %3210 = vmatprep.subr.mxu0 0.0
  %3211 = vmatpush1.msra.mxu0 0.0
  %3212 = vmatprep.subr.mxu0 0.0
  %3213 = vmatpush1.msra.mxu0 0.0
  %3214 = vmatprep.subr.mxu0 0.0
  %3215 = vmatpush1.msra.mxu0 0.0
  %3216 = vmatprep.subr.mxu0 0.0
  %3217 = vmatpush1.msra.mxu0 0.0
  %3218 = vmatprep.subr.mxu0 0.0
  %3219 = vmatpush1.msra.mxu0 0.0
  %3220 = vmatprep.subr.mxu0 0.0
  %3221 = vmatpush1.msra.mxu0 0.0
  %3222 = vmatprep.subr.mxu0 0.0
  %3223 = vmatpush1.msra.mxu0 0.0
  %3224 = vmatprep.subr.mxu0 0.0
  %3225 = vmatpush1.msra.mxu0 0.0
  %3226 = vmatprep.subr.mxu0 0.0
  %3227 = vmatpush1.msra.mxu0 0.0
  %3228 = vmatprep.subr.mxu0 0.0
  %3229 = vmatpush1.msra.mxu0 0.0
  %3230 = vmatprep.subr.mxu0 0.0
  %3231 = vmatpush1.msra.mxu0 0.0
  %3232 = vmatprep.subr.mxu0 0.0
  %3233 = vmatpush1.msra.mxu0 0.0
  %3234 = vmatprep.subr.mxu0 0.0
  %3235 = vmatpush1.msra.mxu0 0.0
  %3236 = vmatprep.subr.mxu0 0.0
  %3237 = vmatpush1.msra.mxu0 0.0
  %3238 = vmatprep.subr.mxu0 0.0
  %3239 = vmatpush1.msra.mxu0 0.0
  %3240 = vmatprep.subr.mxu0 0.0
  %3241 = vmatpush1.msra.mxu0 0.0
  %3242 = vmatprep.subr.mxu0 0.0
  %3243 = vmatpush1.msra.mxu0 0.0
  %3244 = vmatprep.subr.mxu0 0.0
  %3245 = vmatpush1.msra.mxu0 0.0
  %3246 = vmatprep.subr.mxu0 0.0
  %3247 = vmatpush1.msra.mxu0 0.0
  %3248 = vmatprep.subr.mxu0 0.0
  %3249 = vmatpush1.msra.mxu0 0.0
  %3250 = vmatprep.subr.mxu0 0.0
  %3251 = vmatpush1.msra.mxu0 0.0
  %3252 = vmatprep.subr.mxu0 0.0
  %3253 = vmatpush1.msra.mxu0 0.0
  %3254 = vmatprep.subr.mxu0 0.0
  %3255 = vmatpush1.msra.mxu0 0.0
  %3256 = vmatprep.subr.mxu0 0.0
  %3257 = vmatpush1.msra.mxu0 0.0
  %3258 = vmatprep.subr.mxu0 0.0
  %3259 = vmatpush1.msra.mxu0 0.0
  %3260 = vmatprep.subr.mxu0 0.0
  %3261 = vmatpush1.msra.mxu0 0.0
  %3262 = vmatprep.subr.mxu0 0.0
  %3263 = vmatpush1.msra.mxu0 0.0
  %3264 = vmatprep.subr.mxu0 0.0
  %3265 = vmatpush1.msra.mxu0 0.0
  %3266 = vmatprep.mubr.f32.mxu0 0.0
  %3267 = vmatmul.mubr.f32.gmra.mrb[0].mxu0 %v3111
  %v3268 = vpop.f32.mrb[0].mxu0
  %v3269 = vadd.f32 0.0, %v3268
  %v3270 = vpop.f32.mrb[0].mxu0
  %v3271 = vadd.f32 0.0, %v3270
  %3272 = vdwg.mxu0
  %3273 = vmatprep.subr.mxu0 %v3129
  %3274 = vmatpush1.msra.mxu0 %v3126
  %3275 = vmatprep.subr.mxu0 0.0
  %3276 = vmatpush1.msra.mxu0 0.0
  %3277 = vmatprep.subr.mxu0 0.0
  %3278 = vmatpush1.msra.mxu0 0.0
  %3279 = vmatprep.subr.mxu0 0.0
  %3280 = vmatpush1.msra.mxu0 0.0
  %3281 = vmatprep.subr.mxu0 0.0
  %3282 = vmatpush1.msra.mxu0 0.0
  %3283 = vmatprep.subr.mxu0 0.0
  %3284 = vmatpush1.msra.mxu0 0.0
  %3285 = vmatprep.subr.mxu0 0.0
  %3286 = vmatpush1.msra.mxu0 0.0
  %3287 = vmatprep.subr.mxu0 0.0
  %3288 = vmatpush1.msra.mxu0 0.0
  %3289 = vmatprep.subr.mxu0 0.0
  %3290 = vmatpush1.msra.mxu0 0.0
  %3291 = vmatprep.subr.mxu0 0.0
  %3292 = vmatpush1.msra.mxu0 0.0
  %3293 = vmatprep.subr.mxu0 0.0
  %3294 = vmatpush1.msra.mxu0 0.0
  %3295 = vmatprep.subr.mxu0 0.0
  %3296 = vmatpush1.msra.mxu0 0.0
  %3297 = vmatprep.subr.mxu0 0.0
  %3298 = vmatpush1.msra.mxu0 0.0
  %3299 = vmatprep.subr.mxu0 0.0
  %3300 = vmatpush1.msra.mxu0 0.0
  %3301 = vmatprep.subr.mxu0 0.0
  %3302 = vmatpush1.msra.mxu0 0.0
  %3303 = vmatprep.subr.mxu0 0.0
  %3304 = vmatpush1.msra.mxu0 0.0
  %3305 = vmatprep.subr.mxu0 0.0
  %3306 = vmatpush1.msra.mxu0 0.0
  %3307 = vmatprep.subr.mxu0 0.0
  %3308 = vmatpush1.msra.mxu0 0.0
  %3309 = vmatprep.subr.mxu0 0.0
  %3310 = vmatpush1.msra.mxu0 0.0
  %3311 = vmatprep.subr.mxu0 0.0
  %3312 = vmatpush1.msra.mxu0 0.0
  %3313 = vmatprep.subr.mxu0 0.0
  %3314 = vmatpush1.msra.mxu0 0.0
  %3315 = vmatprep.subr.mxu0 0.0
  %3316 = vmatpush1.msra.mxu0 0.0
  %3317 = vmatprep.subr.mxu0 0.0
  %3318 = vmatpush1.msra.mxu0 0.0
  %3319 = vmatprep.subr.mxu0 0.0
  %3320 = vmatpush1.msra.mxu0 0.0
  %3321 = vmatprep.subr.mxu0 0.0
  %3322 = vmatpush1.msra.mxu0 0.0
  %3323 = vmatprep.subr.mxu0 0.0
  %3324 = vmatpush1.msra.mxu0 0.0
  %3325 = vmatprep.subr.mxu0 0.0
  %3326 = vmatpush1.msra.mxu0 0.0
  %3327 = vmatprep.subr.mxu0 0.0
  %3328 = vmatpush1.msra.mxu0 0.0
  %3329 = vmatprep.subr.mxu0 0.0
  %3330 = vmatpush1.msra.mxu0 0.0
  %3331 = vmatprep.subr.mxu0 0.0
  %3332 = vmatpush1.msra.mxu0 0.0
  %3333 = vmatprep.subr.mxu0 0.0
  %3334 = vmatpush1.msra.mxu0 0.0
  %3335 = vmatprep.subr.mxu0 0.0
  %3336 = vmatpush1.msra.mxu0 0.0
  %3337 = vmatprep.mubr.f32.mxu0 0.0
  %3338 = vmatmul.mubr.f32.gmra.mrb[0].mxu0 %v3111
  %v3339 = vpop.f32.mrb[0].mxu0
  %v3340 = vadd.f32 0.0, %v3339
  %v3341 = vpop.f32.mrb[0].mxu0
  %v3342 = vadd.f32 0.0, %v3341
  %3343 = vdwg.mxu0
  %v3344 = vadd.f32 %v3084, %v3198
  %v3345 = vadd.f32 %v3085, %v3200
  %v3346 = vadd.f32 %v3086, %v3269
  %v3347 = vadd.f32 %v3087, %v3271
  %v3348 = vadd.f32 %v3088, %v3340
  %v3349 = vadd.f32 %v3089, %v3342
  %s3350 = scalar_lea.vmem %s5, 16
  %v3351 = vld [vmem:[%s3350] sm:$0xf]
  %v3353 = vsel %vm2361, %v3351, 0
  %v3356 = vsel %vm2231, %v2316, 0
  %v3359 = vsel %vm2231, %v2317, 0
  %v3362 = vsel %vm2231, %v2318, 0
  %v3365 = vsel %vm2231, %v2319, 0
  %v3368 = vsel %vm2231, %v2320, 0
  %v3371 = vsel %vm2231, %v2321, 0
  %3373 = vmatprep.subr.mxu0 %v3359
  %3374 = vmatpush1.msra.mxu0 %v3356
  %3375 = vmatprep.subr.mxu0 0.0
  %3376 = vmatpush1.msra.mxu0 0.0
  %3377 = vmatprep.subr.mxu0 0.0
  %3378 = vmatpush1.msra.mxu0 0.0
  %3379 = vmatprep.subr.mxu0 0.0
  %3380 = vmatpush1.msra.mxu0 0.0
  %3381 = vmatprep.subr.mxu0 0.0
  %3382 = vmatpush1.msra.mxu0 0.0
  %3383 = vmatprep.subr.mxu0 0.0
  %3384 = vmatpush1.msra.mxu0 0.0
  %3385 = vmatprep.subr.mxu0 0.0
  %3386 = vmatpush1.msra.mxu0 0.0
  %3387 = vmatprep.subr.mxu0 0.0
  %3388 = vmatpush1.msra.mxu0 0.0
  %3389 = vmatprep.subr.mxu0 0.0
  %3390 = vmatpush1.msra.mxu0 0.0
  %3391 = vmatprep.subr.mxu0 0.0
  %3392 = vmatpush1.msra.mxu0 0.0
  %3393 = vmatprep.subr.mxu0 0.0
  %3394 = vmatpush1.msra.mxu0 0.0
  %3395 = vmatprep.subr.mxu0 0.0
  %3396 = vmatpush1.msra.mxu0 0.0
  %3397 = vmatprep.subr.mxu0 0.0
  %3398 = vmatpush1.msra.mxu0 0.0
  %3399 = vmatprep.subr.mxu0 0.0
  %3400 = vmatpush1.msra.mxu0 0.0
  %3401 = vmatprep.subr.mxu0 0.0
  %3402 = vmatpush1.msra.mxu0 0.0
  %3403 = vmatprep.subr.mxu0 0.0
  %3404 = vmatpush1.msra.mxu0 0.0
  %3405 = vmatprep.subr.mxu0 0.0
  %3406 = vmatpush1.msra.mxu0 0.0
  %3407 = vmatprep.subr.mxu0 0.0
  %3408 = vmatpush1.msra.mxu0 0.0
  %3409 = vmatprep.subr.mxu0 0.0
  %3410 = vmatpush1.msra.mxu0 0.0
  %3411 = vmatprep.subr.mxu0 0.0
  %3412 = vmatpush1.msra.mxu0 0.0
  %3413 = vmatprep.subr.mxu0 0.0
  %3414 = vmatpush1.msra.mxu0 0.0
  %3415 = vmatprep.subr.mxu0 0.0
  %3416 = vmatpush1.msra.mxu0 0.0
  %3417 = vmatprep.subr.mxu0 0.0
  %3418 = vmatpush1.msra.mxu0 0.0
  %3419 = vmatprep.subr.mxu0 0.0
  %3420 = vmatpush1.msra.mxu0 0.0
  %3421 = vmatprep.subr.mxu0 0.0
  %3422 = vmatpush1.msra.mxu0 0.0
  %3423 = vmatprep.subr.mxu0 0.0
  %3424 = vmatpush1.msra.mxu0 0.0
  %3425 = vmatprep.subr.mxu0 0.0
  %3426 = vmatpush1.msra.mxu0 0.0
  %3427 = vmatprep.subr.mxu0 0.0
  %3428 = vmatpush1.msra.mxu0 0.0
  %3429 = vmatprep.subr.mxu0 0.0
  %3430 = vmatpush1.msra.mxu0 0.0
  %3431 = vmatprep.subr.mxu0 0.0
  %3432 = vmatpush1.msra.mxu0 0.0
  %3433 = vmatprep.subr.mxu0 0.0
  %3434 = vmatpush1.msra.mxu0 0.0
  %3435 = vmatprep.subr.mxu0 0.0
  %3436 = vmatpush1.msra.mxu0 0.0
  %3437 = vmatprep.mubr.f32.mxu0 0.0
  %3438 = vmatmul.mubr.f32.gmra.mrb[0].mxu0 %v3353
  %v3439 = vpop.f32.mrb[0].mxu0
  %v3440 = vadd.f32 0.0, %v3439
  %v3441 = vpop.f32.mrb[0].mxu0
  %v3442 = vadd.f32 0.0, %v3441
  %3443 = vdwg.mxu0
  %3444 = vmatprep.subr.mxu0 %v3365
  %3445 = vmatpush1.msra.mxu0 %v3362
  %3446 = vmatprep.subr.mxu0 0.0
  %3447 = vmatpush1.msra.mxu0 0.0
  %3448 = vmatprep.subr.mxu0 0.0
  %3449 = vmatpush1.msra.mxu0 0.0
  %3450 = vmatprep.subr.mxu0 0.0
  %3451 = vmatpush1.msra.mxu0 0.0
  %3452 = vmatprep.subr.mxu0 0.0
  %3453 = vmatpush1.msra.mxu0 0.0
  %3454 = vmatprep.subr.mxu0 0.0
  %3455 = vmatpush1.msra.mxu0 0.0
  %3456 = vmatprep.subr.mxu0 0.0
  %3457 = vmatpush1.msra.mxu0 0.0
  %3458 = vmatprep.subr.mxu0 0.0
  %3459 = vmatpush1.msra.mxu0 0.0
  %3460 = vmatprep.subr.mxu0 0.0
  %3461 = vmatpush1.msra.mxu0 0.0
  %3462 = vmatprep.subr.mxu0 0.0
  %3463 = vmatpush1.msra.mxu0 0.0
  %3464 = vmatprep.subr.mxu0 0.0
  %3465 = vmatpush1.msra.mxu0 0.0
  %3466 = vmatprep.subr.mxu0 0.0
  %3467 = vmatpush1.msra.mxu0 0.0
  %3468 = vmatprep.subr.mxu0 0.0
  %3469 = vmatpush1.msra.mxu0 0.0
  %3470 = vmatprep.subr.mxu0 0.0
  %3471 = vmatpush1.msra.mxu0 0.0
  %3472 = vmatprep.subr.mxu0 0.0
  %3473 = vmatpush1.msra.mxu0 0.0
  %3474 = vmatprep.subr.mxu0 0.0
  %3475 = vmatpush1.msra.mxu0 0.0
  %3476 = vmatprep.subr.mxu0 0.0
  %3477 = vmatpush1.msra.mxu0 0.0
  %3478 = vmatprep.subr.mxu0 0.0
  %3479 = vmatpush1.msra.mxu0 0.0
  %3480 = vmatprep.subr.mxu0 0.0
  %3481 = vmatpush1.msra.mxu0 0.0
  %3482 = vmatprep.subr.mxu0 0.0
  %3483 = vmatpush1.msra.mxu0 0.0
  %3484 = vmatprep.subr.mxu0 0.0
  %3485 = vmatpush1.msra.mxu0 0.0
  %3486 = vmatprep.subr.mxu0 0.0
  %3487 = vmatpush1.msra.mxu0 0.0
  %3488 = vmatprep.subr.mxu0 0.0
  %3489 = vmatpush1.msra.mxu0 0.0
  %3490 = vmatprep.subr.mxu0 0.0
  %3491 = vmatpush1.msra.mxu0 0.0
  %3492 = vmatprep.subr.mxu0 0.0
  %3493 = vmatpush1.msra.mxu0 0.0
  %3494 = vmatprep.subr.mxu0 0.0
  %3495 = vmatpush1.msra.mxu0 0.0
  %3496 = vmatprep.subr.mxu0 0.0
  %3497 = vmatpush1.msra.mxu0 0.0
  %3498 = vmatprep.subr.mxu0 0.0
  %3499 = vmatpush1.msra.mxu0 0.0
  %3500 = vmatprep.subr.mxu0 0.0
  %3501 = vmatpush1.msra.mxu0 0.0
  %3502 = vmatprep.subr.mxu0 0.0
  %3503 = vmatpush1.msra.mxu0 0.0
  %3504 = vmatprep.subr.mxu0 0.0
  %3505 = vmatpush1.msra.mxu0 0.0
  %3506 = vmatprep.subr.mxu0 0.0
  %3507 = vmatpush1.msra.mxu0 0.0
  %3508 = vmatprep.mubr.f32.mxu0 0.0
  %3509 = vmatmul.mubr.f32.gmra.mrb[0].mxu0 %v3353
  %v3510 = vpop.f32.mrb[0].mxu0
  %v3511 = vadd.f32 0.0, %v3510
  %v3512 = vpop.f32.mrb[0].mxu0
  %v3513 = vadd.f32 0.0, %v3512
  %3514 = vdwg.mxu0
  %3515 = vmatprep.subr.mxu0 %v3371
  %3516 = vmatpush1.msra.mxu0 %v3368
  %3517 = vmatprep.subr.mxu0 0.0
  %3518 = vmatpush1.msra.mxu0 0.0
  %3519 = vmatprep.subr.mxu0 0.0
  %3520 = vmatpush1.msra.mxu0 0.0
  %3521 = vmatprep.subr.mxu0 0.0
  %3522 = vmatpush1.msra.mxu0 0.0
  %3523 = vmatprep.subr.mxu0 0.0
  %3524 = vmatpush1.msra.mxu0 0.0
  %3525 = vmatprep.subr.mxu0 0.0
  %3526 = vmatpush1.msra.mxu0 0.0
  %3527 = vmatprep.subr.mxu0 0.0
  %3528 = vmatpush1.msra.mxu0 0.0
  %3529 = vmatprep.subr.mxu0 0.0
  %3530 = vmatpush1.msra.mxu0 0.0
  %3531 = vmatprep.subr.mxu0 0.0
  %3532 = vmatpush1.msra.mxu0 0.0
  %3533 = vmatprep.subr.mxu0 0.0
  %3534 = vmatpush1.msra.mxu0 0.0
  %3535 = vmatprep.subr.mxu0 0.0
  %3536 = vmatpush1.msra.mxu0 0.0
  %3537 = vmatprep.subr.mxu0 0.0
  %3538 = vmatpush1.msra.mxu0 0.0
  %3539 = vmatprep.subr.mxu0 0.0
  %3540 = vmatpush1.msra.mxu0 0.0
  %3541 = vmatprep.subr.mxu0 0.0
  %3542 = vmatpush1.msra.mxu0 0.0
  %3543 = vmatprep.subr.mxu0 0.0
  %3544 = vmatpush1.msra.mxu0 0.0
  %3545 = vmatprep.subr.mxu0 0.0
  %3546 = vmatpush1.msra.mxu0 0.0
  %3547 = vmatprep.subr.mxu0 0.0
  %3548 = vmatpush1.msra.mxu0 0.0
  %3549 = vmatprep.subr.mxu0 0.0
  %3550 = vmatpush1.msra.mxu0 0.0
  %3551 = vmatprep.subr.mxu0 0.0
  %3552 = vmatpush1.msra.mxu0 0.0
  %3553 = vmatprep.subr.mxu0 0.0
  %3554 = vmatpush1.msra.mxu0 0.0
  %3555 = vmatprep.subr.mxu0 0.0
  %3556 = vmatpush1.msra.mxu0 0.0
  %3557 = vmatprep.subr.mxu0 0.0
  %3558 = vmatpush1.msra.mxu0 0.0
  %3559 = vmatprep.subr.mxu0 0.0
  %3560 = vmatpush1.msra.mxu0 0.0
  %3561 = vmatprep.subr.mxu0 0.0
  %3562 = vmatpush1.msra.mxu0 0.0
  %3563 = vmatprep.subr.mxu0 0.0
  %3564 = vmatpush1.msra.mxu0 0.0
  %3565 = vmatprep.subr.mxu0 0.0
  %3566 = vmatpush1.msra.mxu0 0.0
  %3567 = vmatprep.subr.mxu0 0.0
  %3568 = vmatpush1.msra.mxu0 0.0
  %3569 = vmatprep.subr.mxu0 0.0
  %3570 = vmatpush1.msra.mxu0 0.0
  %3571 = vmatprep.subr.mxu0 0.0
  %3572 = vmatpush1.msra.mxu0 0.0
  %3573 = vmatprep.subr.mxu0 0.0
  %3574 = vmatpush1.msra.mxu0 0.0
  %3575 = vmatprep.subr.mxu0 0.0
  %3576 = vmatpush1.msra.mxu0 0.0
  %3577 = vmatprep.subr.mxu0 0.0
  %3578 = vmatpush1.msra.mxu0 0.0
  %3579 = vmatprep.mubr.f32.mxu0 0.0
  %3580 = vmatmul.mubr.f32.gmra.mrb[0].mxu0 %v3353
  %v3581 = vpop.f32.mrb[0].mxu0
  %v3582 = vadd.f32 0.0, %v3581
  %v3583 = vpop.f32.mrb[0].mxu0
  %v3584 = vadd.f32 0.0, %v3583
  %3585 = vdwg.mxu0
  %v3586 = vadd.f32 %v3344, %v3440
  %v3587 = vadd.f32 %v3345, %v3442
  %v3588 = vadd.f32 %v3346, %v3511
  %v3589 = vadd.f32 %v3347, %v3513
  %v3590 = vadd.f32 %v3348, %v3582
  %v3591 = vadd.f32 %v3349, %v3584
  %3592 = vrot.lane.b32.xlu0 %v2316, 127
  %v3593 = vpop.permute.xlu0 %3592
  %3594 = vrot.lane.b32.xlu0 %v2317, 127
  %v3595 = vpop.permute.xlu0 %3594
  %3596 = vrot.lane.b32.xlu0 %v2318, 127
  %v3597 = vpop.permute.xlu0 %3596
  %3598 = vrot.lane.b32.xlu0 %v2319, 127
  %v3599 = vpop.permute.xlu0 %3598
  %3600 = vrot.lane.b32.xlu0 %v2320, 127
  %v3601 = vpop.permute.xlu0 %3600
  %3602 = vrot.lane.b32.xlu0 %v2321, 127
  %v3603 = vpop.permute.xlu0 %3602
  %v3604 = vsel %vm1234, %v3601, %v3603
  %v3605 = vsel %vm1234, %v3599, %v3601
  %v3606 = vsel %vm1234, %v3597, %v3599
  %v3607 = vsel %vm1234, %v3595, %v3597
  %v3608 = vsel %vm1234, %v3593, %v3595
  %v3609 = vsel %vm1234, %v3603, %v3593
  %s3610 = scalar_lea.vmem %s5, 20
  %v3611 = vld [vmem:[%s3610] sm:$0xf]
  %v3613 = vsel %vm2361, %v3611, 0
  %v3616 = vsel %vm2231, %v3608, 0
  %v3619 = vsel %vm2231, %v3607, 0
  %v3622 = vsel %vm2231, %v3606, 0
  %v3625 = vsel %vm2231, %v3605, 0
  %v3628 = vsel %vm2231, %v3604, 0
  %v3631 = vsel %vm2231, %v3609, 0
  %3633 = vmatprep.subr.mxu0 %v3619
  %3634 = vmatpush1.msra.mxu0 %v3616
  %3635 = vmatprep.subr.mxu0 0.0
  %3636 = vmatpush1.msra.mxu0 0.0
  %3637 = vmatprep.subr.mxu0 0.0
  %3638 = vmatpush1.msra.mxu0 0.0
  %3639 = vmatprep.subr.mxu0 0.0
  %3640 = vmatpush1.msra.mxu0 0.0
  %3641 = vmatprep.subr.mxu0 0.0
  %3642 = vmatpush1.msra.mxu0 0.0
  %3643 = vmatprep.subr.mxu0 0.0
  %3644 = vmatpush1.msra.mxu0 0.0
  %3645 = vmatprep.subr.mxu0 0.0
  %3646 = vmatpush1.msra.mxu0 0.0
  %3647 = vmatprep.subr.mxu0 0.0
  %3648 = vmatpush1.msra.mxu0 0.0
  %3649 = vmatprep.subr.mxu0 0.0
  %3650 = vmatpush1.msra.mxu0 0.0
  %3651 = vmatprep.subr.mxu0 0.0
  %3652 = vmatpush1.msra.mxu0 0.0
  %3653 = vmatprep.subr.mxu0 0.0
  %3654 = vmatpush1.msra.mxu0 0.0
  %3655 = vmatprep.subr.mxu0 0.0
  %3656 = vmatpush1.msra.mxu0 0.0
  %3657 = vmatprep.subr.mxu0 0.0
  %3658 = vmatpush1.msra.mxu0 0.0
  %3659 = vmatprep.subr.mxu0 0.0
  %3660 = vmatpush1.msra.mxu0 0.0
  %3661 = vmatprep.subr.mxu0 0.0
  %3662 = vmatpush1.msra.mxu0 0.0
  %3663 = vmatprep.subr.mxu0 0.0
  %3664 = vmatpush1.msra.mxu0 0.0
  %3665 = vmatprep.subr.mxu0 0.0
  %3666 = vmatpush1.msra.mxu0 0.0
  %3667 = vmatprep.subr.mxu0 0.0
  %3668 = vmatpush1.msra.mxu0 0.0
  %3669 = vmatprep.subr.mxu0 0.0
  %3670 = vmatpush1.msra.mxu0 0.0
  %3671 = vmatprep.subr.mxu0 0.0
  %3672 = vmatpush1.msra.mxu0 0.0
  %3673 = vmatprep.subr.mxu0 0.0
  %3674 = vmatpush1.msra.mxu0 0.0
  %3675 = vmatprep.subr.mxu0 0.0
  %3676 = vmatpush1.msra.mxu0 0.0
  %3677 = vmatprep.subr.mxu0 0.0
  %3678 = vmatpush1.msra.mxu0 0.0
  %3679 = vmatprep.subr.mxu0 0.0
  %3680 = vmatpush1.msra.mxu0 0.0
  %3681 = vmatprep.subr.mxu0 0.0
  %3682 = vmatpush1.msra.mxu0 0.0
  %3683 = vmatprep.subr.mxu0 0.0
  %3684 = vmatpush1.msra.mxu0 0.0
  %3685 = vmatprep.subr.mxu0 0.0
  %3686 = vmatpush1.msra.mxu0 0.0
  %3687 = vmatprep.subr.mxu0 0.0
  %3688 = vmatpush1.msra.mxu0 0.0
  %3689 = vmatprep.subr.mxu0 0.0
  %3690 = vmatpush1.msra.mxu0 0.0
  %3691 = vmatprep.subr.mxu0 0.0
  %3692 = vmatpush1.msra.mxu0 0.0
  %3693 = vmatprep.subr.mxu0 0.0
  %3694 = vmatpush1.msra.mxu0 0.0
  %3695 = vmatprep.subr.mxu0 0.0
  %3696 = vmatpush1.msra.mxu0 0.0
  %3697 = vmatprep.mubr.f32.mxu0 0.0
  %3698 = vmatmul.mubr.f32.gmra.mrb[0].mxu0 %v3613
  %v3699 = vpop.f32.mrb[0].mxu0
  %v3700 = vadd.f32 0.0, %v3699
  %v3701 = vpop.f32.mrb[0].mxu0
  %v3702 = vadd.f32 0.0, %v3701
  %3703 = vdwg.mxu0
  %3704 = vmatprep.subr.mxu0 %v3625
  %3705 = vmatpush1.msra.mxu0 %v3622
  %3706 = vmatprep.subr.mxu0 0.0
  %3707 = vmatpush1.msra.mxu0 0.0
  %3708 = vmatprep.subr.mxu0 0.0
  %3709 = vmatpush1.msra.mxu0 0.0
  %3710 = vmatprep.subr.mxu0 0.0
  %3711 = vmatpush1.msra.mxu0 0.0
  %3712 = vmatprep.subr.mxu0 0.0
  %3713 = vmatpush1.msra.mxu0 0.0
  %3714 = vmatprep.subr.mxu0 0.0
  %3715 = vmatpush1.msra.mxu0 0.0
  %3716 = vmatprep.subr.mxu0 0.0
  %3717 = vmatpush1.msra.mxu0 0.0
  %3718 = vmatprep.subr.mxu0 0.0
  %3719 = vmatpush1.msra.mxu0 0.0
  %3720 = vmatprep.subr.mxu0 0.0
  %3721 = vmatpush1.msra.mxu0 0.0
  %3722 = vmatprep.subr.mxu0 0.0
  %3723 = vmatpush1.msra.mxu0 0.0
  %3724 = vmatprep.subr.mxu0 0.0
  %3725 = vmatpush1.msra.mxu0 0.0
  %3726 = vmatprep.subr.mxu0 0.0
  %3727 = vmatpush1.msra.mxu0 0.0
  %3728 = vmatprep.subr.mxu0 0.0
  %3729 = vmatpush1.msra.mxu0 0.0
  %3730 = vmatprep.subr.mxu0 0.0
  %3731 = vmatpush1.msra.mxu0 0.0
  %3732 = vmatprep.subr.mxu0 0.0
  %3733 = vmatpush1.msra.mxu0 0.0
  %3734 = vmatprep.subr.mxu0 0.0
  %3735 = vmatpush1.msra.mxu0 0.0
  %3736 = vmatprep.subr.mxu0 0.0
  %3737 = vmatpush1.msra.mxu0 0.0
  %3738 = vmatprep.subr.mxu0 0.0
  %3739 = vmatpush1.msra.mxu0 0.0
  %3740 = vmatprep.subr.mxu0 0.0
  %3741 = vmatpush1.msra.mxu0 0.0
  %3742 = vmatprep.subr.mxu0 0.0
  %3743 = vmatpush1.msra.mxu0 0.0
  %3744 = vmatprep.subr.mxu0 0.0
  %3745 = vmatpush1.msra.mxu0 0.0
  %3746 = vmatprep.subr.mxu0 0.0
  %3747 = vmatpush1.msra.mxu0 0.0
  %3748 = vmatprep.subr.mxu0 0.0
  %3749 = vmatpush1.msra.mxu0 0.0
  %3750 = vmatprep.subr.mxu0 0.0
  %3751 = vmatpush1.msra.mxu0 0.0
  %3752 = vmatprep.subr.mxu0 0.0
  %3753 = vmatpush1.msra.mxu0 0.0
  %3754 = vmatprep.subr.mxu0 0.0
  %3755 = vmatpush1.msra.mxu0 0.0
  %3756 = vmatprep.subr.mxu0 0.0
  %3757 = vmatpush1.msra.mxu0 0.0
  %3758 = vmatprep.subr.mxu0 0.0
  %3759 = vmatpush1.msra.mxu0 0.0
  %3760 = vmatprep.subr.mxu0 0.0
  %3761 = vmatpush1.msra.mxu0 0.0
  %3762 = vmatprep.subr.mxu0 0.0
  %3763 = vmatpush1.msra.mxu0 0.0
  %3764 = vmatprep.subr.mxu0 0.0
  %3765 = vmatpush1.msra.mxu0 0.0
  %3766 = vmatprep.subr.mxu0 0.0
  %3767 = vmatpush1.msra.mxu0 0.0
  %3768 = vmatprep.mubr.f32.mxu0 0.0
  %3769 = vmatmul.mubr.f32.gmra.mrb[0].mxu0 %v3613
  %v3770 = vpop.f32.mrb[0].mxu0
  %v3771 = vadd.f32 0.0, %v3770
  %v3772 = vpop.f32.mrb[0].mxu0
  %v3773 = vadd.f32 0.0, %v3772
  %3774 = vdwg.mxu0
  %3775 = vmatprep.subr.mxu0 %v3631
  %3776 = vmatpush1.msra.mxu0 %v3628
  %3777 = vmatprep.subr.mxu0 0.0
  %3778 = vmatpush1.msra.mxu0 0.0
  %3779 = vmatprep.subr.mxu0 0.0
  %3780 = vmatpush1.msra.mxu0 0.0
  %3781 = vmatprep.subr.mxu0 0.0
  %3782 = vmatpush1.msra.mxu0 0.0
  %3783 = vmatprep.subr.mxu0 0.0
  %3784 = vmatpush1.msra.mxu0 0.0
  %3785 = vmatprep.subr.mxu0 0.0
  %3786 = vmatpush1.msra.mxu0 0.0
  %3787 = vmatprep.subr.mxu0 0.0
  %3788 = vmatpush1.msra.mxu0 0.0
  %3789 = vmatprep.subr.mxu0 0.0
  %3790 = vmatpush1.msra.mxu0 0.0
  %3791 = vmatprep.subr.mxu0 0.0
  %3792 = vmatpush1.msra.mxu0 0.0
  %3793 = vmatprep.subr.mxu0 0.0
  %3794 = vmatpush1.msra.mxu0 0.0
  %3795 = vmatprep.subr.mxu0 0.0
  %3796 = vmatpush1.msra.mxu0 0.0
  %3797 = vmatprep.subr.mxu0 0.0
  %3798 = vmatpush1.msra.mxu0 0.0
  %3799 = vmatprep.subr.mxu0 0.0
  %3800 = vmatpush1.msra.mxu0 0.0
  %3801 = vmatprep.subr.mxu0 0.0
  %3802 = vmatpush1.msra.mxu0 0.0
  %3803 = vmatprep.subr.mxu0 0.0
  %3804 = vmatpush1.msra.mxu0 0.0
  %3805 = vmatprep.subr.mxu0 0.0
  %3806 = vmatpush1.msra.mxu0 0.0
  %3807 = vmatprep.subr.mxu0 0.0
  %3808 = vmatpush1.msra.mxu0 0.0
  %3809 = vmatprep.subr.mxu0 0.0
  %3810 = vmatpush1.msra.mxu0 0.0
  %3811 = vmatprep.subr.mxu0 0.0
  %3812 = vmatpush1.msra.mxu0 0.0
  %3813 = vmatprep.subr.mxu0 0.0
  %3814 = vmatpush1.msra.mxu0 0.0
  %3815 = vmatprep.subr.mxu0 0.0
  %3816 = vmatpush1.msra.mxu0 0.0
  %3817 = vmatprep.subr.mxu0 0.0
  %3818 = vmatpush1.msra.mxu0 0.0
  %3819 = vmatprep.subr.mxu0 0.0
  %3820 = vmatpush1.msra.mxu0 0.0
  %3821 = vmatprep.subr.mxu0 0.0
  %3822 = vmatpush1.msra.mxu0 0.0
  %3823 = vmatprep.subr.mxu0 0.0
  %3824 = vmatpush1.msra.mxu0 0.0
  %3825 = vmatprep.subr.mxu0 0.0
  %3826 = vmatpush1.msra.mxu0 0.0
  %3827 = vmatprep.subr.mxu0 0.0
  %3828 = vmatpush1.msra.mxu0 0.0
  %3829 = vmatprep.subr.mxu0 0.0
  %3830 = vmatpush1.msra.mxu0 0.0
  %3831 = vmatprep.subr.mxu0 0.0
  %3832 = vmatpush1.msra.mxu0 0.0
  %3833 = vmatprep.subr.mxu0 0.0
  %3834 = vmatpush1.msra.mxu0 0.0
  %3835 = vmatprep.subr.mxu0 0.0
  %3836 = vmatpush1.msra.mxu0 0.0
  %3837 = vmatprep.subr.mxu0 0.0
  %3838 = vmatpush1.msra.mxu0 0.0
  %3839 = vmatprep.mubr.f32.mxu0 0.0
  %3840 = vmatmul.mubr.f32.gmra.mrb[0].mxu0 %v3613
  %v3841 = vpop.f32.mrb[0].mxu0
  %v3842 = vadd.f32 0.0, %v3841
  %v3843 = vpop.f32.mrb[0].mxu0
  %v3844 = vadd.f32 0.0, %v3843
  %3845 = vdwg.mxu0
  %v3846 = vadd.f32 %v3586, %v3700
  %v3847 = vadd.f32 %v3587, %v3702
  %v3848 = vadd.f32 %v3588, %v3771
  %v3849 = vadd.f32 %v3589, %v3773
  %v3850 = vadd.f32 %v3590, %v3842
  %v3851 = vadd.f32 %v3591, %v3844
  %3852 = vrot.lane.b32.xlu0 %v2316, 111
  %v3853 = vpop.permute.xlu0 %3852
  %3854 = vrot.lane.b32.xlu0 %v2317, 111
  %v3855 = vpop.permute.xlu0 %3854
  %3856 = vrot.lane.b32.xlu0 %v2318, 111
  %v3857 = vpop.permute.xlu0 %3856
  %3858 = vrot.lane.b32.xlu0 %v2319, 111
  %v3859 = vpop.permute.xlu0 %3858
  %3860 = vrot.lane.b32.xlu0 %v2320, 111
  %v3861 = vpop.permute.xlu0 %3860
  %3862 = vrot.lane.b32.xlu0 %v2321, 111
  %v3863 = vpop.permute.xlu0 %3862
  %v3864 = vsel %vm1477, %v3861, %v3863
  %v3865 = vsel %vm1477, %v3859, %v3861
  %v3866 = vsel %vm1477, %v3857, %v3859
  %v3867 = vsel %vm1477, %v3855, %v3857
  %v3868 = vsel %vm1477, %v3853, %v3855
  %v3869 = vsel %vm1477, %v3863, %v3853
  %s3870 = scalar_lea.vmem %s5, 24
  %v3871 = vld [vmem:[%s3870] sm:$0xf]
  %v3873 = vsel %vm2361, %v3871, 0
  %v3876 = vsel %vm2231, %v3868, 0
  %v3879 = vsel %vm2231, %v3867, 0
  %v3882 = vsel %vm2231, %v3866, 0
  %v3885 = vsel %vm2231, %v3865, 0
  %v3888 = vsel %vm2231, %v3864, 0
  %v3891 = vsel %vm2231, %v3869, 0
  %3893 = vmatprep.subr.mxu0 %v3879
  %3894 = vmatpush1.msra.mxu0 %v3876
  %3895 = vmatprep.subr.mxu0 0.0
  %3896 = vmatpush1.msra.mxu0 0.0
  %3897 = vmatprep.subr.mxu0 0.0
  %3898 = vmatpush1.msra.mxu0 0.0
  %3899 = vmatprep.subr.mxu0 0.0
  %3900 = vmatpush1.msra.mxu0 0.0
  %3901 = vmatprep.subr.mxu0 0.0
  %3902 = vmatpush1.msra.mxu0 0.0
  %3903 = vmatprep.subr.mxu0 0.0
  %3904 = vmatpush1.msra.mxu0 0.0
  %3905 = vmatprep.subr.mxu0 0.0
  %3906 = vmatpush1.msra.mxu0 0.0
  %3907 = vmatprep.subr.mxu0 0.0
  %3908 = vmatpush1.msra.mxu0 0.0
  %3909 = vmatprep.subr.mxu0 0.0
  %3910 = vmatpush1.msra.mxu0 0.0
  %3911 = vmatprep.subr.mxu0 0.0
  %3912 = vmatpush1.msra.mxu0 0.0
  %3913 = vmatprep.subr.mxu0 0.0
  %3914 = vmatpush1.msra.mxu0 0.0
  %3915 = vmatprep.subr.mxu0 0.0
  %3916 = vmatpush1.msra.mxu0 0.0
  %3917 = vmatprep.subr.mxu0 0.0
  %3918 = vmatpush1.msra.mxu0 0.0
  %3919 = vmatprep.subr.mxu0 0.0
  %3920 = vmatpush1.msra.mxu0 0.0
  %3921 = vmatprep.subr.mxu0 0.0
  %3922 = vmatpush1.msra.mxu0 0.0
  %3923 = vmatprep.subr.mxu0 0.0
  %3924 = vmatpush1.msra.mxu0 0.0
  %3925 = vmatprep.subr.mxu0 0.0
  %3926 = vmatpush1.msra.mxu0 0.0
  %3927 = vmatprep.subr.mxu0 0.0
  %3928 = vmatpush1.msra.mxu0 0.0
  %3929 = vmatprep.subr.mxu0 0.0
  %3930 = vmatpush1.msra.mxu0 0.0
  %3931 = vmatprep.subr.mxu0 0.0
  %3932 = vmatpush1.msra.mxu0 0.0
  %3933 = vmatprep.subr.mxu0 0.0
  %3934 = vmatpush1.msra.mxu0 0.0
  %3935 = vmatprep.subr.mxu0 0.0
  %3936 = vmatpush1.msra.mxu0 0.0
  %3937 = vmatprep.subr.mxu0 0.0
  %3938 = vmatpush1.msra.mxu0 0.0
  %3939 = vmatprep.subr.mxu0 0.0
  %3940 = vmatpush1.msra.mxu0 0.0
  %3941 = vmatprep.subr.mxu0 0.0
  %3942 = vmatpush1.msra.mxu0 0.0
  %3943 = vmatprep.subr.mxu0 0.0
  %3944 = vmatpush1.msra.mxu0 0.0
  %3945 = vmatprep.subr.mxu0 0.0
  %3946 = vmatpush1.msra.mxu0 0.0
  %3947 = vmatprep.subr.mxu0 0.0
  %3948 = vmatpush1.msra.mxu0 0.0
  %3949 = vmatprep.subr.mxu0 0.0
  %3950 = vmatpush1.msra.mxu0 0.0
  %3951 = vmatprep.subr.mxu0 0.0
  %3952 = vmatpush1.msra.mxu0 0.0
  %3953 = vmatprep.subr.mxu0 0.0
  %3954 = vmatpush1.msra.mxu0 0.0
  %3955 = vmatprep.subr.mxu0 0.0
  %3956 = vmatpush1.msra.mxu0 0.0
  %3957 = vmatprep.mubr.f32.mxu0 0.0
  %3958 = vmatmul.mubr.f32.gmra.mrb[0].mxu0 %v3873
  %v3959 = vpop.f32.mrb[0].mxu0
  %v3960 = vadd.f32 0.0, %v3959
  %v3961 = vpop.f32.mrb[0].mxu0
  %v3962 = vadd.f32 0.0, %v3961
  %3963 = vdwg.mxu0
  %3964 = vmatprep.subr.mxu0 %v3885
  %3965 = vmatpush1.msra.mxu0 %v3882
  %3966 = vmatprep.subr.mxu0 0.0
  %3967 = vmatpush1.msra.mxu0 0.0
  %3968 = vmatprep.subr.mxu0 0.0
  %3969 = vmatpush1.msra.mxu0 0.0
  %3970 = vmatprep.subr.mxu0 0.0
  %3971 = vmatpush1.msra.mxu0 0.0
  %3972 = vmatprep.subr.mxu0 0.0
  %3973 = vmatpush1.msra.mxu0 0.0
  %3974 = vmatprep.subr.mxu0 0.0
  %3975 = vmatpush1.msra.mxu0 0.0
  %3976 = vmatprep.subr.mxu0 0.0
  %3977 = vmatpush1.msra.mxu0 0.0
  %3978 = vmatprep.subr.mxu0 0.0
  %3979 = vmatpush1.msra.mxu0 0.0
  %3980 = vmatprep.subr.mxu0 0.0
  %3981 = vmatpush1.msra.mxu0 0.0
  %3982 = vmatprep.subr.mxu0 0.0
  %3983 = vmatpush1.msra.mxu0 0.0
  %3984 = vmatprep.subr.mxu0 0.0
  %3985 = vmatpush1.msra.mxu0 0.0
  %3986 = vmatprep.subr.mxu0 0.0
  %3987 = vmatpush1.msra.mxu0 0.0
  %3988 = vmatprep.subr.mxu0 0.0
  %3989 = vmatpush1.msra.mxu0 0.0
  %3990 = vmatprep.subr.mxu0 0.0
  %3991 = vmatpush1.msra.mxu0 0.0
  %3992 = vmatprep.subr.mxu0 0.0
  %3993 = vmatpush1.msra.mxu0 0.0
  %3994 = vmatprep.subr.mxu0 0.0
  %3995 = vmatpush1.msra.mxu0 0.0
  %3996 = vmatprep.subr.mxu0 0.0
  %3997 = vmatpush1.msra.mxu0 0.0
  %3998 = vmatprep.subr.mxu0 0.0
  %3999 = vmatpush1.msra.mxu0 0.0
  %4000 = vmatprep.subr.mxu0 0.0
  %4001 = vmatpush1.msra.mxu0 0.0
  %4002 = vmatprep.subr.mxu0 0.0
  %4003 = vmatpush1.msra.mxu0 0.0
  %4004 = vmatprep.subr.mxu0 0.0
  %4005 = vmatpush1.msra.mxu0 0.0
  %4006 = vmatprep.subr.mxu0 0.0
  %4007 = vmatpush1.msra.mxu0 0.0
  %4008 = vmatprep.subr.mxu0 0.0
  %4009 = vmatpush1.msra.mxu0 0.0
  %4010 = vmatprep.subr.mxu0 0.0
  %4011 = vmatpush1.msra.mxu0 0.0
  %4012 = vmatprep.subr.mxu0 0.0
  %4013 = vmatpush1.msra.mxu0 0.0
  %4014 = vmatprep.subr.mxu0 0.0
  %4015 = vmatpush1.msra.mxu0 0.0
  %4016 = vmatprep.subr.mxu0 0.0
  %4017 = vmatpush1.msra.mxu0 0.0
  %4018 = vmatprep.subr.mxu0 0.0
  %4019 = vmatpush1.msra.mxu0 0.0
  %4020 = vmatprep.subr.mxu0 0.0
  %4021 = vmatpush1.msra.mxu0 0.0
  %4022 = vmatprep.subr.mxu0 0.0
  %4023 = vmatpush1.msra.mxu0 0.0
  %4024 = vmatprep.subr.mxu0 0.0
  %4025 = vmatpush1.msra.mxu0 0.0
  %4026 = vmatprep.subr.mxu0 0.0
  %4027 = vmatpush1.msra.mxu0 0.0
  %4028 = vmatprep.mubr.f32.mxu0 0.0
  %4029 = vmatmul.mubr.f32.gmra.mrb[0].mxu0 %v3873
  %v4030 = vpop.f32.mrb[0].mxu0
  %v4031 = vadd.f32 0.0, %v4030
  %v4032 = vpop.f32.mrb[0].mxu0
  %v4033 = vadd.f32 0.0, %v4032
  %4034 = vdwg.mxu0
  %4035 = vmatprep.subr.mxu0 %v3891
  %4036 = vmatpush1.msra.mxu0 %v3888
  %4037 = vmatprep.subr.mxu0 0.0
  %4038 = vmatpush1.msra.mxu0 0.0
  %4039 = vmatprep.subr.mxu0 0.0
  %4040 = vmatpush1.msra.mxu0 0.0
  %4041 = vmatprep.subr.mxu0 0.0
  %4042 = vmatpush1.msra.mxu0 0.0
  %4043 = vmatprep.subr.mxu0 0.0
  %4044 = vmatpush1.msra.mxu0 0.0
  %4045 = vmatprep.subr.mxu0 0.0
  %4046 = vmatpush1.msra.mxu0 0.0
  %4047 = vmatprep.subr.mxu0 0.0
  %4048 = vmatpush1.msra.mxu0 0.0
  %4049 = vmatprep.subr.mxu0 0.0
  %4050 = vmatpush1.msra.mxu0 0.0
  %4051 = vmatprep.subr.mxu0 0.0
  %4052 = vmatpush1.msra.mxu0 0.0
  %4053 = vmatprep.subr.mxu0 0.0
  %4054 = vmatpush1.msra.mxu0 0.0
  %4055 = vmatprep.subr.mxu0 0.0
  %4056 = vmatpush1.msra.mxu0 0.0
  %4057 = vmatprep.subr.mxu0 0.0
  %4058 = vmatpush1.msra.mxu0 0.0
  %4059 = vmatprep.subr.mxu0 0.0
  %4060 = vmatpush1.msra.mxu0 0.0
  %4061 = vmatprep.subr.mxu0 0.0
  %4062 = vmatpush1.msra.mxu0 0.0
  %4063 = vmatprep.subr.mxu0 0.0
  %4064 = vmatpush1.msra.mxu0 0.0
  %4065 = vmatprep.subr.mxu0 0.0
  %4066 = vmatpush1.msra.mxu0 0.0
  %4067 = vmatprep.subr.mxu0 0.0
  %4068 = vmatpush1.msra.mxu0 0.0
  %4069 = vmatprep.subr.mxu0 0.0
  %4070 = vmatpush1.msra.mxu0 0.0
  %4071 = vmatprep.subr.mxu0 0.0
  %4072 = vmatpush1.msra.mxu0 0.0
  %4073 = vmatprep.subr.mxu0 0.0
  %4074 = vmatpush1.msra.mxu0 0.0
  %4075 = vmatprep.subr.mxu0 0.0
  %4076 = vmatpush1.msra.mxu0 0.0
  %4077 = vmatprep.subr.mxu0 0.0
  %4078 = vmatpush1.msra.mxu0 0.0
  %4079 = vmatprep.subr.mxu0 0.0
  %4080 = vmatpush1.msra.mxu0 0.0
  %4081 = vmatprep.subr.mxu0 0.0
  %4082 = vmatpush1.msra.mxu0 0.0
  %4083 = vmatprep.subr.mxu0 0.0
  %4084 = vmatpush1.msra.mxu0 0.0
  %4085 = vmatprep.subr.mxu0 0.0
  %4086 = vmatpush1.msra.mxu0 0.0
  %4087 = vmatprep.subr.mxu0 0.0
  %4088 = vmatpush1.msra.mxu0 0.0
  %4089 = vmatprep.subr.mxu0 0.0
  %4090 = vmatpush1.msra.mxu0 0.0
  %4091 = vmatprep.subr.mxu0 0.0
  %4092 = vmatpush1.msra.mxu0 0.0
  %4093 = vmatprep.subr.mxu0 0.0
  %4094 = vmatpush1.msra.mxu0 0.0
  %4095 = vmatprep.subr.mxu0 0.0
  %4096 = vmatpush1.msra.mxu0 0.0
  %4097 = vmatprep.subr.mxu0 0.0
  %4098 = vmatpush1.msra.mxu0 0.0
  %4099 = vmatprep.mubr.f32.mxu0 0.0
  %4100 = vmatmul.mubr.f32.gmra.mrb[0].mxu0 %v3873
  %v4101 = vpop.f32.mrb[0].mxu0
  %v4102 = vadd.f32 0.0, %v4101
  %v4103 = vpop.f32.mrb[0].mxu0
  %v4104 = vadd.f32 0.0, %v4103
  %4105 = vdwg.mxu0
  %v4106 = vadd.f32 %v3846, %v3960
  %v4107 = vadd.f32 %v3847, %v3962
  %v4108 = vadd.f32 %v3848, %v4031
  %v4109 = vadd.f32 %v3849, %v4033
  %v4110 = vadd.f32 %v3850, %v4102
  %v4111 = vadd.f32 %v3851, %v4104
  %4112 = vrot.lane.b32.xlu0 %v2316, 110
  %v4113 = vpop.permute.xlu0 %4112
  %4114 = vrot.lane.b32.xlu0 %v2317, 110
  %v4115 = vpop.permute.xlu0 %4114
  %4116 = vrot.lane.b32.xlu0 %v2318, 110
  %v4117 = vpop.permute.xlu0 %4116
  %4118 = vrot.lane.b32.xlu0 %v2319, 110
  %v4119 = vpop.permute.xlu0 %4118
  %4120 = vrot.lane.b32.xlu0 %v2320, 110
  %v4121 = vpop.permute.xlu0 %4120
  %4122 = vrot.lane.b32.xlu0 %v2321, 110
  %v4123 = vpop.permute.xlu0 %4122
  %v4124 = vsel %vm1720, %v4121, %v4123
  %v4125 = vsel %vm1720, %v4119, %v4121
  %v4126 = vsel %vm1720, %v4117, %v4119
  %v4127 = vsel %vm1720, %v4115, %v4117
  %v4128 = vsel %vm1720, %v4113, %v4115
  %v4129 = vsel %vm1720, %v4123, %v4113
  %s4130 = scalar_lea.vmem %s5, 28
  %v4131 = vld [vmem:[%s4130] sm:$0xf]
  %v4133 = vsel %vm2361, %v4131, 0
  %v4136 = vsel %vm2231, %v4128, 0
  %v4139 = vsel %vm2231, %v4127, 0
  %v4142 = vsel %vm2231, %v4126, 0
  %v4145 = vsel %vm2231, %v4125, 0
  %v4148 = vsel %vm2231, %v4124, 0
  %v4151 = vsel %vm2231, %v4129, 0
  %4153 = vmatprep.subr.mxu0 %v4139
  %4154 = vmatpush1.msra.mxu0 %v4136
  %4155 = vmatprep.subr.mxu0 0.0
  %4156 = vmatpush1.msra.mxu0 0.0
  %4157 = vmatprep.subr.mxu0 0.0
  %4158 = vmatpush1.msra.mxu0 0.0
  %4159 = vmatprep.subr.mxu0 0.0
  %4160 = vmatpush1.msra.mxu0 0.0
  %4161 = vmatprep.subr.mxu0 0.0
  %4162 = vmatpush1.msra.mxu0 0.0
  %4163 = vmatprep.subr.mxu0 0.0
  %4164 = vmatpush1.msra.mxu0 0.0
  %4165 = vmatprep.subr.mxu0 0.0
  %4166 = vmatpush1.msra.mxu0 0.0
  %4167 = vmatprep.subr.mxu0 0.0
  %4168 = vmatpush1.msra.mxu0 0.0
  %4169 = vmatprep.subr.mxu0 0.0
  %4170 = vmatpush1.msra.mxu0 0.0
  %4171 = vmatprep.subr.mxu0 0.0
  %4172 = vmatpush1.msra.mxu0 0.0
  %4173 = vmatprep.subr.mxu0 0.0
  %4174 = vmatpush1.msra.mxu0 0.0
  %4175 = vmatprep.subr.mxu0 0.0
  %4176 = vmatpush1.msra.mxu0 0.0
  %4177 = vmatprep.subr.mxu0 0.0
  %4178 = vmatpush1.msra.mxu0 0.0
  %4179 = vmatprep.subr.mxu0 0.0
  %4180 = vmatpush1.msra.mxu0 0.0
  %4181 = vmatprep.subr.mxu0 0.0
  %4182 = vmatpush1.msra.mxu0 0.0
  %4183 = vmatprep.subr.mxu0 0.0
  %4184 = vmatpush1.msra.mxu0 0.0
  %4185 = vmatprep.subr.mxu0 0.0
  %4186 = vmatpush1.msra.mxu0 0.0
  %4187 = vmatprep.subr.mxu0 0.0
  %4188 = vmatpush1.msra.mxu0 0.0
  %4189 = vmatprep.subr.mxu0 0.0
  %4190 = vmatpush1.msra.mxu0 0.0
  %4191 = vmatprep.subr.mxu0 0.0
  %4192 = vmatpush1.msra.mxu0 0.0
  %4193 = vmatprep.subr.mxu0 0.0
  %4194 = vmatpush1.msra.mxu0 0.0
  %4195 = vmatprep.subr.mxu0 0.0
  %4196 = vmatpush1.msra.mxu0 0.0
  %4197 = vmatprep.subr.mxu0 0.0
  %4198 = vmatpush1.msra.mxu0 0.0
  %4199 = vmatprep.subr.mxu0 0.0
  %4200 = vmatpush1.msra.mxu0 0.0
  %4201 = vmatprep.subr.mxu0 0.0
  %4202 = vmatpush1.msra.mxu0 0.0
  %4203 = vmatprep.subr.mxu0 0.0
  %4204 = vmatpush1.msra.mxu0 0.0
  %4205 = vmatprep.subr.mxu0 0.0
  %4206 = vmatpush1.msra.mxu0 0.0
  %4207 = vmatprep.subr.mxu0 0.0
  %4208 = vmatpush1.msra.mxu0 0.0
  %4209 = vmatprep.subr.mxu0 0.0
  %4210 = vmatpush1.msra.mxu0 0.0
  %4211 = vmatprep.subr.mxu0 0.0
  %4212 = vmatpush1.msra.mxu0 0.0
  %4213 = vmatprep.subr.mxu0 0.0
  %4214 = vmatpush1.msra.mxu0 0.0
  %4215 = vmatprep.subr.mxu0 0.0
  %4216 = vmatpush1.msra.mxu0 0.0
  %4217 = vmatprep.mubr.f32.mxu0 0.0
  %4218 = vmatmul.mubr.f32.gmra.mrb[0].mxu0 %v4133
  %v4219 = vpop.f32.mrb[0].mxu0
  %v4220 = vadd.f32 0.0, %v4219
  %v4221 = vpop.f32.mrb[0].mxu0
  %v4222 = vadd.f32 0.0, %v4221
  %4223 = vdwg.mxu0
  %4224 = vmatprep.subr.mxu0 %v4145
  %4225 = vmatpush1.msra.mxu0 %v4142
  %4226 = vmatprep.subr.mxu0 0.0
  %4227 = vmatpush1.msra.mxu0 0.0
  %4228 = vmatprep.subr.mxu0 0.0
  %4229 = vmatpush1.msra.mxu0 0.0
  %4230 = vmatprep.subr.mxu0 0.0
  %4231 = vmatpush1.msra.mxu0 0.0
  %4232 = vmatprep.subr.mxu0 0.0
  %4233 = vmatpush1.msra.mxu0 0.0
  %4234 = vmatprep.subr.mxu0 0.0
  %4235 = vmatpush1.msra.mxu0 0.0
  %4236 = vmatprep.subr.mxu0 0.0
  %4237 = vmatpush1.msra.mxu0 0.0
  %4238 = vmatprep.subr.mxu0 0.0
  %4239 = vmatpush1.msra.mxu0 0.0
  %4240 = vmatprep.subr.mxu0 0.0
  %4241 = vmatpush1.msra.mxu0 0.0
  %4242 = vmatprep.subr.mxu0 0.0
  %4243 = vmatpush1.msra.mxu0 0.0
  %4244 = vmatprep.subr.mxu0 0.0
  %4245 = vmatpush1.msra.mxu0 0.0
  %4246 = vmatprep.subr.mxu0 0.0
  %4247 = vmatpush1.msra.mxu0 0.0
  %4248 = vmatprep.subr.mxu0 0.0
  %4249 = vmatpush1.msra.mxu0 0.0
  %4250 = vmatprep.subr.mxu0 0.0
  %4251 = vmatpush1.msra.mxu0 0.0
  %4252 = vmatprep.subr.mxu0 0.0
  %4253 = vmatpush1.msra.mxu0 0.0
  %4254 = vmatprep.subr.mxu0 0.0
  %4255 = vmatpush1.msra.mxu0 0.0
  %4256 = vmatprep.subr.mxu0 0.0
  %4257 = vmatpush1.msra.mxu0 0.0
  %4258 = vmatprep.subr.mxu0 0.0
  %4259 = vmatpush1.msra.mxu0 0.0
  %4260 = vmatprep.subr.mxu0 0.0
  %4261 = vmatpush1.msra.mxu0 0.0
  %4262 = vmatprep.subr.mxu0 0.0
  %4263 = vmatpush1.msra.mxu0 0.0
  %4264 = vmatprep.subr.mxu0 0.0
  %4265 = vmatpush1.msra.mxu0 0.0
  %4266 = vmatprep.subr.mxu0 0.0
  %4267 = vmatpush1.msra.mxu0 0.0
  %4268 = vmatprep.subr.mxu0 0.0
  %4269 = vmatpush1.msra.mxu0 0.0
  %4270 = vmatprep.subr.mxu0 0.0
  %4271 = vmatpush1.msra.mxu0 0.0
  %4272 = vmatprep.subr.mxu0 0.0
  %4273 = vmatpush1.msra.mxu0 0.0
  %4274 = vmatprep.subr.mxu0 0.0
  %4275 = vmatpush1.msra.mxu0 0.0
  %4276 = vmatprep.subr.mxu0 0.0
  %4277 = vmatpush1.msra.mxu0 0.0
  %4278 = vmatprep.subr.mxu0 0.0
  %4279 = vmatpush1.msra.mxu0 0.0
  %4280 = vmatprep.subr.mxu0 0.0
  %4281 = vmatpush1.msra.mxu0 0.0
  %4282 = vmatprep.subr.mxu0 0.0
  %4283 = vmatpush1.msra.mxu0 0.0
  %4284 = vmatprep.subr.mxu0 0.0
  %4285 = vmatpush1.msra.mxu0 0.0
  %4286 = vmatprep.subr.mxu0 0.0
  %4287 = vmatpush1.msra.mxu0 0.0
  %4288 = vmatprep.mubr.f32.mxu0 0.0
  %4289 = vmatmul.mubr.f32.gmra.mrb[0].mxu0 %v4133
  %v4290 = vpop.f32.mrb[0].mxu0
  %v4291 = vadd.f32 0.0, %v4290
  %v4292 = vpop.f32.mrb[0].mxu0
  %v4293 = vadd.f32 0.0, %v4292
  %4294 = vdwg.mxu0
  %4295 = vmatprep.subr.mxu0 %v4151
  %4296 = vmatpush1.msra.mxu0 %v4148
  %4297 = vmatprep.subr.mxu0 0.0
  %4298 = vmatpush1.msra.mxu0 0.0
  %4299 = vmatprep.subr.mxu0 0.0
  %4300 = vmatpush1.msra.mxu0 0.0
  %4301 = vmatprep.subr.mxu0 0.0
  %4302 = vmatpush1.msra.mxu0 0.0
  %4303 = vmatprep.subr.mxu0 0.0
  %4304 = vmatpush1.msra.mxu0 0.0
  %4305 = vmatprep.subr.mxu0 0.0
  %4306 = vmatpush1.msra.mxu0 0.0
  %4307 = vmatprep.subr.mxu0 0.0
  %4308 = vmatpush1.msra.mxu0 0.0
  %4309 = vmatprep.subr.mxu0 0.0
  %4310 = vmatpush1.msra.mxu0 0.0
  %4311 = vmatprep.subr.mxu0 0.0
  %4312 = vmatpush1.msra.mxu0 0.0
  %4313 = vmatprep.subr.mxu0 0.0
  %4314 = vmatpush1.msra.mxu0 0.0
  %4315 = vmatprep.subr.mxu0 0.0
  %4316 = vmatpush1.msra.mxu0 0.0
  %4317 = vmatprep.subr.mxu0 0.0
  %4318 = vmatpush1.msra.mxu0 0.0
  %4319 = vmatprep.subr.mxu0 0.0
  %4320 = vmatpush1.msra.mxu0 0.0
  %4321 = vmatprep.subr.mxu0 0.0
  %4322 = vmatpush1.msra.mxu0 0.0
  %4323 = vmatprep.subr.mxu0 0.0
  %4324 = vmatpush1.msra.mxu0 0.0
  %4325 = vmatprep.subr.mxu0 0.0
  %4326 = vmatpush1.msra.mxu0 0.0
  %4327 = vmatprep.subr.mxu0 0.0
  %4328 = vmatpush1.msra.mxu0 0.0
  %4329 = vmatprep.subr.mxu0 0.0
  %4330 = vmatpush1.msra.mxu0 0.0
  %4331 = vmatprep.subr.mxu0 0.0
  %4332 = vmatpush1.msra.mxu0 0.0
  %4333 = vmatprep.subr.mxu0 0.0
  %4334 = vmatpush1.msra.mxu0 0.0
  %4335 = vmatprep.subr.mxu0 0.0
  %4336 = vmatpush1.msra.mxu0 0.0
  %4337 = vmatprep.subr.mxu0 0.0
  %4338 = vmatpush1.msra.mxu0 0.0
  %4339 = vmatprep.subr.mxu0 0.0
  %4340 = vmatpush1.msra.mxu0 0.0
  %4341 = vmatprep.subr.mxu0 0.0
  %4342 = vmatpush1.msra.mxu0 0.0
  %4343 = vmatprep.subr.mxu0 0.0
  %4344 = vmatpush1.msra.mxu0 0.0
  %4345 = vmatprep.subr.mxu0 0.0
  %4346 = vmatpush1.msra.mxu0 0.0
  %4347 = vmatprep.subr.mxu0 0.0
  %4348 = vmatpush1.msra.mxu0 0.0
  %4349 = vmatprep.subr.mxu0 0.0
  %4350 = vmatpush1.msra.mxu0 0.0
  %4351 = vmatprep.subr.mxu0 0.0
  %4352 = vmatpush1.msra.mxu0 0.0
  %4353 = vmatprep.subr.mxu0 0.0
  %4354 = vmatpush1.msra.mxu0 0.0
  %4355 = vmatprep.subr.mxu0 0.0
  %4356 = vmatpush1.msra.mxu0 0.0
  %4357 = vmatprep.subr.mxu0 0.0
  %4358 = vmatpush1.msra.mxu0 0.0
  %4359 = vmatprep.mubr.f32.mxu0 0.0
  %4360 = vmatmul.mubr.f32.gmra.mrb[0].mxu0 %v4133
  %v4361 = vpop.f32.mrb[0].mxu0
  %v4362 = vadd.f32 0.0, %v4361
  %v4363 = vpop.f32.mrb[0].mxu0
  %v4364 = vadd.f32 0.0, %v4363
  %4365 = vdwg.mxu0
  %v4366 = vadd.f32 %v4106, %v4220
  %v4367 = vadd.f32 %v4107, %v4222
  %v4368 = vadd.f32 %v4108, %v4291
  %v4369 = vadd.f32 %v4109, %v4293
  %v4370 = vadd.f32 %v4110, %v4362
  %v4371 = vadd.f32 %v4111, %v4364
  %4372 = vrot.lane.b32.xlu0 %v2316, 109
  %v4373 = vpop.permute.xlu0 %4372
  %4374 = vrot.lane.b32.xlu0 %v2317, 109
  %v4375 = vpop.permute.xlu0 %4374
  %4376 = vrot.lane.b32.xlu0 %v2318, 109
  %v4377 = vpop.permute.xlu0 %4376
  %4378 = vrot.lane.b32.xlu0 %v2319, 109
  %v4379 = vpop.permute.xlu0 %4378
  %4380 = vrot.lane.b32.xlu0 %v2320, 109
  %v4381 = vpop.permute.xlu0 %4380
  %4382 = vrot.lane.b32.xlu0 %v2321, 109
  %v4383 = vpop.permute.xlu0 %4382
  %v4384 = vsel %vm1963, %v4381, %v4383
  %v4385 = vsel %vm1963, %v4379, %v4381
  %v4386 = vsel %vm1963, %v4377, %v4379
  %v4387 = vsel %vm1963, %v4375, %v4377
  %v4388 = vsel %vm1963, %v4373, %v4375
  %v4389 = vsel %vm1963, %v4383, %v4373
  %s4390 = scalar_lea.vmem %s5, 32
  %v4391 = vld [vmem:[%s4390] sm:$0xf]
  %v4393 = vsel %vm2361, %v4391, 0
  %v4396 = vsel %vm2231, %v4388, 0
  %v4399 = vsel %vm2231, %v4387, 0
  %v4402 = vsel %vm2231, %v4386, 0
  %v4405 = vsel %vm2231, %v4385, 0
  %v4408 = vsel %vm2231, %v4384, 0
  %v4411 = vsel %vm2231, %v4389, 0
  %4413 = vmatprep.subr.mxu0 %v4399
  %4414 = vmatpush1.msra.mxu0 %v4396
  %4415 = vmatprep.subr.mxu0 0.0
  %4416 = vmatpush1.msra.mxu0 0.0
  %4417 = vmatprep.subr.mxu0 0.0
  %4418 = vmatpush1.msra.mxu0 0.0
  %4419 = vmatprep.subr.mxu0 0.0
  %4420 = vmatpush1.msra.mxu0 0.0
  %4421 = vmatprep.subr.mxu0 0.0
  %4422 = vmatpush1.msra.mxu0 0.0
  %4423 = vmatprep.subr.mxu0 0.0
  %4424 = vmatpush1.msra.mxu0 0.0
  %4425 = vmatprep.subr.mxu0 0.0
  %4426 = vmatpush1.msra.mxu0 0.0
  %4427 = vmatprep.subr.mxu0 0.0
  %4428 = vmatpush1.msra.mxu0 0.0
  %4429 = vmatprep.subr.mxu0 0.0
  %4430 = vmatpush1.msra.mxu0 0.0
  %4431 = vmatprep.subr.mxu0 0.0
  %4432 = vmatpush1.msra.mxu0 0.0
  %4433 = vmatprep.subr.mxu0 0.0
  %4434 = vmatpush1.msra.mxu0 0.0
  %4435 = vmatprep.subr.mxu0 0.0
  %4436 = vmatpush1.msra.mxu0 0.0
  %4437 = vmatprep.subr.mxu0 0.0
  %4438 = vmatpush1.msra.mxu0 0.0
  %4439 = vmatprep.subr.mxu0 0.0
  %4440 = vmatpush1.msra.mxu0 0.0
  %4441 = vmatprep.subr.mxu0 0.0
  %4442 = vmatpush1.msra.mxu0 0.0
  %4443 = vmatprep.subr.mxu0 0.0
  %4444 = vmatpush1.msra.mxu0 0.0
  %4445 = vmatprep.subr.mxu0 0.0
  %4446 = vmatpush1.msra.mxu0 0.0
  %4447 = vmatprep.subr.mxu0 0.0
  %4448 = vmatpush1.msra.mxu0 0.0
  %4449 = vmatprep.subr.mxu0 0.0
  %4450 = vmatpush1.msra.mxu0 0.0
  %4451 = vmatprep.subr.mxu0 0.0
  %4452 = vmatpush1.msra.mxu0 0.0
  %4453 = vmatprep.subr.mxu0 0.0
  %4454 = vmatpush1.msra.mxu0 0.0
  %4455 = vmatprep.subr.mxu0 0.0
  %4456 = vmatpush1.msra.mxu0 0.0
  %4457 = vmatprep.subr.mxu0 0.0
  %4458 = vmatpush1.msra.mxu0 0.0
  %4459 = vmatprep.subr.mxu0 0.0
  %4460 = vmatpush1.msra.mxu0 0.0
  %4461 = vmatprep.subr.mxu0 0.0
  %4462 = vmatpush1.msra.mxu0 0.0
  %4463 = vmatprep.subr.mxu0 0.0
  %4464 = vmatpush1.msra.mxu0 0.0
  %4465 = vmatprep.subr.mxu0 0.0
  %4466 = vmatpush1.msra.mxu0 0.0
  %4467 = vmatprep.subr.mxu0 0.0
  %4468 = vmatpush1.msra.mxu0 0.0
  %4469 = vmatprep.subr.mxu0 0.0
  %4470 = vmatpush1.msra.mxu0 0.0
  %4471 = vmatprep.subr.mxu0 0.0
  %4472 = vmatpush1.msra.mxu0 0.0
  %4473 = vmatprep.subr.mxu0 0.0
  %4474 = vmatpush1.msra.mxu0 0.0
  %4475 = vmatprep.subr.mxu0 0.0
  %4476 = vmatpush1.msra.mxu0 0.0
  %4477 = vmatprep.mubr.f32.mxu0 0.0
  %4478 = vmatmul.mubr.f32.gmra.mrb[0].mxu0 %v4393
  %v4479 = vpop.f32.mrb[0].mxu0
  %v4480 = vadd.f32 0.0, %v4479
  %v4481 = vpop.f32.mrb[0].mxu0
  %v4482 = vadd.f32 0.0, %v4481
  %4483 = vdwg.mxu0
  %4484 = vmatprep.subr.mxu0 %v4405
  %4485 = vmatpush1.msra.mxu0 %v4402
  %4486 = vmatprep.subr.mxu0 0.0
  %4487 = vmatpush1.msra.mxu0 0.0
  %4488 = vmatprep.subr.mxu0 0.0
  %4489 = vmatpush1.msra.mxu0 0.0
  %4490 = vmatprep.subr.mxu0 0.0
  %4491 = vmatpush1.msra.mxu0 0.0
  %4492 = vmatprep.subr.mxu0 0.0
  %4493 = vmatpush1.msra.mxu0 0.0
  %4494 = vmatprep.subr.mxu0 0.0
  %4495 = vmatpush1.msra.mxu0 0.0
  %4496 = vmatprep.subr.mxu0 0.0
  %4497 = vmatpush1.msra.mxu0 0.0
  %4498 = vmatprep.subr.mxu0 0.0
  %4499 = vmatpush1.msra.mxu0 0.0
  %4500 = vmatprep.subr.mxu0 0.0
  %4501 = vmatpush1.msra.mxu0 0.0
  %4502 = vmatprep.subr.mxu0 0.0
  %4503 = vmatpush1.msra.mxu0 0.0
  %4504 = vmatprep.subr.mxu0 0.0
  %4505 = vmatpush1.msra.mxu0 0.0
  %4506 = vmatprep.subr.mxu0 0.0
  %4507 = vmatpush1.msra.mxu0 0.0
  %4508 = vmatprep.subr.mxu0 0.0
  %4509 = vmatpush1.msra.mxu0 0.0
  %4510 = vmatprep.subr.mxu0 0.0
  %4511 = vmatpush1.msra.mxu0 0.0
  %4512 = vmatprep.subr.mxu0 0.0
  %4513 = vmatpush1.msra.mxu0 0.0
  %4514 = vmatprep.subr.mxu0 0.0
  %4515 = vmatpush1.msra.mxu0 0.0
  %4516 = vmatprep.subr.mxu0 0.0
  %4517 = vmatpush1.msra.mxu0 0.0
  %4518 = vmatprep.subr.mxu0 0.0
  %4519 = vmatpush1.msra.mxu0 0.0
  %4520 = vmatprep.subr.mxu0 0.0
  %4521 = vmatpush1.msra.mxu0 0.0
  %4522 = vmatprep.subr.mxu0 0.0
  %4523 = vmatpush1.msra.mxu0 0.0
  %4524 = vmatprep.subr.mxu0 0.0
  %4525 = vmatpush1.msra.mxu0 0.0
  %4526 = vmatprep.subr.mxu0 0.0
  %4527 = vmatpush1.msra.mxu0 0.0
  %4528 = vmatprep.subr.mxu0 0.0
  %4529 = vmatpush1.msra.mxu0 0.0
  %4530 = vmatprep.subr.mxu0 0.0
  %4531 = vmatpush1.msra.mxu0 0.0
  %4532 = vmatprep.subr.mxu0 0.0
  %4533 = vmatpush1.msra.mxu0 0.0
  %4534 = vmatprep.subr.mxu0 0.0
  %4535 = vmatpush1.msra.mxu0 0.0
  %4536 = vmatprep.subr.mxu0 0.0
  %4537 = vmatpush1.msra.mxu0 0.0
  %4538 = vmatprep.subr.mxu0 0.0
  %4539 = vmatpush1.msra.mxu0 0.0
  %4540 = vmatprep.subr.mxu0 0.0
  %4541 = vmatpush1.msra.mxu0 0.0
  %4542 = vmatprep.subr.mxu0 0.0
  %4543 = vmatpush1.msra.mxu0 0.0
  %4544 = vmatprep.subr.mxu0 0.0
  %4545 = vmatpush1.msra.mxu0 0.0
  %4546 = vmatprep.subr.mxu0 0.0
  %4547 = vmatpush1.msra.mxu0 0.0
  %4548 = vmatprep.mubr.f32.mxu0 0.0
  %4549 = vmatmul.mubr.f32.gmra.mrb[0].mxu0 %v4393
  %v4550 = vpop.f32.mrb[0].mxu0
  %v4551 = vadd.f32 0.0, %v4550
  %v4552 = vpop.f32.mrb[0].mxu0
  %v4553 = vadd.f32 0.0, %v4552
  %4554 = vdwg.mxu0
  %4555 = vmatprep.subr.mxu0 %v4411
  %4556 = vmatpush1.msra.mxu0 %v4408
  %4557 = vmatprep.subr.mxu0 0.0
  %4558 = vmatpush1.msra.mxu0 0.0
  %4559 = vmatprep.subr.mxu0 0.0
  %4560 = vmatpush1.msra.mxu0 0.0
  %4561 = vmatprep.subr.mxu0 0.0
  %4562 = vmatpush1.msra.mxu0 0.0
  %4563 = vmatprep.subr.mxu0 0.0
  %4564 = vmatpush1.msra.mxu0 0.0
  %4565 = vmatprep.subr.mxu0 0.0
  %4566 = vmatpush1.msra.mxu0 0.0
  %4567 = vmatprep.subr.mxu0 0.0
  %4568 = vmatpush1.msra.mxu0 0.0
  %4569 = vmatprep.subr.mxu0 0.0
  %4570 = vmatpush1.msra.mxu0 0.0
  %4571 = vmatprep.subr.mxu0 0.0
  %4572 = vmatpush1.msra.mxu0 0.0
  %4573 = vmatprep.subr.mxu0 0.0
  %4574 = vmatpush1.msra.mxu0 0.0
  %4575 = vmatprep.subr.mxu0 0.0
  %4576 = vmatpush1.msra.mxu0 0.0
  %4577 = vmatprep.subr.mxu0 0.0
  %4578 = vmatpush1.msra.mxu0 0.0
  %4579 = vmatprep.subr.mxu0 0.0
  %4580 = vmatpush1.msra.mxu0 0.0
  %4581 = vmatprep.subr.mxu0 0.0
  %4582 = vmatpush1.msra.mxu0 0.0
  %4583 = vmatprep.subr.mxu0 0.0
  %4584 = vmatpush1.msra.mxu0 0.0
  %4585 = vmatprep.subr.mxu0 0.0
  %4586 = vmatpush1.msra.mxu0 0.0
  %4587 = vmatprep.subr.mxu0 0.0
  %4588 = vmatpush1.msra.mxu0 0.0
  %4589 = vmatprep.subr.mxu0 0.0
  %4590 = vmatpush1.msra.mxu0 0.0
  %4591 = vmatprep.subr.mxu0 0.0
  %4592 = vmatpush1.msra.mxu0 0.0
  %4593 = vmatprep.subr.mxu0 0.0
  %4594 = vmatpush1.msra.mxu0 0.0
  %4595 = vmatprep.subr.mxu0 0.0
  %4596 = vmatpush1.msra.mxu0 0.0
  %4597 = vmatprep.subr.mxu0 0.0
  %4598 = vmatpush1.msra.mxu0 0.0
  %4599 = vmatprep.subr.mxu0 0.0
  %4600 = vmatpush1.msra.mxu0 0.0
  %4601 = vmatprep.subr.mxu0 0.0
  %4602 = vmatpush1.msra.mxu0 0.0
  %4603 = vmatprep.subr.mxu0 0.0
  %4604 = vmatpush1.msra.mxu0 0.0
  %4605 = vmatprep.subr.mxu0 0.0
  %4606 = vmatpush1.msra.mxu0 0.0
  %4607 = vmatprep.subr.mxu0 0.0
  %4608 = vmatpush1.msra.mxu0 0.0
  %4609 = vmatprep.subr.mxu0 0.0
  %4610 = vmatpush1.msra.mxu0 0.0
  %4611 = vmatprep.subr.mxu0 0.0
  %4612 = vmatpush1.msra.mxu0 0.0
  %4613 = vmatprep.subr.mxu0 0.0
  %4614 = vmatpush1.msra.mxu0 0.0
  %4615 = vmatprep.subr.mxu0 0.0
  %4616 = vmatpush1.msra.mxu0 0.0
  %4617 = vmatprep.subr.mxu0 0.0
  %4618 = vmatpush1.msra.mxu0 0.0
  %4619 = vmatprep.mubr.f32.mxu0 0.0
  %4620 = vmatmul.mubr.f32.gmra.mrb[0].mxu0 %v4393
  %v4621 = vpop.f32.mrb[0].mxu0
  %v4622 = vadd.f32 0.0, %v4621
  %v4623 = vpop.f32.mrb[0].mxu0
  %v4624 = vadd.f32 0.0, %v4623
  %4625 = vdwg.mxu0
  %v4626 = vadd.f32 %v4366, %v4480
  %v4627 = vadd.f32 %v4367, %v4482
  %v4628 = vadd.f32 %v4368, %v4551
  %v4629 = vadd.f32 %v4369, %v4553
  %v4630 = vadd.f32 %v4370, %v4622
  %v4631 = vadd.f32 %v4371, %v4624
  %v4632 = vmul.f32 %v4626, %v2198
  %v4633 = vmul.f32 %v4627, %v2202
  %v4634 = vmul.f32 %v4628, %v2206
  %v4635 = vmul.f32 %v4629, %v2210
  %v4636 = vmul.f32 %v4630, %v2214
  %v4637 = vmul.f32 %v4631, %v2218
  %v4638 = vsel %vm2231, %v4632, 0.0
  %v4639 = vsel %vm2231, %v4633, 0.0
  %v4640 = vadd.f32 %v4638, %v4639
  %v4641 = vsel %vm2231, %v4634, 0.0
  %v4642 = vadd.f32 %v4640, %v4641
  %v4643 = vsel %vm2231, %v4635, 0.0
  %v4644 = vadd.f32 %v4642, %v4643
  %v4645 = vsel %vm2231, %v4636, 0.0
  %v4646 = vadd.f32 %v4644, %v4645
  %v4647 = vsel %vm2231, %v4637, 0.0
  %v4648 = vadd.f32 %v4646, %v4647
  %4649 = vadd.xlane.f32.xlu0 %v4648
  %v4650 = vpop.xlane.xlu0 %4649
  %v4651 = vmul.f32 %v4650, 0.001953125
  %v4652 = vsub.f32 %v4626, %v4651
  %v4653 = vsub.f32 %v4627, %v4651
  %v4654 = vsub.f32 %v4628, %v4651
  %v4655 = vsub.f32 %v4629, %v4651
  %v4656 = vsub.f32 %v4630, %v4651
  %v4657 = vsub.f32 %v4631, %v4651
  %v4658 = vmul.f32 %v4652, %v4652
  %v4659 = vmul.f32 %v4653, %v4653
  %v4660 = vmul.f32 %v4654, %v4654
  %v4661 = vmul.f32 %v4655, %v4655
  %v4662 = vmul.f32 %v4656, %v4656
  %v4663 = vmul.f32 %v4657, %v4657
  %v4664 = vmul.f32 %v4658, %v2198
  %v4665 = vmul.f32 %v4659, %v2202
  %v4666 = vmul.f32 %v4660, %v2206
  %v4667 = vmul.f32 %v4661, %v2210
  %v4668 = vmul.f32 %v4662, %v2214
  %v4669 = vmul.f32 %v4663, %v2218
  %v4670 = vsel %vm2231, %v4664, 0.0
  %v4671 = vsel %vm2231, %v4665, 0.0
  %v4672 = vadd.f32 %v4670, %v4671
  %v4673 = vsel %vm2231, %v4666, 0.0
  %v4674 = vadd.f32 %v4672, %v4673
  %v4675 = vsel %vm2231, %v4667, 0.0
  %v4676 = vadd.f32 %v4674, %v4675
  %v4677 = vsel %vm2231, %v4668, 0.0
  %v4678 = vadd.f32 %v4676, %v4677
  %v4679 = vsel %vm2231, %v4669, 0.0
  %v4680 = vadd.f32 %v4678, %v4679
  %4681 = vadd.xlane.f32.xlu0 %v4680
  %v4682 = vpop.xlane.xlu0 %4681
  %v4683 = vmul.f32 %v4682, 0.001953125
  %v4684 = vadd.f32 %v4683, 1e-05
  %v4685 = vrsqrt.pop %v4684
  %v4686 = vmul.f32 %v4652, %v4685
  %v4687 = vmul.f32 %v4653, %v4685
  %v4688 = vmul.f32 %v4654, %v4685
  %v4689 = vmul.f32 %v4655, %v4685
  %v4690 = vmul.f32 %v4656, %v4685
  %v4691 = vmul.f32 %v4657, %v4685
  %v4692 = vld [vmem:[%s6] sm:$0xf]
  %4694 = vset.pattern.permute.xlu0 0
  %4695 = vperm.xlu0 %4694, %v4692
  %v4696 = vpop.permute.xlu0 %4695
  %v4698 = vmul.f32 %v4686, %v4696
  %v4699 = vmul.f32 %v4687, %v4696
  %v4700 = vmul.f32 %v4688, %v4696
  %v4701 = vmul.f32 %v4689, %v4696
  %v4702 = vmul.f32 %v4690, %v4696
  %v4703 = vmul.f32 %v4691, %v4696
  %v4704 = vld [vmem:[%s7] sm:$0xf]
  %4706 = vset.pattern.permute.xlu0 0
  %4707 = vperm.xlu0 %4706, %v4704
  %v4708 = vpop.permute.xlu0 %4707
  %v4710 = vadd.f32 %v4698, %v4708
  %v4711 = vadd.f32 %v4699, %v4708
  %v4712 = vadd.f32 %v4700, %v4708
  %v4713 = vadd.f32 %v4701, %v4708
  %v4714 = vadd.f32 %v4702, %v4708
  %v4715 = vadd.f32 %v4703, %v4708
  %v4716 = vmax.f32 %v4710, 0.0
  %v4717 = vmax.f32 %v4711, 0.0
  %v4718 = vmax.f32 %v4712, 0.0
  %v4719 = vmax.f32 %v4713, 0.0
  %v4720 = vmax.f32 %v4714, 0.0
  %v4721 = vmax.f32 %v4715, 0.0
  %v4722 = vmul.f32 %v4716, %v2198
  %v4723 = vmul.f32 %v4717, %v2202
  %v4724 = vmul.f32 %v4718, %v2206
  %v4725 = vmul.f32 %v4719, %v2210
  %v4726 = vmul.f32 %v4720, %v2214
  %v4727 = vmul.f32 %v4721, %v2218
  %v4734 = vcombine.low %v4722, %v4723
  %v4735 = vcombine.low %v4724, %v4725
  %v4736 = vcombine.low %v4726, %v4727
  %4740 = vst [vmem:[%s8] sm:$0xff] %v4734
  %4741 = vst [vmem:[%s8 + $0x8] sm:$0xff] %v4735
  %4742 = vst [vmem:[%s8 + $0x10] sm:$0xff] %v4736
  // Predicated region
  $region34: #{up_forward.1} parent=0 // pred_check
    _
  $region35: #{up_forward.1} parent=0 // pred_check_branch
    %4744 = sbr.rel (0) target = $region37
  $region36: #{up_forward.1} parent=0 // pred_region
    _
  $region37: #{up_forward.1} parent=0 // pred_fallthru
    _
  // Predicated region
  $region38: #{up_forward.1} parent=0 // pred_check
    _
  $region39: #{up_forward.1} parent=0 // pred_check_branch
    %4746 = sbr.rel (0) target = $region41
  $region40: #{up_forward.1} parent=0 // pred_region
    _
  $region41: #{up_forward.1} parent=0 // pred_fallthru
    _

</llo_original>
